<compile_context>
chip_gen: v7x
topology: tpu7x:2x2x1
jax: 0.10.0
libtpu: 0.0.40
codegen_flags: <defaults>
</compile_context>

<pallas_src>
import functools

import jax
import jax.numpy as jnp
from jax.experimental import pallas as pl
from jax.experimental.pallas import tpu as pltpu

F32 = jnp.float32
BF16 = jnp.bfloat16

# Lane tiles <= 512 (VMEM safety on v5e default / v7x physical), biased to
# 256-multiples for v6e/v7x 256x256 MXUs.  Sublane tiles <= 256.
_SUBLANE_TILES = (256, 128, 64, 32, 16, 8)
_LANE_TILES = (512, 256, 128)


def _pick_tile(dim, candidates):
    """Largest candidate that evenly divides `dim`, else the full dim."""
    for c in candidates:
        if dim % c == 0:
            return c
    return dim


def _pick_tiles(M, N, K):
    """Tiles for the (M, N, K) matmul grid; guarantee >=2 blocks on a
    'parallel' axis when possible so v7x's 2 TensorCores both get work."""
    tn = _pick_tile(N, _LANE_TILES)
    tk = _pick_tile(K, _LANE_TILES)
    tm = _pick_tile(M, _SUBLANE_TILES)
    if N // tn < 2 and M // tm < 2:
        for c in _SUBLANE_TILES:
            if M % c == 0 and M // c >= 2:
                tm = c
                break
    return tm, tn, tk


# --------------------------------------------------------------------------
# Pallas kernels
# --------------------------------------------------------------------------

def _mm_kernel(x_ref, w_ref, *rest, act, has_bias):
    """Tiled matmul, f32 VMEM accumulator; bias + relu + dtype cast at finalize."""
    if has_bias:
        b_ref, o_ref, acc_ref = rest
    else:
        b_ref = None
        o_ref, acc_ref = rest

    @pl.when(pl.program_id(2) == 0)
    def _():
        acc_ref[...] = jnp.zeros_like(acc_ref)

    acc_ref[...] += jnp.dot(x_ref[...], w_ref[...],
                            preferred_element_type=jnp.float32)

    @pl.when(pl.program_id(2) == pl.num_programs(2) - 1)
    def _():
        y = acc_ref[...]
        if has_bias:
            y = y + b_ref[...]
        if act == "relu":
            y = jnp.maximum(y, 0.0)
        o_ref[...] = y.astype(o_ref.dtype)


def _mm_glu_kernel(x_ref, wa_ref, wb_ref, ba_ref, bb_ref, o_ref,
                   acca_ref, accb_ref):
    """GLU via split weights: out = (x@Wa+ba) * sigmoid(x@Wb+bb).

    Split halves keep the output tile lane-dense (no mid-matrix column slice)."""
    @pl.when(pl.program_id(2) == 0)
    def _():
        acca_ref[...] = jnp.zeros_like(acca_ref)
        accb_ref[...] = jnp.zeros_like(accb_ref)

    xv = x_ref[...]
    acca_ref[...] += jnp.dot(xv, wa_ref[...], preferred_element_type=jnp.float32)
    accb_ref[...] += jnp.dot(xv, wb_ref[...], preferred_element_type=jnp.float32)

    @pl.when(pl.program_id(2) == pl.num_programs(2) - 1)
    def _():
        y = ((acca_ref[...] + ba_ref[...]) *
             jax.nn.sigmoid(accb_ref[...] + bb_ref[...]))
        o_ref[...] = y.astype(o_ref.dtype)


def _lstm_rec_kernel(gx_ref, whh_ref, o_ref, h_ref, c_ref, slab_ref, *, Tc, H):
    """LSTM recurrence only (input projection hoisted to a big matmul).

    gx_ref : (B, Tc, 4H) f32 precomputed x@W_ih + b for this time chunk.
    whh_ref: (H, 4H) bf16.  h/c carried in f32 VMEM scratch across the grid.
    h written per step into a VMEM slab; one dense store per chunk.
    PyTorch gate order (i, f, g, o)."""
    @pl.when(pl.program_id(0) == 0)
    def _():
        h_ref[...] = jnp.zeros_like(h_ref)
        c_ref[...] = jnp.zeros_like(c_ref)

    w = whh_ref[...]
    h = h_ref[...]
    c = c_ref[...]
    # Statically unrolled time loop (Tc <= 8) gives the LLO scheduler room to
    # hide MXU / EUP latency on this latency-bound layer.
    # TODO(synk): hold W_hh in the MXU across the chunk via matmul_push_rhs.
    for t in range(Tc):
        gx_t = gx_ref[:, t, :]                                   # (B, 4H) f32
        gates = gx_t + jnp.dot(h.astype(BF16), w,
                               preferred_element_type=jnp.float32)
        i_g = jax.nn.sigmoid(gates[:, 0 * H:1 * H])
        f_g = jax.nn.sigmoid(gates[:, 1 * H:2 * H])
        g_g = jnp.tanh(gates[:, 2 * H:3 * H])
        o_g = jax.nn.sigmoid(gates[:, 3 * H:4 * H])
        c = f_g * c + i_g * g_g
        h = o_g * jnp.tanh(c)
        slab_ref[:, t, :] = h
    h_ref[...] = h
    c_ref[...] = c
    o_ref[...] = slab_ref[...].astype(o_ref.dtype)               # single slab store


# --------------------------------------------------------------------------
# Pallas call wrappers
# --------------------------------------------------------------------------

def matmul_act(x, w, b=None, act="none", out_dtype=BF16):
    """act(x @ w [+ b]); act in {"none","relu"}. bf16 operands, f32 accum."""
    M, K = x.shape
    K2, N = w.shape
    assert K == K2
    tm, tn, tk = _pick_tiles(M, N, K)
    grid = (M // tm, N // tn, K // tk)

    in_specs = [pl.BlockSpec((tm, tk), lambda i, j, k: (i, k)),
                pl.BlockSpec((tk, tn), lambda i, j, k: (k, j))]
    args = [x.astype(BF16), w.astype(BF16)]
    if b is not None:
        in_specs.append(pl.BlockSpec((1, tn), lambda i, j, k: (0, j)))
        args.append(b.reshape(1, N).astype(F32))

    cost = pl.CostEstimate(flops=2 * M * N * K, transcendentals=0,
                           bytes_accessed=2 * (M * K + K * N + M * N))
    return pl.pallas_call(
        functools.partial(_mm_kernel, act=act, has_bias=b is not None),
        out_shape=jax.ShapeDtypeStruct((M, N), out_dtype),
        grid_spec=pltpu.PrefetchScalarGridSpec(
            num_scalar_prefetch=0, grid=grid,
            in_specs=in_specs,
            out_specs=pl.BlockSpec((tm, tn), lambda i, j, k: (i, j)),
            scratch_shapes=[pltpu.VMEM((tm, tn), F32)]),
        compiler_params=pltpu.CompilerParams(
            dimension_semantics=("parallel", "parallel", "arbitrary")),
        cost_estimate=cost,
    )(*args)


def matmul_glu(x, wa, wb, ba, bb, out_dtype=BF16):
    """(x@wa+ba) * sigmoid(x@wb+bb) with split GLU weights (lane-dense out)."""
    M, K = x.shape
    N = wa.shape[1]
    tm, tn, tk = _pick_tiles(M, N, K)
    grid = (M // tm, N // tn, K // tk)

    w_spec = pl.BlockSpec((tk, tn), lambda i, j, k: (k, j))
    b_spec = pl.BlockSpec((1, tn), lambda i, j, k: (0, j))
    cost = pl.CostEstimate(flops=4 * M * N * K, transcendentals=M * N,
                           bytes_accessed=2 * (M * K + 2 * K * N + M * N))
    return pl.pallas_call(
        _mm_glu_kernel,
        out_shape=jax.ShapeDtypeStruct((M, N), out_dtype),
        grid_spec=pltpu.PrefetchScalarGridSpec(
            num_scalar_prefetch=0, grid=grid,
            in_specs=[pl.BlockSpec((tm, tk), lambda i, j, k: (i, k)),
                      w_spec, w_spec, b_spec, b_spec],
            out_specs=pl.BlockSpec((tm, tn), lambda i, j, k: (i, j)),
            scratch_shapes=[pltpu.VMEM((tm, tn), F32),
                            pltpu.VMEM((tm, tn), F32)]),
        compiler_params=pltpu.CompilerParams(
            dimension_semantics=("parallel", "parallel", "arbitrary")),
        cost_estimate=cost,
    )(x.astype(BF16), wa.astype(BF16), wb.astype(BF16),
      ba.reshape(1, N).astype(F32), bb.reshape(1, N).astype(F32))


def lstm_recurrence(gx_btg, w_hh_t):
    """Recurrent part of one LSTM layer, streamed over time chunks.

    gx_btg: (B, T, 4H) f32 precomputed input gates; w_hh_t: (H, 4H)."""
    B, T, G = gx_btg.shape
    H = G // 4
    Tc = _pick_tile(T, (8, 4, 2, 1))          # small static unroll
    grid = (T // Tc,)
    return pl.pallas_call(
        functools.partial(_lstm_rec_kernel, Tc=Tc, H=H),
        out_shape=jax.ShapeDtypeStruct((B, T, H), BF16),
        grid_spec=pltpu.PrefetchScalarGridSpec(
            num_scalar_prefetch=0, grid=grid,
            in_specs=[pl.BlockSpec((B, Tc, G), lambda i: (0, i, 0)),
                      pl.BlockSpec((H, G), lambda i: (0, 0))],
            out_specs=pl.BlockSpec((B, Tc, H), lambda i: (0, i, 0)),
            scratch_shapes=[pltpu.VMEM((B, H), F32),
                            pltpu.VMEM((B, H), F32),
                            pltpu.VMEM((B, Tc, H), F32)]),
        compiler_params=pltpu.CompilerParams(
            dimension_semantics=("arbitrary",)),
    )(gx_btg.astype(F32), w_hh_t.astype(BF16))


# --------------------------------------------------------------------------
# JAX glue: NWC im2col, overlap-add epilogue, time pad/cut
# --------------------------------------------------------------------------

def _im2col_nwc(x, K, stride):
    """x (B, T, C) -> patches (B*Tout, K*C) with (k, c) column order.

    TODO(synk): fuse im2col into the matmul via an overlapping-window
    manual-DMA kernel to drop this HBM materialization entirely."""
    B, T, C = x.shape
    Tout = (T - K) // stride + 1
    x = x.astype(BF16)
    if K == 1:
        if stride == 1:
            return x.reshape(B * T, C), T
        return x[:, :(Tout - 1) * stride + 1:stride, :].reshape(B * Tout, C), Tout
    if stride > 1 and K % stride == 0 and T % stride == 0:
        # Non-overlapping reshape + Q shifted slices (Q = K/stride, not K).
        Q = K // stride
        xr = x.reshape(B, T // stride, stride * C)
        cols = [xr[:, q:q + Tout, :] for q in range(Q)]
        patches = jnp.concatenate(cols, axis=-1)             # (B, Tout, K*C)
        return patches.reshape(B * Tout, K * C), Tout
    cols = [jax.lax.slice_in_dim(x, k, k + (Tout - 1) * stride + 1, stride, axis=1)
            for k in range(K)]
    patches = jnp.stack(cols, axis=2)                         # (B, Tout, K, C)
    return patches.reshape(B * Tout, K * C), Tout


def conv1d_relu_nwc(x, wm, b, K, stride):
    """Conv1d + ReLU in NWC; wm pre-reshaped (K*Cin, Cout). Returns bf16."""
    B = x.shape[0]
    Cout = wm.shape[1]
    patches, Tout = _im2col_nwc(x, K, stride)
    y = matmul_act(patches, wm, b, act="relu")                # (B*Tout, Cout)
    return y.reshape(B, Tout, Cout)


def conv1d_glu_nwc(x, wa, wb, ba, bb, K, stride):
    """Conv1d + GLU (channel dim) in NWC; wa/wb pre-split (K*Cin, Cout)."""
    B = x.shape[0]
    Cout = wa.shape[1]
    patches, Tout = _im2col_nwc(x, K, stride)
    y = matmul_glu(patches, wa, wb, ba, bb)                   # (B*Tout, Cout)
    return y.reshape(B, Tout, Cout)


def conv_transpose1d_nwc(x, wm, b, K, stride, relu):
    """ConvTranspose1d in NWC; wm pre-reshaped (Cin, K*Cout) with (k, co)
    column order; overlap-add + bias + ReLU fused into one elementwise pass."""
    B, T, Cin = x.shape
    Cout = b.shape[0]
    Tout = (T - 1) * stride + K
    y = matmul_act(x.reshape(B * T, Cin), wm, None, act="none")   # (B*T, K*Cout)
    y = y.reshape(B, T, K, Cout)
    if K % stride == 0:
        Q = K // stride
        yr = y.reshape(B, T, Q, stride * Cout)
        # Overlap-add as Q shifted zero-pads; XLA fuses pads + adds + bias +
        # relu into a single pass over the full-resolution output.
        out_r = jnp.zeros((B, T + Q - 1, stride * Cout), F32)
        for q in range(Q):
            out_r = out_r + jnp.pad(yr[:, :, q, :].astype(F32),
                                    ((0, 0), (q, Q - 1 - q), (0, 0)))
        out = out_r.reshape(B, (T + Q - 1) * stride, Cout)        # == Tout
    else:
        # TODO(synk): slow strided scatter-add fallback; unused for standard
        # Demucs configs (K % stride == 0).
        out = jnp.zeros((B, Tout, Cout), F32)
        for k in range(K):
            out = out.at[:, k:k + (T - 1) * stride + 1:stride, :].add(
                y[:, :, k, :].astype(F32))
    out = out + b[None, None, :]
    if relu:
        out = jnp.maximum(out, 0.0)
    return out.astype(BF16)


def pad_cut_time(x, t_target):
    """Truncate / zero-pad along the time axis (axis 1 in NWC).
    TODO(synk): pad_cut_batch_audio is not defined in the reference file."""
    T = x.shape[1]
    if T > t_target:
        return x[:, :t_target, :]
    if T < t_target:
        return jnp.pad(x, ((0, 0), (0, t_target - T), (0, 0)))
    return x


# --------------------------------------------------------------------------
# Demucs forward (activations in NWC bf16 throughout)
# --------------------------------------------------------------------------

def encoder_forward(x, p, ecfg):
    x = conv1d_relu_nwc(x, p["w1"], p["b1"],
                        ecfg["conv1"]["kernel_size"], ecfg["conv1"]["stride"])
    if x.shape[1] % 2 == 1:
        x = jnp.pad(x, ((0, 0), (0, 1), (0, 0)))
    x = conv1d_glu_nwc(x, p["w2a"], p["w2b"], p["b2a"], p["b2b"],
                       ecfg["conv2"]["kernel_size"], ecfg["conv2"]["stride"])
    return x


def decoder_forward(x, p, dcfg, is_last):
    x = conv1d_glu_nwc(x, p["w1a"], p["w1b"], p["b1a"], p["b1b"],
                       dcfg["conv1"]["kernel_size"], dcfg["conv1"]["stride"])
    x = conv_transpose1d_nwc(x, p["w2"], p["b2"],
                             dcfg["conv2"]["kernel_size"],
                             dcfg["conv2"]["stride"],
                             relu=not is_last)
    return x


def lstm_forward(x_btd, lstm_params):
    B, T, _ = x_btd.shape
    h = x_btd
    for layer in lstm_params:
        # Hoisted input projection: one large MXU-efficient tiled matmul.
        gx = matmul_act(h.reshape(B * T, h.shape[-1]), layer["w_ih_t"],
                        layer["b"], act="none", out_dtype=F32)
        gx = gx.reshape(B, T, -1)                               # (B, T, 4H)
        h = lstm_recurrence(gx, layer["w_hh_t"])                # (B, T, H) bf16
    return h


def demucs_forward(x_ncw, params, cfg):
    # NCW (PyTorch convention) -> NWC once at the boundary.
    x = jnp.transpose(x_ncw, (0, 2, 1)).astype(BF16)            # (B, T, C)
    outs = [x]
    for i in range(cfg["L"]):
        outs.append(encoder_forward(outs[-1], params["encoders"][i],
                                    cfg["encoder"]))
    model_input = outs.pop(0)
    x = lstm_forward(outs[-1], params["lstm"])                  # (B, T, D)
    for i in reversed(range(cfg["L"])):
        x = pad_cut_time(x, outs[i].shape[1])
        x = decoder_forward(x + outs[i], params["decoders"][i], cfg["decoder"],
                            is_last=(i == 0))
    x = pad_cut_time(x, model_input.shape[1])
    return jnp.transpose(x, (0, 2, 1)).astype(F32)              # back to NCW


# --------------------------------------------------------------------------
# Parameter init (PyTorch layouts) + one-time prep into kernel layouts
# --------------------------------------------------------------------------

def _uniform(key, shape, fan_in):
    bound = 1.0 / (float(fan_in) ** 0.5)
    return jax.random.uniform(key, shape, F32, -bound, bound)


def init_params(key, cfg):
    H, L = cfg["H"], cfg["L"]
    ek1 = cfg["encoder"]["conv1"]["kernel_size"]
    ek2 = cfg["encoder"]["conv2"]["kernel_size"]
    dk1 = cfg["decoder"]["conv1"]["kernel_size"]
    dk2 = cfg["decoder"]["conv2"]["kernel_size"]

    enc_io = [(1, H)] + [(2 ** i * H, 2 ** (i + 1) * H) for i in range(L - 1)]
    dec_io = [(H, 1)] + [(2 ** (i + 1) * H, 2 ** i * H) for i in range(L - 1)]

    keys = iter(jax.random.split(key, 8 * L + 16))
    encoders, decoders = [], []
    for cin, cout in enc_io:
        encoders.append(dict(
            w1=_uniform(next(keys), (cout, cin, ek1), cin * ek1),
            b1=_uniform(next(keys), (cout,), cin * ek1),
            w2=_uniform(next(keys), (2 * cout, cout, ek2), cout * ek2),
            b2=_uniform(next(keys), (2 * cout,), cout * ek2),
        ))
    for cin, cout in dec_io:
        decoders.append(dict(
            w1=_uniform(next(keys), (2 * cin, cin, dk1), cin * dk1),
            b1=_uniform(next(keys), (2 * cin,), cin * dk1),
            w2=_uniform(next(keys), (cin, cout, dk2), cin * dk2),  # ConvTranspose1d
            b2=_uniform(next(keys), (cout,), cin * dk2),
        ))
    D = 2 ** (L - 1) * H
    lstm = []
    for _ in range(2):  # num_layers = 2, input_size == hidden_size == D
        lstm.append(dict(
            w_ih=_uniform(next(keys), (4 * D, D), D),
            w_hh=_uniform(next(keys), (4 * D, D), D),
            b_ih=_uniform(next(keys), (4 * D,), D),
            b_hh=_uniform(next(keys), (4 * D,), D),
        ))
    return dict(encoders=encoders, decoders=decoders, lstm=lstm)


def _conv_w_nwc(w):
    """(Cout, Cin, K) -> (K*Cin, Cout); row order (k, cin) for NWC patches."""
    cout, cin, k = w.shape
    return jnp.transpose(w, (2, 1, 0)).reshape(k * cin, cout)


def _convT_w_nwc(w):
    """(Cin, Cout, K) -> (Cin, K*Cout); column order (k, cout) for NWC."""
    cin, cout, k = w.shape
    return jnp.transpose(w, (0, 2, 1)).reshape(cin, k * cout)


def prepare_params(params):
    """One-time conversion to kernel layouts: NWC-ordered bf16 weight matrices,
    GLU weight halves split, LSTM biases combined."""
    enc = []
    for p in params["encoders"]:
        cout = p["w1"].shape[0]
        enc.append(dict(
            w1=_conv_w_nwc(p["w1"]).astype(BF16),
            b1=p["b1"].astype(F32),
            w2a=_conv_w_nwc(p["w2"][:cout]).astype(BF16),
            w2b=_conv_w_nwc(p["w2"][cout:]).astype(BF16),
            b2a=p["b2"][:cout].astype(F32),
            b2b=p["b2"][cout:].astype(F32),
        ))
    dec = []
    for p in params["decoders"]:
        cin = p["w1"].shape[1]
        dec.append(dict(
            w1a=_conv_w_nwc(p["w1"][:cin]).astype(BF16),
            w1b=_conv_w_nwc(p["w1"][cin:]).astype(BF16),
            b1a=p["b1"][:cin].astype(F32),
            b1b=p["b1"][cin:].astype(F32),
            w2=_convT_w_nwc(p["w2"]).astype(BF16),               # (Cin, K*Cout)
            b2=p["b2"].astype(F32),
        ))
    lstm = []
    for p in params["lstm"]:
        lstm.append(dict(
            w_ih_t=p["w_ih"].T.astype(BF16),                     # (D, 4H)
            w_hh_t=p["w_hh"].T.astype(BF16),                     # (H, 4H)
            b=(p["b_ih"] + p["b_hh"]).astype(F32),               # (4H,)
        ))
    return dict(encoders=enc, decoders=dec, lstm=lstm)


# --------------------------------------------------------------------------

if __name__ == "__main__":
    cfg = {
        "L": 2,
        "H": 4,
        "encoder": {"conv1": {"kernel_size": 4, "stride": 2},
                    "conv2": {"kernel_size": 1, "stride": 1}},
        "decoder": {"conv1": {"kernel_size": 1, "stride": 1},
                    "conv2": {"kernel_size": 4, "stride": 2}},
    }
    key = jax.random.PRNGKey(0)
    pkey, xkey = jax.random.split(key)
    params = init_params(pkey, cfg)
    prepped = prepare_params(params)          # one-time weight layout prep
    x = jax.random.normal(xkey, (2, 1, 64), F32)   # (batch, channels=1, time) NCW

    fwd = jax.jit(lambda inp, p: demucs_forward(inp, p, cfg))
    y = fwd(x, prepped)
    jax.block_until_ready(y)
    assert y.shape == x.shape, y.shape
    print("KERNEL_OK")
</pallas_src>

<mosaic_0001>
module attributes {stable_mosaic.version = 11 : i64} {
  func.func @_mm_kernel(%arg0: i32, %arg1: i32, %arg2: i32, %arg3: memref<62x4xbf16, #tpu.memory_space<vmem>>, %arg4: memref<4x4xbf16, #tpu.memory_space<vmem>>, %arg5: memref<1x4xf32, #tpu.memory_space<vmem>>, %arg6: memref<62x4xbf16, #tpu.memory_space<vmem>>, %arg7: memref<62x4xf32, #tpu.memory_space<vmem>>) attributes {dimension_semantics = [#tpu.dimension_semantics<parallel>, #tpu.dimension_semantics<parallel>, #tpu.dimension_semantics<arbitrary>], iteration_bounds = array<i64: 1, 1, 1>, scalar_prefetch = 0 : i64, scratch_operands = 1 : i64, tpu.core_type = #tpu.core_type<tc>, window_params = [{transform_indices = @transform_0, window_bounds = array<i64: 62, 4>}, {transform_indices = @transform_1, window_bounds = array<i64: 4, 4>}, {transform_indices = @transform_2, window_bounds = array<i64: 1, 4>}, {transform_indices = @transform_3, window_bounds = array<i64: 62, 4>}]} {
    %c0_i32 = arith.constant 0 : i32
    %0 = arith.cmpi eq, %arg2, %c0_i32 : i32
    %1 = arith.extui %0 : i1 to i32
    %c0_i32_0 = arith.constant 0 : i32
    %2 = arith.cmpi ne, %1, %c0_i32_0 : i32
    scf.if %2 {
      %cst_10 = arith.constant 0.000000e+00 : f32
      %12 = vector.broadcast %cst_10 : f32 to vector<62x4xf32>
      %c0_11 = arith.constant 0 : index
      %c0_12 = arith.constant 0 : index
      %13 = vector.load %arg7[%c0_11, %c0_12] : memref<62x4xf32, #tpu.memory_space<vmem>>, vector<62x4xf32>
      tpu.vector_store %arg7[%c0_11, %c0_12], %12 {strides = array<i32>} : memref<62x4xf32, #tpu.memory_space<vmem>>, vector<62x4xf32>,
    } else {
    }
    %c0 = arith.constant 0 : index
    %c0_1 = arith.constant 0 : index
    %3 = vector.load %arg7[%c0, %c0_1] : memref<62x4xf32, #tpu.memory_space<vmem>>, vector<62x4xf32>
    %c0_2 = arith.constant 0 : index
    %c0_3 = arith.constant 0 : index
    %4 = vector.load %arg3[%c0_2, %c0_3] : memref<62x4xbf16, #tpu.memory_space<vmem>>, vector<62x4xbf16>
    %c0_4 = arith.constant 0 : index
    %c0_5 = arith.constant 0 : index
    %5 = vector.load %arg4[%c0_4, %c0_5] : memref<4x4xbf16, #tpu.memory_space<vmem>>, vector<4x4xbf16>
    %cst = arith.constant dense<0.000000e+00> : vector<62x4xf32>
    %6 = tpu.matmul %4, %5, %cst {dimension_numbers = #tpu.dot_dimension_numbers<[1], [0], [0], [1], [0, 0, 1, 1], [], []>} : vector<62x4xbf16>, vector<4x4xbf16>, vector<62x4xf32> -> vector<62x4xf32>
    %7 = arith.addf %3, %6 : vector<62x4xf32>
    %c0_6 = arith.constant 0 : index
    %c0_7 = arith.constant 0 : index
    %8 = vector.load %arg7[%c0_6, %c0_7] : memref<62x4xf32, #tpu.memory_space<vmem>>, vector<62x4xf32>
    tpu.vector_store %arg7[%c0_6, %c0_7], %7 {strides = array<i32>} : memref<62x4xf32, #tpu.memory_space<vmem>>, vector<62x4xf32>,
    %c0_i32_8 = arith.constant 0 : i32
    %9 = arith.cmpi eq, %arg2, %c0_i32_8 : i32
    %10 = arith.extui %9 : i1 to i32
    %c0_i32_9 = arith.constant 0 : i32
    %11 = arith.cmpi ne, %10, %c0_i32_9 : i32
    scf.if %11 {
      %c0_10 = arith.constant 0 : index
      %c0_11 = arith.constant 0 : index
      %12 = vector.load %arg7[%c0_10, %c0_11] : memref<62x4xf32, #tpu.memory_space<vmem>>, vector<62x4xf32>
      %c0_12 = arith.constant 0 : index
      %c0_13 = arith.constant 0 : index
      %13 = vector.load %arg5[%c0_12, %c0_13] : memref<1x4xf32, #tpu.memory_space<vmem>>, vector<1x4xf32>
      %14 = vector.broadcast %13 : vector<1x4xf32> to vector<62x4xf32>
      %15 = arith.addf %12, %14 : vector<62x4xf32>
      %cst_14 = arith.constant 0.000000e+00 : f32
      %16 = vector.broadcast %cst_14 : f32 to vector<62x4xf32>
      %17 = arith.maximumf %15, %16 : vector<62x4xf32>
      %18 = arith.truncf %17 : vector<62x4xf32> to vector<62x4xbf16>
      %c0_15 = arith.constant 0 : index
      %c0_16 = arith.constant 0 : index
      %19 = vector.load %arg6[%c0_15, %c0_16] : memref<62x4xbf16, #tpu.memory_space<vmem>>, vector<62x4xbf16>
      tpu.vector_store %arg6[%c0_15, %c0_16], %18 {strides = array<i32>} : memref<62x4xbf16, #tpu.memory_space<vmem>>, vector<62x4xbf16>,
    } else {
    }
    return
  }
  func.func @transform_0(%arg0: i32, %arg1: i32, %arg2: i32) -> (i32, i32) {
    %c0_i32 = arith.constant 0 : i32
    return %arg0, %arg2 : i32, i32
  }
  func.func @transform_1(%arg0: i32, %arg1: i32, %arg2: i32) -> (i32, i32) {
    %c0_i32 = arith.constant 0 : i32
    return %arg2, %arg1 : i32, i32
  }
  func.func @transform_2(%arg0: i32, %arg1: i32, %arg2: i32) -> (i32, i32) {
    %c0_i32 = arith.constant 0 : i32
    %c0_i32_0 = arith.constant 0 : i32
    return %c0_i32, %arg1 : i32, i32
  }
  func.func @transform_3(%arg0: i32, %arg1: i32, %arg2: i32) -> (i32, i32) {
    %c0_i32 = arith.constant 0 : i32
    return %arg0, %arg1 : i32, i32
  }
}

module attributes {stable_mosaic.version = 11 : i64} {
  func.func @_mm_glu_kernel(%arg0: i32, %arg1: i32, %arg2: i32, %arg3: memref<32x4xbf16, #tpu.memory_space<vmem>>, %arg4: memref<4x4xbf16, #tpu.memory_space<vmem>>, %arg5: memref<4x4xbf16, #tpu.memory_space<vmem>>, %arg6: memref<1x4xf32, #tpu.memory_space<vmem>>, %arg7: memref<1x4xf32, #tpu.memory_space<vmem>>, %arg8: memref<32x4xbf16, #tpu.memory_space<vmem>>, %arg9: memref<32x4xf32, #tpu.memory_space<vmem>>, %arg10: memref<32x4xf32, #tpu.memory_space<vmem>>) attributes {dimension_semantics = [#tpu.dimension_semantics<parallel>, #tpu.dimension_semantics<parallel>, #tpu.dimension_semantics<arbitrary>], iteration_bounds = array<i64: 2, 1, 1>, scalar_prefetch = 0 : i64, scratch_operands = 2 : i64, tpu.core_type = #tpu.core_type<tc>, window_params = [{transform_indices = @transform_0, window_bounds = array<i64: 32, 4>}, {transform_indices = @transform_1, window_bounds = array<i64: 4, 4>}, {transform_indices = @transform_2, window_bounds = array<i64: 4, 4>}, {transform_indices = @transform_3, window_bounds = array<i64: 1, 4>}, {transform_indices = @transform_4, window_bounds = array<i64: 1, 4>}, {transform_indices = @transform_5, window_bounds = array<i64: 32, 4>}]} {
    %c0_i32 = arith.constant 0 : i32
    %0 = arith.cmpi eq, %arg2, %c0_i32 : i32
    %1 = arith.extui %0 : i1 to i32
    %c0_i32_0 = arith.constant 0 : i32
    %2 = arith.cmpi ne, %1, %c0_i32_0 : i32
    scf.if %2 {
      %cst_17 = arith.constant 0.000000e+00 : f32
      %17 = vector.broadcast %cst_17 : f32 to vector<32x4xf32>
      %c0_18 = arith.constant 0 : index
      %c0_19 = arith.constant 0 : index
      %18 = vector.load %arg9[%c0_18, %c0_19] : memref<32x4xf32, #tpu.memory_space<vmem>>, vector<32x4xf32>
      tpu.vector_store %arg9[%c0_18, %c0_19], %17 {strides = array<i32>} : memref<32x4xf32, #tpu.memory_space<vmem>>, vector<32x4xf32>,
      %cst_20 = arith.constant 0.000000e+00 : f32
      %19 = vector.broadcast %cst_20 : f32 to vector<32x4xf32>
      %c0_21 = arith.constant 0 : index
      %c0_22 = arith.constant 0 : index
      %20 = vector.load %arg10[%c0_21, %c0_22] : memref<32x4xf32, #tpu.memory_space<vmem>>, vector<32x4xf32>
      tpu.vector_store %arg10[%c0_21, %c0_22], %19 {strides = array<i32>} : memref<32x4xf32, #tpu.memory_space<vmem>>, vector<32x4xf32>,
    } else {
    }
    %c0 = arith.constant 0 : index
    %c0_1 = arith.constant 0 : index
    %3 = vector.load %arg3[%c0, %c0_1] : memref<32x4xbf16, #tpu.memory_space<vmem>>, vector<32x4xbf16>
    %c0_2 = arith.constant 0 : index
    %c0_3 = arith.constant 0 : index
    %4 = vector.load %arg9[%c0_2, %c0_3] : memref<32x4xf32, #tpu.memory_space<vmem>>, vector<32x4xf32>
    %c0_4 = arith.constant 0 : index
    %c0_5 = arith.constant 0 : index
    %5 = vector.load %arg4[%c0_4, %c0_5] : memref<4x4xbf16, #tpu.memory_space<vmem>>, vector<4x4xbf16>
    %cst = arith.constant dense<0.000000e+00> : vector<32x4xf32>
    %6 = tpu.matmul %3, %5, %cst {dimension_numbers = #tpu.dot_dimension_numbers<[1], [0], [0], [1], [0, 0, 1, 1], [], []>} : vector<32x4xbf16>, vector<4x4xbf16>, vector<32x4xf32> -> vector<32x4xf32>
    %7 = arith.addf %4, %6 : vector<32x4xf32>
    %c0_6 = arith.constant 0 : index
    %c0_7 = arith.constant 0 : index
    %8 = vector.load %arg9[%c0_6, %c0_7] : memref<32x4xf32, #tpu.memory_space<vmem>>, vector<32x4xf32>
    tpu.vector_store %arg9[%c0_6, %c0_7], %7 {strides = array<i32>} : memref<32x4xf32, #tpu.memory_space<vmem>>, vector<32x4xf32>,
    %c0_8 = arith.constant 0 : index
    %c0_9 = arith.constant 0 : index
    %9 = vector.load %arg10[%c0_8, %c0_9] : memref<32x4xf32, #tpu.memory_space<vmem>>, vector<32x4xf32>
    %c0_10 = arith.constant 0 : index
    %c0_11 = arith.constant 0 : index
    %10 = vector.load %arg5[%c0_10, %c0_11] : memref<4x4xbf16, #tpu.memory_space<vmem>>, vector<4x4xbf16>
    %cst_12 = arith.constant dense<0.000000e+00> : vector<32x4xf32>
    %11 = tpu.matmul %3, %10, %cst_12 {dimension_numbers = #tpu.dot_dimension_numbers<[1], [0], [0], [1], [0, 0, 1, 1], [], []>} : vector<32x4xbf16>, vector<4x4xbf16>, vector<32x4xf32> -> vector<32x4xf32>
    %12 = arith.addf %9, %11 : vector<32x4xf32>
    %c0_13 = arith.constant 0 : index
    %c0_14 = arith.constant 0 : index
    %13 = vector.load %arg10[%c0_13, %c0_14] : memref<32x4xf32, #tpu.memory_space<vmem>>, vector<32x4xf32>
    tpu.vector_store %arg10[%c0_13, %c0_14], %12 {strides = array<i32>} : memref<32x4xf32, #tpu.memory_space<vmem>>, vector<32x4xf32>,
    %c0_i32_15 = arith.constant 0 : i32
    %14 = arith.cmpi eq, %arg2, %c0_i32_15 : i32
    %15 = arith.extui %14 : i1 to i32
    %c0_i32_16 = arith.constant 0 : i32
    %16 = arith.cmpi ne, %15, %c0_i32_16 : i32
    scf.if %16 {
      %c0_17 = arith.constant 0 : index
      %c0_18 = arith.constant 0 : index
      %17 = vector.load %arg9[%c0_17, %c0_18] : memref<32x4xf32, #tpu.memory_space<vmem>>, vector<32x4xf32>
      %c0_19 = arith.constant 0 : index
      %c0_20 = arith.constant 0 : index
      %18 = vector.load %arg6[%c0_19, %c0_20] : memref<1x4xf32, #tpu.memory_space<vmem>>, vector<1x4xf32>
      %19 = vector.broadcast %18 : vector<1x4xf32> to vector<32x4xf32>
      %20 = arith.addf %17, %19 : vector<32x4xf32>
      %c0_21 = arith.constant 0 : index
      %c0_22 = arith.constant 0 : index
      %21 = vector.load %arg10[%c0_21, %c0_22] : memref<32x4xf32, #tpu.memory_space<vmem>>, vector<32x4xf32>
      %c0_23 = arith.constant 0 : index
      %c0_24 = arith.constant 0 : index
      %22 = vector.load %arg7[%c0_23, %c0_24] : memref<1x4xf32, #tpu.memory_space<vmem>>, vector<1x4xf32>
      %23 = vector.broadcast %22 : vector<1x4xf32> to vector<32x4xf32>
      %24 = arith.addf %21, %23 : vector<32x4xf32>
      %25 = arith.negf %24 : vector<32x4xf32>
      %26 = math.exp %25 : vector<32x4xf32>
      %cst_25 = arith.constant 1.000000e+00 : f32
      %27 = vector.broadcast %cst_25 : f32 to vector<32x4xf32>
      %28 = arith.addf %27, %26 : vector<32x4xf32>
      %29 = arith.divf %27, %28 : vector<32x4xf32>
      %30 = arith.mulf %20, %29 : vector<32x4xf32>
      %31 = arith.truncf %30 : vector<32x4xf32> to vector<32x4xbf16>
      %c0_26 = arith.constant 0 : index
      %c0_27 = arith.constant 0 : index
      %32 = vector.load %arg8[%c0_26, %c0_27] : memref<32x4xbf16, #tpu.memory_space<vmem>>, vector<32x4xbf16>
      tpu.vector_store %arg8[%c0_26, %c0_27], %31 {strides = array<i32>} : memref<32x4xbf16, #tpu.memory_space<vmem>>, vector<32x4xbf16>,
    } else {
    }
    return
  }
  func.func @transform_0(%arg0: i32, %arg1: i32, %arg2: i32) -> (i32, i32) {
    %c0_i32 = arith.constant 0 : i32
    return %arg0, %arg2 : i32, i32
  }
  func.func @transform_1(%arg0: i32, %arg1: i32, %arg2: i32) -> (i32, i32) {
    %c0_i32 = arith.constant 0 : i32
    return %arg2, %arg1 : i32, i32
  }
  func.func @transform_2(%arg0: i32, %arg1: i32, %arg2: i32) -> (i32, i32) {
    %c0_i32 = arith.constant 0 : i32
    return %arg2, %arg1 : i32, i32
  }
  func.func @transform_3(%arg0: i32, %arg1: i32, %arg2: i32) -> (i32, i32) {
    %c0_i32 = arith.constant 0 : i32
    %c0_i32_0 = arith.constant 0 : i32
    return %c0_i32, %arg1 : i32, i32
  }
  func.func @transform_4(%arg0: i32, %arg1: i32, %arg2: i32) -> (i32, i32) {
    %c0_i32 = arith.constant 0 : i32
    %c0_i32_0 = arith.constant 0 : i32
    return %c0_i32, %arg1 : i32, i32
  }
  func.func @transform_5(%arg0: i32, %arg1: i32, %arg2: i32) -> (i32, i32) {
    %c0_i32 = arith.constant 0 : i32
    return %arg0, %arg1 : i32, i32
  }
}

module attributes {stable_mosaic.version = 11 : i64} {
  func.func @_mm_glu_kernel(%arg0: i32, %arg1: i32, %arg2: i32, %arg3: memref<16x8xbf16, #tpu.memory_space<vmem>>, %arg4: memref<8x8xbf16, #tpu.memory_space<vmem>>, %arg5: memref<8x8xbf16, #tpu.memory_space<vmem>>, %arg6: memref<1x8xf32, #tpu.memory_space<vmem>>, %arg7: memref<1x8xf32, #tpu.memory_space<vmem>>, %arg8: memref<16x8xbf16, #tpu.memory_space<vmem>>, %arg9: memref<16x8xf32, #tpu.memory_space<vmem>>, %arg10: memref<16x8xf32, #tpu.memory_space<vmem>>) attributes {dimension_semantics = [#tpu.dimension_semantics<parallel>, #tpu.dimension_semantics<parallel>, #tpu.dimension_semantics<arbitrary>], iteration_bounds = array<i64: 2, 1, 1>, scalar_prefetch = 0 : i64, scratch_operands = 2 : i64, tpu.core_type = #tpu.core_type<tc>, window_params = [{transform_indices = @transform_0, window_bounds = array<i64: 16, 8>}, {transform_indices = @transform_1, window_bounds = array<i64: 8, 8>}, {transform_indices = @transform_2, window_bounds = array<i64: 8, 8>}, {transform_indices = @transform_3, window_bounds = array<i64: 1, 8>}, {transform_indices = @transform_4, window_bounds = array<i64: 1, 8>}, {transform_indices = @transform_5, window_bounds = array<i64: 16, 8>}]} {
    %c0_i32 = arith.constant 0 : i32
    %0 = arith.cmpi eq, %arg2, %c0_i32 : i32
    %1 = arith.extui %0 : i1 to i32
    %c0_i32_0 = arith.constant 0 : i32
    %2 = arith.cmpi ne, %1, %c0_i32_0 : i32
    scf.if %2 {
      %cst_17 = arith.constant 0.000000e+00 : f32
      %17 = vector.broadcast %cst_17 : f32 to vector<16x8xf32>
      %c0_18 = arith.constant 0 : index
      %c0_19 = arith.constant 0 : index
      %18 = vector.load %arg9[%c0_18, %c0_19] : memref<16x8xf32, #tpu.memory_space<vmem>>, vector<16x8xf32>
      tpu.vector_store %arg9[%c0_18, %c0_19], %17 {strides = array<i32>} : memref<16x8xf32, #tpu.memory_space<vmem>>, vector<16x8xf32>,
      %cst_20 = arith.constant 0.000000e+00 : f32
      %19 = vector.broadcast %cst_20 : f32 to vector<16x8xf32>
      %c0_21 = arith.constant 0 : index
      %c0_22 = arith.constant 0 : index
      %20 = vector.load %arg10[%c0_21, %c0_22] : memref<16x8xf32, #tpu.memory_space<vmem>>, vector<16x8xf32>
      tpu.vector_store %arg10[%c0_21, %c0_22], %19 {strides = array<i32>} : memref<16x8xf32, #tpu.memory_space<vmem>>, vector<16x8xf32>,
    } else {
    }
    %c0 = arith.constant 0 : index
    %c0_1 = arith.constant 0 : index
    %3 = vector.load %arg3[%c0, %c0_1] : memref<16x8xbf16, #tpu.memory_space<vmem>>, vector<16x8xbf16>
    %c0_2 = arith.constant 0 : index
    %c0_3 = arith.constant 0 : index
    %4 = vector.load %arg9[%c0_2, %c0_3] : memref<16x8xf32, #tpu.memory_space<vmem>>, vector<16x8xf32>
    %c0_4 = arith.constant 0 : index
    %c0_5 = arith.constant 0 : index
    %5 = vector.load %arg4[%c0_4, %c0_5] : memref<8x8xbf16, #tpu.memory_space<vmem>>, vector<8x8xbf16>
    %cst = arith.constant dense<0.000000e+00> : vector<16x8xf32>
    %6 = tpu.matmul %3, %5, %cst {dimension_numbers = #tpu.dot_dimension_numbers<[1], [0], [0], [1], [0, 0, 1, 1], [], []>} : vector<16x8xbf16>, vector<8x8xbf16>, vector<16x8xf32> -> vector<16x8xf32>
    %7 = arith.addf %4, %6 : vector<16x8xf32>
    %c0_6 = arith.constant 0 : index
    %c0_7 = arith.constant 0 : index
    %8 = vector.load %arg9[%c0_6, %c0_7] : memref<16x8xf32, #tpu.memory_space<vmem>>, vector<16x8xf32>
    tpu.vector_store %arg9[%c0_6, %c0_7], %7 {strides = array<i32>} : memref<16x8xf32, #tpu.memory_space<vmem>>, vector<16x8xf32>,
    %c0_8 = arith.constant 0 : index
    %c0_9 = arith.constant 0 : index
    %9 = vector.load %arg10[%c0_8, %c0_9] : memref<16x8xf32, #tpu.memory_space<vmem>>, vector<16x8xf32>
    %c0_10 = arith.constant 0 : index
    %c0_11 = arith.constant 0 : index
    %10 = vector.load %arg5[%c0_10, %c0_11] : memref<8x8xbf16, #tpu.memory_space<vmem>>, vector<8x8xbf16>
    %cst_12 = arith.constant dense<0.000000e+00> : vector<16x8xf32>
    %11 = tpu.matmul %3, %10, %cst_12 {dimension_numbers = #tpu.dot_dimension_numbers<[1], [0], [0], [1], [0, 0, 1, 1], [], []>} : vector<16x8xbf16>, vector<8x8xbf16>, vector<16x8xf32> -> vector<16x8xf32>
    %12 = arith.addf %9, %11 : vector<16x8xf32>
    %c0_13 = arith.constant 0 : index
    %c0_14 = arith.constant 0 : index
    %13 = vector.load %arg10[%c0_13, %c0_14] : memref<16x8xf32, #tpu.memory_space<vmem>>, vector<16x8xf32>
    tpu.vector_store %arg10[%c0_13, %c0_14], %12 {strides = array<i32>} : memref<16x8xf32, #tpu.memory_space<vmem>>, vector<16x8xf32>,
    %c0_i32_15 = arith.constant 0 : i32
    %14 = arith.cmpi eq, %arg2, %c0_i32_15 : i32
    %15 = arith.extui %14 : i1 to i32
    %c0_i32_16 = arith.constant 0 : i32
    %16 = arith.cmpi ne, %15, %c0_i32_16 : i32
    scf.if %16 {
      %c0_17 = arith.constant 0 : index
      %c0_18 = arith.constant 0 : index
      %17 = vector.load %arg9[%c0_17, %c0_18] : memref<16x8xf32, #tpu.memory_space<vmem>>, vector<16x8xf32>
      %c0_19 = arith.constant 0 : index
      %c0_20 = arith.constant 0 : index
      %18 = vector.load %arg6[%c0_19, %c0_20] : memref<1x8xf32, #tpu.memory_space<vmem>>, vector<1x8xf32>
      %19 = vector.broadcast %18 : vector<1x8xf32> to vector<16x8xf32>
      %20 = arith.addf %17, %19 : vector<16x8xf32>
      %c0_21 = arith.constant 0 : index
      %c0_22 = arith.constant 0 : index
      %21 = vector.load %arg10[%c0_21, %c0_22] : memref<16x8xf32, #tpu.memory_space<vmem>>, vector<16x8xf32>
      %c0_23 = arith.constant 0 : index
      %c0_24 = arith.constant 0 : index
      %22 = vector.load %arg7[%c0_23, %c0_24] : memref<1x8xf32, #tpu.memory_space<vmem>>, vector<1x8xf32>
      %23 = vector.broadcast %22 : vector<1x8xf32> to vector<16x8xf32>
      %24 = arith.addf %21, %23 : vector<16x8xf32>
      %25 = arith.negf %24 : vector<16x8xf32>
      %26 = math.exp %25 : vector<16x8xf32>
      %cst_25 = arith.constant 1.000000e+00 : f32
      %27 = vector.broadcast %cst_25 : f32 to vector<16x8xf32>
      %28 = arith.addf %27, %26 : vector<16x8xf32>
      %29 = arith.divf %27, %28 : vector<16x8xf32>
      %30 = arith.mulf %20, %29 : vector<16x8xf32>
      %31 = arith.truncf %30 : vector<16x8xf32> to vector<16x8xbf16>
      %c0_26 = arith.constant 0 : index
      %c0_27 = arith.constant 0 : index
      %32 = vector.load %arg8[%c0_26, %c0_27] : memref<16x8xbf16, #tpu.memory_space<vmem>>, vector<16x8xbf16>
      tpu.vector_store %arg8[%c0_26, %c0_27], %31 {strides = array<i32>} : memref<16x8xbf16, #tpu.memory_space<vmem>>, vector<16x8xbf16>,
    } else {
    }
    return
  }
  func.func @transform_0(%arg0: i32, %arg1: i32, %arg2: i32) -> (i32, i32) {
    %c0_i32 = arith.constant 0 : i32
    return %arg0, %arg2 : i32, i32
  }
  func.func @transform_1(%arg0: i32, %arg1: i32, %arg2: i32) -> (i32, i32) {
    %c0_i32 = arith.constant 0 : i32
    return %arg2, %arg1 : i32, i32
  }
  func.func @transform_2(%arg0: i32, %arg1: i32, %arg2: i32) -> (i32, i32) {
    %c0_i32 = arith.constant 0 : i32
    return %arg2, %arg1 : i32, i32
  }
  func.func @transform_3(%arg0: i32, %arg1: i32, %arg2: i32) -> (i32, i32) {
    %c0_i32 = arith.constant 0 : i32
    %c0_i32_0 = arith.constant 0 : i32
    return %c0_i32, %arg1 : i32, i32
  }
  func.func @transform_4(%arg0: i32, %arg1: i32, %arg2: i32) -> (i32, i32) {
    %c0_i32 = arith.constant 0 : i32
    %c0_i32_0 = arith.constant 0 : i32
    return %c0_i32, %arg1 : i32, i32
  }
  func.func @transform_5(%arg0: i32, %arg1: i32, %arg2: i32) -> (i32, i32) {
    %c0_i32 = arith.constant 0 : i32
    return %arg0, %arg1 : i32, i32
  }
}

module attributes {stable_mosaic.version = 11 : i64} {
  func.func @_mm_kernel(%arg0: i32, %arg1: i32, %arg2: i32, %arg3: memref<30x16xbf16, #tpu.memory_space<vmem>>, %arg4: memref<16x8xbf16, #tpu.memory_space<vmem>>, %arg5: memref<1x8xf32, #tpu.memory_space<vmem>>, %arg6: memref<30x8xbf16, #tpu.memory_space<vmem>>, %arg7: memref<30x8xf32, #tpu.memory_space<vmem>>) attributes {dimension_semantics = [#tpu.dimension_semantics<parallel>, #tpu.dimension_semantics<parallel>, #tpu.dimension_semantics<arbitrary>], iteration_bounds = array<i64: 1, 1, 1>, scalar_prefetch = 0 : i64, scratch_operands = 1 : i64, tpu.core_type = #tpu.core_type<tc>, window_params = [{transform_indices = @transform_0, window_bounds = array<i64: 30, 16>}, {transform_indices = @transform_1, window_bounds = array<i64: 16, 8>}, {transform_indices = @transform_2, window_bounds = array<i64: 1, 8>}, {transform_indices = @transform_3, window_bounds = array<i64: 30, 8>}]} {
    %c0_i32 = arith.constant 0 : i32
    %0 = arith.cmpi eq, %arg2, %c0_i32 : i32
    %1 = arith.extui %0 : i1 to i32
    %c0_i32_0 = arith.constant 0 : i32
    %2 = arith.cmpi ne, %1, %c0_i32_0 : i32
    scf.if %2 {
      %cst_10 = arith.constant 0.000000e+00 : f32
      %12 = vector.broadcast %cst_10 : f32 to vector<30x8xf32>
      %c0_11 = arith.constant 0 : index
      %c0_12 = arith.constant 0 : index
      %13 = vector.load %arg7[%c0_11, %c0_12] : memref<30x8xf32, #tpu.memory_space<vmem>>, vector<30x8xf32>
      tpu.vector_store %arg7[%c0_11, %c0_12], %12 {strides = array<i32>} : memref<30x8xf32, #tpu.memory_space<vmem>>, vector<30x8xf32>,
    } else {
    }
    %c0 = arith.constant 0 : index
    %c0_1 = arith.constant 0 : index
    %3 = vector.load %arg7[%c0, %c0_1] : memref<30x8xf32, #tpu.memory_space<vmem>>, vector<30x8xf32>
    %c0_2 = arith.constant 0 : index
    %c0_3 = arith.constant 0 : index
    %4 = vector.load %arg3[%c0_2, %c0_3] : memref<30x16xbf16, #tpu.memory_space<vmem>>, vector<30x16xbf16>
    %c0_4 = arith.constant 0 : index
    %c0_5 = arith.constant 0 : index
    %5 = vector.load %arg4[%c0_4, %c0_5] : memref<16x8xbf16, #tpu.memory_space<vmem>>, vector<16x8xbf16>
    %cst = arith.constant dense<0.000000e+00> : vector<30x8xf32>
    %6 = tpu.matmul %4, %5, %cst {dimension_numbers = #tpu.dot_dimension_numbers<[1], [0], [0], [1], [0, 0, 1, 1], [], []>} : vector<30x16xbf16>, vector<16x8xbf16>, vector<30x8xf32> -> vector<30x8xf32>
    %7 = arith.addf %3, %6 : vector<30x8xf32>
    %c0_6 = arith.constant 0 : index
    %c0_7 = arith.constant 0 : index
    %8 = vector.load %arg7[%c0_6, %c0_7] : memref<30x8xf32, #tpu.memory_space<vmem>>, vector<30x8xf32>
    tpu.vector_store %arg7[%c0_6, %c0_7], %7 {strides = array<i32>} : memref<30x8xf32, #tpu.memory_space<vmem>>, vector<30x8xf32>,
    %c0_i32_8 = arith.constant 0 : i32
    %9 = arith.cmpi eq, %arg2, %c0_i32_8 : i32
    %10 = arith.extui %9 : i1 to i32
    %c0_i32_9 = arith.constant 0 : i32
    %11 = arith.cmpi ne, %10, %c0_i32_9 : i32
    scf.if %11 {
      %c0_10 = arith.constant 0 : index
      %c0_11 = arith.constant 0 : index
      %12 = vector.load %arg7[%c0_10, %c0_11] : memref<30x8xf32, #tpu.memory_space<vmem>>, vector<30x8xf32>
      %c0_12 = arith.constant 0 : index
      %c0_13 = arith.constant 0 : index
      %13 = vector.load %arg5[%c0_12, %c0_13] : memref<1x8xf32, #tpu.memory_space<vmem>>, vector<1x8xf32>
      %14 = vector.broadcast %13 : vector<1x8xf32> to vector<30x8xf32>
      %15 = arith.addf %12, %14 : vector<30x8xf32>
      %cst_14 = arith.constant 0.000000e+00 : f32
      %16 = vector.broadcast %cst_14 : f32 to vector<30x8xf32>
      %17 = arith.maximumf %15, %16 : vector<30x8xf32>
      %18 = arith.truncf %17 : vector<30x8xf32> to vector<30x8xbf16>
      %c0_15 = arith.constant 0 : index
      %c0_16 = arith.constant 0 : index
      %19 = vector.load %arg6[%c0_15, %c0_16] : memref<30x8xbf16, #tpu.memory_space<vmem>>, vector<30x8xbf16>
      tpu.vector_store %arg6[%c0_15, %c0_16], %18 {strides = array<i32>} : memref<30x8xbf16, #tpu.memory_space<vmem>>, vector<30x8xbf16>,
    } else {
    }
    return
  }
  func.func @transform_0(%arg0: i32, %arg1: i32, %arg2: i32) -> (i32, i32) {
    %c0_i32 = arith.constant 0 : i32
    return %arg0, %arg2 : i32, i32
  }
  func.func @transform_1(%arg0: i32, %arg1: i32, %arg2: i32) -> (i32, i32) {
    %c0_i32 = arith.constant 0 : i32
    return %arg2, %arg1 : i32, i32
  }
  func.func @transform_2(%arg0: i32, %arg1: i32, %arg2: i32) -> (i32, i32) {
    %c0_i32 = arith.constant 0 : i32
    %c0_i32_0 = arith.constant 0 : i32
    return %c0_i32, %arg1 : i32, i32
  }
  func.func @transform_3(%arg0: i32, %arg1: i32, %arg2: i32) -> (i32, i32) {
    %c0_i32 = arith.constant 0 : i32
    return %arg0, %arg1 : i32, i32
  }
}

module attributes {stable_mosaic.version = 11 : i64} {
  func.func @_mm_kernel(%arg0: i32, %arg1: i32, %arg2: i32, %arg3: memref<16x8xbf16, #tpu.memory_space<vmem>>, %arg4: memref<8x32xbf16, #tpu.memory_space<vmem>>, %arg5: memref<1x32xf32, #tpu.memory_space<vmem>>, %arg6: memref<16x32xf32, #tpu.memory_space<vmem>>, %arg7: memref<16x32xf32, #tpu.memory_space<vmem>>) attributes {dimension_semantics = [#tpu.dimension_semantics<parallel>, #tpu.dimension_semantics<parallel>, #tpu.dimension_semantics<arbitrary>], iteration_bounds = array<i64: 2, 1, 1>, scalar_prefetch = 0 : i64, scratch_operands = 1 : i64, tpu.core_type = #tpu.core_type<tc>, window_params = [{transform_indices = @transform_0, window_bounds = array<i64: 16, 8>}, {transform_indices = @transform_1, window_bounds = array<i64: 8, 32>}, {transform_indices = @transform_2, window_bounds = array<i64: 1, 32>}, {transform_indices = @transform_3, window_bounds = array<i64: 16, 32>}]} {
    %c0_i32 = arith.constant 0 : i32
    %0 = arith.cmpi eq, %arg2, %c0_i32 : i32
    %1 = arith.extui %0 : i1 to i32
    %c0_i32_0 = arith.constant 0 : i32
    %2 = arith.cmpi ne, %1, %c0_i32_0 : i32
    scf.if %2 {
      %cst_10 = arith.constant 0.000000e+00 : f32
      %12 = vector.broadcast %cst_10 : f32 to vector<16x32xf32>
      %c0_11 = arith.constant 0 : index
      %c0_12 = arith.constant 0 : index
      %13 = vector.load %arg7[%c0_11, %c0_12] : memref<16x32xf32, #tpu.memory_space<vmem>>, vector<16x32xf32>
      tpu.vector_store %arg7[%c0_11, %c0_12], %12 {strides = array<i32>} : memref<16x32xf32, #tpu.memory_space<vmem>>, vector<16x32xf32>,
    } else {
    }
    %c0 = arith.constant 0 : index
    %c0_1 = arith.constant 0 : index
    %3 = vector.load %arg7[%c0, %c0_1] : memref<16x32xf32, #tpu.memory_space<vmem>>, vector<16x32xf32>
    %c0_2 = arith.constant 0 : index
    %c0_3 = arith.constant 0 : index
    %4 = vector.load %arg3[%c0_2, %c0_3] : memref<16x8xbf16, #tpu.memory_space<vmem>>, vector<16x8xbf16>
    %c0_4 = arith.constant 0 : index
    %c0_5 = arith.constant 0 : index
    %5 = vector.load %arg4[%c0_4, %c0_5] : memref<8x32xbf16, #tpu.memory_space<vmem>>, vector<8x32xbf16>
    %cst = arith.constant dense<0.000000e+00> : vector<16x32xf32>
    %6 = tpu.matmul %4, %5, %cst {dimension_numbers = #tpu.dot_dimension_numbers<[1], [0], [0], [1], [0, 0, 1, 1], [], []>} : vector<16x8xbf16>, vector<8x32xbf16>, vector<16x32xf32> -> vector<16x32xf32>
    %7 = arith.addf %3, %6 : vector<16x32xf32>
    %c0_6 = arith.constant 0 : index
    %c0_7 = arith.constant 0 : index
    %8 = vector.load %arg7[%c0_6, %c0_7] : memref<16x32xf32, #tpu.memory_space<vmem>>, vector<16x32xf32>
    tpu.vector_store %arg7[%c0_6, %c0_7], %7 {strides = array<i32>} : memref<16x32xf32, #tpu.memory_space<vmem>>, vector<16x32xf32>,
    %c0_i32_8 = arith.constant 0 : i32
    %9 = arith.cmpi eq, %arg2, %c0_i32_8 : i32
    %10 = arith.extui %9 : i1 to i32
    %c0_i32_9 = arith.constant 0 : i32
    %11 = arith.cmpi ne, %10, %c0_i32_9 : i32
    scf.if %11 {
      %c0_10 = arith.constant 0 : index
      %c0_11 = arith.constant 0 : index
      %12 = vector.load %arg7[%c0_10, %c0_11] : memref<16x32xf32, #tpu.memory_space<vmem>>, vector<16x32xf32>
      %c0_12 = arith.constant 0 : index
      %c0_13 = arith.constant 0 : index
      %13 = vector.load %arg5[%c0_12, %c0_13] : memref<1x32xf32, #tpu.memory_space<vmem>>, vector<1x32xf32>
      %14 = vector.broadcast %13 : vector<1x32xf32> to vector<16x32xf32>
      %15 = arith.addf %12, %14 : vector<16x32xf32>
      %c0_14 = arith.constant 0 : index
      %c0_15 = arith.constant 0 : index
      %16 = vector.load %arg6[%c0_14, %c0_15] : memref<16x32xf32, #tpu.memory_space<vmem>>, vector<16x32xf32>
      tpu.vector_store %arg6[%c0_14, %c0_15], %15 {strides = array<i32>} : memref<16x32xf32, #tpu.memory_space<vmem>>, vector<16x32xf32>,
    } else {
    }
    return
  }
  func.func @transform_0(%arg0: i32, %arg1: i32, %arg2: i32) -> (i32, i32) {
    %c0_i32 = arith.constant 0 : i32
    return %arg0, %arg2 : i32, i32
  }
  func.func @transform_1(%arg0: i32, %arg1: i32, %arg2: i32) -> (i32, i32) {
    %c0_i32 = arith.constant 0 : i32
    return %arg2, %arg1 : i32, i32
  }
  func.func @transform_2(%arg0: i32, %arg1: i32, %arg2: i32) -> (i32, i32) {
    %c0_i32 = arith.constant 0 : i32
    %c0_i32_0 = arith.constant 0 : i32
    return %c0_i32, %arg1 : i32, i32
  }
  func.func @transform_3(%arg0: i32, %arg1: i32, %arg2: i32) -> (i32, i32) {
    %c0_i32 = arith.constant 0 : i32
    return %arg0, %arg1 : i32, i32
  }
}

module attributes {stable_mosaic.version = 11 : i64} {
  func.func @_lstm_rec_kernel(%arg0: i32, %arg1: memref<2x8x32xf32, #tpu.memory_space<vmem>>, %arg2: memref<8x32xbf16, #tpu.memory_space<vmem>>, %arg3: memref<2x8x8xbf16, #tpu.memory_space<vmem>>, %arg4: memref<2x8xf32, #tpu.memory_space<vmem>>, %arg5: memref<2x8xf32, #tpu.memory_space<vmem>>, %arg6: memref<2x8x8xf32, #tpu.memory_space<vmem>>) attributes {dimension_semantics = [#tpu.dimension_semantics<arbitrary>], iteration_bounds = array<i64: 2>, scalar_prefetch = 0 : i64, scratch_operands = 3 : i64, tpu.core_type = #tpu.core_type<tc>, window_params = [{transform_indices = @transform_0, window_bounds = array<i64: 2, 8, 32>}, {pipeline_mode = #tpu.pipeline_mode<synchronous>, transform_indices = @transform_1, window_bounds = array<i64: 8, 32>}, {transform_indices = @transform_2, window_bounds = array<i64: 2, 8, 8>}]} {
    %c0_i32 = arith.constant 0 : i32
    %0 = arith.cmpi eq, %arg0, %c0_i32 : i32
    %1 = arith.extui %0 : i1 to i32
    %c0_i32_0 = arith.constant 0 : i32
    %2 = arith.cmpi ne, %1, %c0_i32_0 : i32
    scf.if %2 {
      %cst_88 = arith.constant 0.000000e+00 : f32
      %275 = vector.broadcast %cst_88 : f32 to vector<2x8xf32>
      %c0_89 = arith.constant 0 : index
      %c0_90 = arith.constant 0 : index
      %276 = vector.load %arg4[%c0_89, %c0_90] : memref<2x8xf32, #tpu.memory_space<vmem>>, vector<2x8xf32>
      tpu.vector_store %arg4[%c0_89, %c0_90], %275 {strides = array<i32>} : memref<2x8xf32, #tpu.memory_space<vmem>>, vector<2x8xf32>,
      %cst_91 = arith.constant 0.000000e+00 : f32
      %277 = vector.broadcast %cst_91 : f32 to vector<2x8xf32>
      %c0_92 = arith.constant 0 : index
      %c0_93 = arith.constant 0 : index
      %278 = vector.load %arg5[%c0_92, %c0_93] : memref<2x8xf32, #tpu.memory_space<vmem>>, vector<2x8xf32>
      tpu.vector_store %arg5[%c0_92, %c0_93], %277 {strides = array<i32>} : memref<2x8xf32, #tpu.memory_space<vmem>>, vector<2x8xf32>,
    } else {
    }
    %c0 = arith.constant 0 : index
    %c0_1 = arith.constant 0 : index
    %3 = vector.load %arg2[%c0, %c0_1] : memref<8x32xbf16, #tpu.memory_space<vmem>>, vector<8x32xbf16>
    %c0_2 = arith.constant 0 : index
    %c0_3 = arith.constant 0 : index
    %4 = vector.load %arg4[%c0_2, %c0_3] : memref<2x8xf32, #tpu.memory_space<vmem>>, vector<2x8xf32>
    %c0_4 = arith.constant 0 : index
    %c0_5 = arith.constant 0 : index
    %5 = vector.load %arg5[%c0_4, %c0_5] : memref<2x8xf32, #tpu.memory_space<vmem>>, vector<2x8xf32>
    %c0_6 = arith.constant 0 : index
    %c0_7 = arith.constant 0 : index
    %c0_8 = arith.constant 0 : index
    %6 = vector.load %arg1[%c0_6, %c0_7, %c0_8] : memref<2x8x32xf32, #tpu.memory_space<vmem>>, vector<2x1x32xf32>
    %7 = vector.shape_cast %6 : vector<2x1x32xf32> to vector<2x32xf32>
    %8 = arith.truncf %4 : vector<2x8xf32> to vector<2x8xbf16>
    %cst = arith.constant dense<0.000000e+00> : vector<2x32xf32>
    %9 = tpu.matmul %8, %3, %cst {dimension_numbers = #tpu.dot_dimension_numbers<[1], [0], [0], [1], [0, 0, 1, 1], [], []>} : vector<2x8xbf16>, vector<8x32xbf16>, vector<2x32xf32> -> vector<2x32xf32>
    %10 = arith.addf %7, %9 : vector<2x32xf32>
    %11 = vector.extract_strided_slice %10 {offsets = [0, 0], sizes = [2, 8], strides = [1, 1]} : vector<2x32xf32> to vector<2x8xf32>
    %12 = arith.negf %11 : vector<2x8xf32>
    %13 = math.exp %12 : vector<2x8xf32>
    %cst_9 = arith.constant 1.000000e+00 : f32
    %14 = vector.broadcast %cst_9 : f32 to vector<2x8xf32>
    %15 = arith.addf %14, %13 : vector<2x8xf32>
    %16 = arith.divf %14, %15 : vector<2x8xf32>
    %17 = vector.extract_strided_slice %10 {offsets = [0, 8], sizes = [2, 8], strides = [1, 1]} : vector<2x32xf32> to vector<2x8xf32>
    %18 = arith.negf %17 : vector<2x8xf32>
    %19 = math.exp %18 : vector<2x8xf32>
    %cst_10 = arith.constant 1.000000e+00 : f32
    %20 = vector.broadcast %cst_10 : f32 to vector<2x8xf32>
    %21 = arith.addf %20, %19 : vector<2x8xf32>
    %22 = arith.divf %20, %21 : vector<2x8xf32>
    %23 = vector.extract_strided_slice %10 {offsets = [0, 16], sizes = [2, 8], strides = [1, 1]} : vector<2x32xf32> to vector<2x8xf32>
    %24 = math.tanh %23 : vector<2x8xf32>
    %25 = vector.extract_strided_slice %10 {offsets = [0, 24], sizes = [2, 8], strides = [1, 1]} : vector<2x32xf32> to vector<2x8xf32>
    %26 = arith.negf %25 : vector<2x8xf32>
    %27 = math.exp %26 : vector<2x8xf32>
    %cst_11 = arith.constant 1.000000e+00 : f32
    %28 = vector.broadcast %cst_11 : f32 to vector<2x8xf32>
    %29 = arith.addf %28, %27 : vector<2x8xf32>
    %30 = arith.divf %28, %29 : vector<2x8xf32>
    %31 = arith.mulf %22, %5 : vector<2x8xf32>
    %32 = arith.mulf %16, %24 : vector<2x8xf32>
    %33 = arith.addf %31, %32 : vector<2x8xf32>
    %34 = math.tanh %33 : vector<2x8xf32>
    %35 = arith.mulf %30, %34 : vector<2x8xf32>
    %c0_12 = arith.constant 0 : index
    %c0_13 = arith.constant 0 : index
    %c0_14 = arith.constant 0 : index
    %36 = vector.load %arg6[%c0_12, %c0_13, %c0_14] : memref<2x8x8xf32, #tpu.memory_space<vmem>>, vector<2x1x8xf32>
    %37 = vector.shape_cast %36 : vector<2x1x8xf32> to vector<2x8xf32>
    %38 = vector.shape_cast %35 : vector<2x8xf32> to vector<2x1x8xf32>
    tpu.vector_store %arg6[%c0_12, %c0_13, %c0_14], %38 {strides = array<i32>} : memref<2x8x8xf32, #tpu.memory_space<vmem>>, vector<2x1x8xf32>,
    %c0_15 = arith.constant 0 : index
    %c1 = arith.constant 1 : index
    %c0_16 = arith.constant 0 : index
    %39 = vector.load %arg1[%c0_15, %c1, %c0_16] : memref<2x8x32xf32, #tpu.memory_space<vmem>>, vector<2x1x32xf32>
    %40 = vector.shape_cast %39 : vector<2x1x32xf32> to vector<2x32xf32>
    %41 = arith.truncf %35 : vector<2x8xf32> to vector<2x8xbf16>
    %cst_17 = arith.constant dense<0.000000e+00> : vector<2x32xf32>
    %42 = tpu.matmul %41, %3, %cst_17 {dimension_numbers = #tpu.dot_dimension_numbers<[1], [0], [0], [1], [0, 0, 1, 1], [], []>} : vector<2x8xbf16>, vector<8x32xbf16>, vector<2x32xf32> -> vector<2x32xf32>
    %43 = arith.addf %40, %42 : vector<2x32xf32>
    %44 = vector.extract_strided_slice %43 {offsets = [0, 0], sizes = [2, 8], strides = [1, 1]} : vector<2x32xf32> to vector<2x8xf32>
    %45 = arith.negf %44 : vector<2x8xf32>
    %46 = math.exp %45 : vector<2x8xf32>
    %cst_18 = arith.constant 1.000000e+00 : f32
    %47 = vector.broadcast %cst_18 : f32 to vector<2x8xf32>
    %48 = arith.addf %47, %46 : vector<2x8xf32>
    %49 = arith.divf %47, %48 : vector<2x8xf32>
    %50 = vector.extract_strided_slice %43 {offsets = [0, 8], sizes = [2, 8], strides = [1, 1]} : vector<2x32xf32> to vector<2x8xf32>
    %51 = arith.negf %50 : vector<2x8xf32>
    %52 = math.exp %51 : vector<2x8xf32>
    %cst_19 = arith.constant 1.000000e+00 : f32
    %53 = vector.broadcast %cst_19 : f32 to vector<2x8xf32>
    %54 = arith.addf %53, %52 : vector<2x8xf32>
    %55 = arith.divf %53, %54 : vector<2x8xf32>
    %56 = vector.extract_strided_slice %43 {offsets = [0, 16], sizes = [2, 8], strides = [1, 1]} : vector<2x32xf32> to vector<2x8xf32>
    %57 = math.tanh %56 : vector<2x8xf32>
    %58 = vector.extract_strided_slice %43 {offsets = [0, 24], sizes = [2, 8], strides = [1, 1]} : vector<2x32xf32> to vector<2x8xf32>
    %59 = arith.negf %58 : vector<2x8xf32>
    %60 = math.exp %59 : vector<2x8xf32>
    %cst_20 = arith.constant 1.000000e+00 : f32
    %61 = vector.broadcast %cst_20 : f32 to vector<2x8xf32>
    %62 = arith.addf %61, %60 : vector<2x8xf32>
    %63 = arith.divf %61, %62 : vector<2x8xf32>
    %64 = arith.mulf %55, %33 : vector<2x8xf32>
    %65 = arith.mulf %49, %57 : vector<2x8xf32>
    %66 = arith.addf %64, %65 : vector<2x8xf32>
    %67 = math.tanh %66 : vector<2x8xf32>
    %68 = arith.mulf %63, %67 : vector<2x8xf32>
    %c0_21 = arith.constant 0 : index
    %c1_22 = arith.constant 1 : index
    %c0_23 = arith.constant 0 : index
    %69 = vector.load %arg6[%c0_21, %c1_22, %c0_23] : memref<2x8x8xf32, #tpu.memory_space<vmem>>, vector<2x1x8xf32>
    %70 = vector.shape_cast %69 : vector<2x1x8xf32> to vector<2x8xf32>
    %71 = vector.shape_cast %68 : vector<2x8xf32> to vector<2x1x8xf32>
    tpu.vector_store %arg6[%c0_21, %c1_22, %c0_23], %71 {strides = array<i32>} : memref<2x8x8xf32, #tpu.memory_space<vmem>>, vector<2x1x8xf32>,
    %c0_24 = arith.constant 0 : index
    %c2 = arith.constant 2 : index
    %c0_25 = arith.constant 0 : index
    %72 = vector.load %arg1[%c0_24, %c2, %c0_25] : memref<2x8x32xf32, #tpu.memory_space<vmem>>, vector<2x1x32xf32>
    %73 = vector.shape_cast %72 : vector<2x1x32xf32> to vector<2x32xf32>
    %74 = arith.truncf %68 : vector<2x8xf32> to vector<2x8xbf16>
    %cst_26 = arith.constant dense<0.000000e+00> : vector<2x32xf32>
    %75 = tpu.matmul %74, %3, %cst_26 {dimension_numbers = #tpu.dot_dimension_numbers<[1], [0], [0], [1], [0, 0, 1, 1], [], []>} : vector<2x8xbf16>, vector<8x32xbf16>, vector<2x32xf32> -> vector<2x32xf32>
    %76 = arith.addf %73, %75 : vector<2x32xf32>
    %77 = vector.extract_strided_slice %76 {offsets = [0, 0], sizes = [2, 8], strides = [1, 1]} : vector<2x32xf32> to vector<2x8xf32>
    %78 = arith.negf %77 : vector<2x8xf32>
    %79 = math.exp %78 : vector<2x8xf32>
    %cst_27 = arith.constant 1.000000e+00 : f32
    %80 = vector.broadcast %cst_27 : f32 to vector<2x8xf32>
    %81 = arith.addf %80, %79 : vector<2x8xf32>
    %82 = arith.divf %80, %81 : vector<2x8xf32>
    %83 = vector.extract_strided_slice %76 {offsets = [0, 8], sizes = [2, 8], strides = [1, 1]} : vector<2x32xf32> to vector<2x8xf32>
    %84 = arith.negf %83 : vector<2x8xf32>
    %85 = math.exp %84 : vector<2x8xf32>
    %cst_28 = arith.constant 1.000000e+00 : f32
    %86 = vector.broadcast %cst_28 : f32 to vector<2x8xf32>
    %87 = arith.addf %86, %85 : vector<2x8xf32>
    %88 = arith.divf %86, %87 : vector<2x8xf32>
    %89 = vector.extract_strided_slice %76 {offsets = [0, 16], sizes = [2, 8], strides = [1, 1]} : vector<2x32xf32> to vector<2x8xf32>
    %90 = math.tanh %89 : vector<2x8xf32>
    %91 = vector.extract_strided_slice %76 {offsets = [0, 24], sizes = [2, 8], strides = [1, 1]} : vector<2x32xf32> to vector<2x8xf32>
    %92 = arith.negf %91 : vector<2x8xf32>
    %93 = math.exp %92 : vector<2x8xf32>
    %cst_29 = arith.constant 1.000000e+00 : f32
    %94 = vector.broadcast %cst_29 : f32 to vector<2x8xf32>
    %95 = arith.addf %94, %93 : vector<2x8xf32>
    %96 = arith.divf %94, %95 : vector<2x8xf32>
    %97 = arith.mulf %88, %66 : vector<2x8xf32>
    %98 = arith.mulf %82, %90 : vector<2x8xf32>
    %99 = arith.addf %97, %98 : vector<2x8xf32>
    %100 = math.tanh %99 : vector<2x8xf32>
    %101 = arith.mulf %96, %100 : vector<2x8xf32>
    %c0_30 = arith.constant 0 : index
    %c2_31 = arith.constant 2 : index
    %c0_32 = arith.constant 0 : index
    %102 = vector.load %arg6[%c0_30, %c2_31, %c0_32] : memref<2x8x8xf32, #tpu.memory_space<vmem>>, vector<2x1x8xf32>
    %103 = vector.shape_cast %102 : vector<2x1x8xf32> to vector<2x8xf32>
    %104 = vector.shape_cast %101 : vector<2x8xf32> to vector<2x1x8xf32>
    tpu.vector_store %arg6[%c0_30, %c2_31, %c0_32], %104 {strides = array<i32>} : memref<2x8x8xf32, #tpu.memory_space<vmem>>, vector<2x1x8xf32>,
    %c0_33 = arith.constant 0 : index
    %c3 = arith.constant 3 : index
    %c0_34 = arith.constant 0 : index
    %105 = vector.load %arg1[%c0_33, %c3, %c0_34] : memref<2x8x32xf32, #tpu.memory_space<vmem>>, vector<2x1x32xf32>
    %106 = vector.shape_cast %105 : vector<2x1x32xf32> to vector<2x32xf32>
    %107 = arith.truncf %101 : vector<2x8xf32> to vector<2x8xbf16>
    %cst_35 = arith.constant dense<0.000000e+00> : vector<2x32xf32>
    %108 = tpu.matmul %107, %3, %cst_35 {dimension_numbers = #tpu.dot_dimension_numbers<[1], [0], [0], [1], [0, 0, 1, 1], [], []>} : vector<2x8xbf16>, vector<8x32xbf16>, vector<2x32xf32> -> vector<2x32xf32>
    %109 = arith.addf %106, %108 : vector<2x32xf32>
    %110 = vector.extract_strided_slice %109 {offsets = [0, 0], sizes = [2, 8], strides = [1, 1]} : vector<2x32xf32> to vector<2x8xf32>
    %111 = arith.negf %110 : vector<2x8xf32>
    %112 = math.exp %111 : vector<2x8xf32>
    %cst_36 = arith.constant 1.000000e+00 : f32
    %113 = vector.broadcast %cst_36 : f32 to vector<2x8xf32>
    %114 = arith.addf %113, %112 : vector<2x8xf32>
    %115 = arith.divf %113, %114 : vector<2x8xf32>
    %116 = vector.extract_strided_slice %109 {offsets = [0, 8], sizes = [2, 8], strides = [1, 1]} : vector<2x32xf32> to vector<2x8xf32>
    %117 = arith.negf %116 : vector<2x8xf32>
    %118 = math.exp %117 : vector<2x8xf32>
    %cst_37 = arith.constant 1.000000e+00 : f32
    %119 = vector.broadcast %cst_37 : f32 to vector<2x8xf32>
    %120 = arith.addf %119, %118 : vector<2x8xf32>
    %121 = arith.divf %119, %120 : vector<2x8xf32>
    %122 = vector.extract_strided_slice %109 {offsets = [0, 16], sizes = [2, 8], strides = [1, 1]} : vector<2x32xf32> to vector<2x8xf32>
    %123 = math.tanh %122 : vector<2x8xf32>
    %124 = vector.extract_strided_slice %109 {offsets = [0, 24], sizes = [2, 8], strides = [1, 1]} : vector<2x32xf32> to vector<2x8xf32>
    %125 = arith.negf %124 : vector<2x8xf32>
    %126 = math.exp %125 : vector<2x8xf32>
    %cst_38 = arith.constant 1.000000e+00 : f32
    %127 = vector.broadcast %cst_38 : f32 to vector<2x8xf32>
    %128 = arith.addf %127, %126 : vector<2x8xf32>
    %129 = arith.divf %127, %128 : vector<2x8xf32>
    %130 = arith.mulf %121, %99 : vector<2x8xf32>
    %131 = arith.mulf %115, %123 : vector<2x8xf32>
    %132 = arith.addf %130, %131 : vector<2x8xf32>
    %133 = math.tanh %132 : vector<2x8xf32>
    %134 = arith.mulf %129, %133 : vector<2x8xf32>
    %c0_39 = arith.constant 0 : index
    %c3_40 = arith.constant 3 : index
    %c0_41 = arith.constant 0 : index
    %135 = vector.load %arg6[%c0_39, %c3_40, %c0_41] : memref<2x8x8xf32, #tpu.memory_space<vmem>>, vector<2x1x8xf32>
    %136 = vector.shape_cast %135 : vector<2x1x8xf32> to vector<2x8xf32>
    %137 = vector.shape_cast %134 : vector<2x8xf32> to vector<2x1x8xf32>
    tpu.vector_store %arg6[%c0_39, %c3_40, %c0_41], %137 {strides = array<i32>} : memref<2x8x8xf32, #tpu.memory_space<vmem>>, vector<2x1x8xf32>,
    %c0_42 = arith.constant 0 : index
    %c4 = arith.constant 4 : index
    %c0_43 = arith.constant 0 : index
    %138 = vector.load %arg1[%c0_42, %c4, %c0_43] : memref<2x8x32xf32, #tpu.memory_space<vmem>>, vector<2x1x32xf32>
    %139 = vector.shape_cast %138 : vector<2x1x32xf32> to vector<2x32xf32>
    %140 = arith.truncf %134 : vector<2x8xf32> to vector<2x8xbf16>
    %cst_44 = arith.constant dense<0.000000e+00> : vector<2x32xf32>
    %141 = tpu.matmul %140, %3, %cst_44 {dimension_numbers = #tpu.dot_dimension_numbers<[1], [0], [0], [1], [0, 0, 1, 1], [], []>} : vector<2x8xbf16>, vector<8x32xbf16>, vector<2x32xf32> -> vector<2x32xf32>
    %142 = arith.addf %139, %141 : vector<2x32xf32>
    %143 = vector.extract_strided_slice %142 {offsets = [0, 0], sizes = [2, 8], strides = [1, 1]} : vector<2x32xf32> to vector<2x8xf32>
    %144 = arith.negf %143 : vector<2x8xf32>
    %145 = math.exp %144 : vector<2x8xf32>
    %cst_45 = arith.constant 1.000000e+00 : f32
    %146 = vector.broadcast %cst_45 : f32 to vector<2x8xf32>
    %147 = arith.addf %146, %145 : vector<2x8xf32>
    %148 = arith.divf %146, %147 : vector<2x8xf32>
    %149 = vector.extract_strided_slice %142 {offsets = [0, 8], sizes = [2, 8], strides = [1, 1]} : vector<2x32xf32> to vector<2x8xf32>
    %150 = arith.negf %149 : vector<2x8xf32>
    %151 = math.exp %150 : vector<2x8xf32>
    %cst_46 = arith.constant 1.000000e+00 : f32
    %152 = vector.broadcast %cst_46 : f32 to vector<2x8xf32>
    %153 = arith.addf %152, %151 : vector<2x8xf32>
    %154 = arith.divf %152, %153 : vector<2x8xf32>
    %155 = vector.extract_strided_slice %142 {offsets = [0, 16], sizes = [2, 8], strides = [1, 1]} : vector<2x32xf32> to vector<2x8xf32>
    %156 = math.tanh %155 : vector<2x8xf32>
    %157 = vector.extract_strided_slice %142 {offsets = [0, 24], sizes = [2, 8], strides = [1, 1]} : vector<2x32xf32> to vector<2x8xf32>
    %158 = arith.negf %157 : vector<2x8xf32>
    %159 = math.exp %158 : vector<2x8xf32>
    %cst_47 = arith.constant 1.000000e+00 : f32
    %160 = vector.broadcast %cst_47 : f32 to vector<2x8xf32>
    %161 = arith.addf %160, %159 : vector<2x8xf32>
    %162 = arith.divf %160, %161 : vector<2x8xf32>
    %163 = arith.mulf %154, %132 : vector<2x8xf32>
    %164 = arith.mulf %148, %156 : vector<2x8xf32>
    %165 = arith.addf %163, %164 : vector<2x8xf32>
    %166 = math.tanh %165 : vector<2x8xf32>
    %167 = arith.mulf %162, %166 : vector<2x8xf32>
    %c0_48 = arith.constant 0 : index
    %c4_49 = arith.constant 4 : index
    %c0_50 = arith.constant 0 : index
    %168 = vector.load %arg6[%c0_48, %c4_49, %c0_50] : memref<2x8x8xf32, #tpu.memory_space<vmem>>, vector<2x1x8xf32>
    %169 = vector.shape_cast %168 : vector<2x1x8xf32> to vector<2x8xf32>
    %170 = vector.shape_cast %167 : vector<2x8xf32> to vector<2x1x8xf32>
    tpu.vector_store %arg6[%c0_48, %c4_49, %c0_50], %170 {strides = array<i32>} : memref<2x8x8xf32, #tpu.memory_space<vmem>>, vector<2x1x8xf32>,
    %c0_51 = arith.constant 0 : index
    %c5 = arith.constant 5 : index
    %c0_52 = arith.constant 0 : index
    %171 = vector.load %arg1[%c0_51, %c5, %c0_52] : memref<2x8x32xf32, #tpu.memory_space<vmem>>, vector<2x1x32xf32>
    %172 = vector.shape_cast %171 : vector<2x1x32xf32> to vector<2x32xf32>
    %173 = arith.truncf %167 : vector<2x8xf32> to vector<2x8xbf16>
    %cst_53 = arith.constant dense<0.000000e+00> : vector<2x32xf32>
    %174 = tpu.matmul %173, %3, %cst_53 {dimension_numbers = #tpu.dot_dimension_numbers<[1], [0], [0], [1], [0, 0, 1, 1], [], []>} : vector<2x8xbf16>, vector<8x32xbf16>, vector<2x32xf32> -> vector<2x32xf32>
    %175 = arith.addf %172, %174 : vector<2x32xf32>
    %176 = vector.extract_strided_slice %175 {offsets = [0, 0], sizes = [2, 8], strides = [1, 1]} : vector<2x32xf32> to vector<2x8xf32>
    %177 = arith.negf %176 : vector<2x8xf32>
    %178 = math.exp %177 : vector<2x8xf32>
    %cst_54 = arith.constant 1.000000e+00 : f32
    %179 = vector.broadcast %cst_54 : f32 to vector<2x8xf32>
    %180 = arith.addf %179, %178 : vector<2x8xf32>
    %181 = arith.divf %179, %180 : vector<2x8xf32>
    %182 = vector.extract_strided_slice %175 {offsets = [0, 8], sizes = [2, 8], strides = [1, 1]} : vector<2x32xf32> to vector<2x8xf32>
    %183 = arith.negf %182 : vector<2x8xf32>
    %184 = math.exp %183 : vector<2x8xf32>
    %cst_55 = arith.constant 1.000000e+00 : f32
    %185 = vector.broadcast %cst_55 : f32 to vector<2x8xf32>
    %186 = arith.addf %185, %184 : vector<2x8xf32>
    %187 = arith.divf %185, %186 : vector<2x8xf32>
    %188 = vector.extract_strided_slice %175 {offsets = [0, 16], sizes = [2, 8], strides = [1, 1]} : vector<2x32xf32> to vector<2x8xf32>
    %189 = math.tanh %188 : vector<2x8xf32>
    %190 = vector.extract_strided_slice %175 {offsets = [0, 24], sizes = [2, 8], strides = [1, 1]} : vector<2x32xf32> to vector<2x8xf32>
    %191 = arith.negf %190 : vector<2x8xf32>
    %192 = math.exp %191 : vector<2x8xf32>
    %cst_56 = arith.constant 1.000000e+00 : f32
    %193 = vector.broadcast %cst_56 : f32 to vector<2x8xf32>
    %194 = arith.addf %193, %192 : vector<2x8xf32>
    %195 = arith.divf %193, %194 : vector<2x8xf32>
    %196 = arith.mulf %187, %165 : vector<2x8xf32>
    %197 = arith.mulf %181, %189 : vector<2x8xf32>
    %198 = arith.addf %196, %197 : vector<2x8xf32>
    %199 = math.tanh %198 : vector<2x8xf32>
    %200 = arith.mulf %195, %199 : vector<2x8xf32>
    %c0_57 = arith.constant 0 : index
    %c5_58 = arith.constant 5 : index
    %c0_59 = arith.constant 0 : index
    %201 = vector.load %arg6[%c0_57, %c5_58, %c0_59] : memref<2x8x8xf32, #tpu.memory_space<vmem>>, vector<2x1x8xf32>
    %202 = vector.shape_cast %201 : vector<2x1x8xf32> to vector<2x8xf32>
    %203 = vector.shape_cast %200 : vector<2x8xf32> to vector<2x1x8xf32>
    tpu.vector_store %arg6[%c0_57, %c5_58, %c0_59], %203 {strides = array<i32>} : memref<2x8x8xf32, #tpu.memory_space<vmem>>, vector<2x1x8xf32>,
    %c0_60 = arith.constant 0 : index
    %c6 = arith.constant 6 : index
    %c0_61 = arith.constant 0 : index
    %204 = vector.load %arg1[%c0_60, %c6, %c0_61] : memref<2x8x32xf32, #tpu.memory_space<vmem>>, vector<2x1x32xf32>
    %205 = vector.shape_cast %204 : vector<2x1x32xf32> to vector<2x32xf32>
    %206 = arith.truncf %200 : vector<2x8xf32> to vector<2x8xbf16>
    %cst_62 = arith.constant dense<0.000000e+00> : vector<2x32xf32>
    %207 = tpu.matmul %206, %3, %cst_62 {dimension_numbers = #tpu.dot_dimension_numbers<[1], [0], [0], [1], [0, 0, 1, 1], [], []>} : vector<2x8xbf16>, vector<8x32xbf16>, vector<2x32xf32> -> vector<2x32xf32>
    %208 = arith.addf %205, %207 : vector<2x32xf32>
    %209 = vector.extract_strided_slice %208 {offsets = [0, 0], sizes = [2, 8], strides = [1, 1]} : vector<2x32xf32> to vector<2x8xf32>
    %210 = arith.negf %209 : vector<2x8xf32>
    %211 = math.exp %210 : vector<2x8xf32>
    %cst_63 = arith.constant 1.000000e+00 : f32
    %212 = vector.broadcast %cst_63 : f32 to vector<2x8xf32>
    %213 = arith.addf %212, %211 : vector<2x8xf32>
    %214 = arith.divf %212, %213 : vector<2x8xf32>
    %215 = vector.extract_strided_slice %208 {offsets = [0, 8], sizes = [2, 8], strides = [1, 1]} : vector<2x32xf32> to vector<2x8xf32>
    %216 = arith.negf %215 : vector<2x8xf32>
    %217 = math.exp %216 : vector<2x8xf32>
    %cst_64 = arith.constant 1.000000e+00 : f32
    %218 = vector.broadcast %cst_64 : f32 to vector<2x8xf32>
    %219 = arith.addf %218, %217 : vector<2x8xf32>
    %220 = arith.divf %218, %219 : vector<2x8xf32>
    %221 = vector.extract_strided_slice %208 {offsets = [0, 16], sizes = [2, 8], strides = [1, 1]} : vector<2x32xf32> to vector<2x8xf32>
    %222 = math.tanh %221 : vector<2x8xf32>
    %223 = vector.extract_strided_slice %208 {offsets = [0, 24], sizes = [2, 8], strides = [1, 1]} : vector<2x32xf32> to vector<2x8xf32>
    %224 = arith.negf %223 : vector<2x8xf32>
    %225 = math.exp %224 : vector<2x8xf32>
    %cst_65 = arith.constant 1.000000e+00 : f32
    %226 = vector.broadcast %cst_65 : f32 to vector<2x8xf32>
    %227 = arith.addf %226, %225 : vector<2x8xf32>
    %228 = arith.divf %226, %227 : vector<2x8xf32>
    %229 = arith.mulf %220, %198 : vector<2x8xf32>
    %230 = arith.mulf %214, %222 : vector<2x8xf32>
    %231 = arith.addf %229, %230 : vector<2x8xf32>
    %232 = math.tanh %231 : vector<2x8xf32>
    %233 = arith.mulf %228, %232 : vector<2x8xf32>
    %c0_66 = arith.constant 0 : index
    %c6_67 = arith.constant 6 : index
    %c0_68 = arith.constant 0 : index
    %234 = vector.load %arg6[%c0_66, %c6_67, %c0_68] : memref<2x8x8xf32, #tpu.memory_space<vmem>>, vector<2x1x8xf32>
    %235 = vector.shape_cast %234 : vector<2x1x8xf32> to vector<2x8xf32>
    %236 = vector.shape_cast %233 : vector<2x8xf32> to vector<2x1x8xf32>
    tpu.vector_store %arg6[%c0_66, %c6_67, %c0_68], %236 {strides = array<i32>} : memref<2x8x8xf32, #tpu.memory_space<vmem>>, vector<2x1x8xf32>,
    %c0_69 = arith.constant 0 : index
    %c7 = arith.constant 7 : index
    %c0_70 = arith.constant 0 : index
    %237 = vector.load %arg1[%c0_69, %c7, %c0_70] : memref<2x8x32xf32, #tpu.memory_space<vmem>>, vector<2x1x32xf32>
    %238 = vector.shape_cast %237 : vector<2x1x32xf32> to vector<2x32xf32>
    %239 = arith.truncf %233 : vector<2x8xf32> to vector<2x8xbf16>
    %cst_71 = arith.constant dense<0.000000e+00> : vector<2x32xf32>
    %240 = tpu.matmul %239, %3, %cst_71 {dimension_numbers = #tpu.dot_dimension_numbers<[1], [0], [0], [1], [0, 0, 1, 1], [], []>} : vector<2x8xbf16>, vector<8x32xbf16>, vector<2x32xf32> -> vector<2x32xf32>
    %241 = arith.addf %238, %240 : vector<2x32xf32>
    %242 = vector.extract_strided_slice %241 {offsets = [0, 0], sizes = [2, 8], strides = [1, 1]} : vector<2x32xf32> to vector<2x8xf32>
    %243 = arith.negf %242 : vector<2x8xf32>
    %244 = math.exp %243 : vector<2x8xf32>
    %cst_72 = arith.constant 1.000000e+00 : f32
    %245 = vector.broadcast %cst_72 : f32 to vector<2x8xf32>
    %246 = arith.addf %245, %244 : vector<2x8xf32>
    %247 = arith.divf %245, %246 : vector<2x8xf32>
    %248 = vector.extract_strided_slice %241 {offsets = [0, 8], sizes = [2, 8], strides = [1, 1]} : vector<2x32xf32> to vector<2x8xf32>
    %249 = arith.negf %248 : vector<2x8xf32>
    %250 = math.exp %249 : vector<2x8xf32>
    %cst_73 = arith.constant 1.000000e+00 : f32
    %251 = vector.broadcast %cst_73 : f32 to vector<2x8xf32>
    %252 = arith.addf %251, %250 : vector<2x8xf32>
    %253 = arith.divf %251, %252 : vector<2x8xf32>
    %254 = vector.extract_strided_slice %241 {offsets = [0, 16], sizes = [2, 8], strides = [1, 1]} : vector<2x32xf32> to vector<2x8xf32>
    %255 = math.tanh %254 : vector<2x8xf32>
    %256 = vector.extract_strided_slice %241 {offsets = [0, 24], sizes = [2, 8], strides = [1, 1]} : vector<2x32xf32> to vector<2x8xf32>
    %257 = arith.negf %256 : vector<2x8xf32>
    %258 = math.exp %257 : vector<2x8xf32>
    %cst_74 = arith.constant 1.000000e+00 : f32
    %259 = vector.broadcast %cst_74 : f32 to vector<2x8xf32>
    %260 = arith.addf %259, %258 : vector<2x8xf32>
    %261 = arith.divf %259, %260 : vector<2x8xf32>
    %262 = arith.mulf %253, %231 : vector<2x8xf32>
    %263 = arith.mulf %247, %255 : vector<2x8xf32>
    %264 = arith.addf %262, %263 : vector<2x8xf32>
    %265 = math.tanh %264 : vector<2x8xf32>
    %266 = arith.mulf %261, %265 : vector<2x8xf32>
    %c0_75 = arith.constant 0 : index
    %c7_76 = arith.constant 7 : index
    %c0_77 = arith.constant 0 : index
    %267 = vector.load %arg6[%c0_75, %c7_76, %c0_77] : memref<2x8x8xf32, #tpu.memory_space<vmem>>, vector<2x1x8xf32>
    %268 = vector.shape_cast %267 : vector<2x1x8xf32> to vector<2x8xf32>
    %269 = vector.shape_cast %266 : vector<2x8xf32> to vector<2x1x8xf32>
    tpu.vector_store %arg6[%c0_75, %c7_76, %c0_77], %269 {strides = array<i32>} : memref<2x8x8xf32, #tpu.memory_space<vmem>>, vector<2x1x8xf32>,
    %c0_78 = arith.constant 0 : index
    %c0_79 = arith.constant 0 : index
    %270 = vector.load %arg4[%c0_78, %c0_79] : memref<2x8xf32, #tpu.memory_space<vmem>>, vector<2x8xf32>
    tpu.vector_store %arg4[%c0_78, %c0_79], %266 {strides = array<i32>} : memref<2x8xf32, #tpu.memory_space<vmem>>, vector<2x8xf32>,
    %c0_80 = arith.constant 0 : index
    %c0_81 = arith.constant 0 : index
    %271 = vector.load %arg5[%c0_80, %c0_81] : memref<2x8xf32, #tpu.memory_space<vmem>>, vector<2x8xf32>
    tpu.vector_store %arg5[%c0_80, %c0_81], %264 {strides = array<i32>} : memref<2x8xf32, #tpu.memory_space<vmem>>, vector<2x8xf32>,
    %c0_82 = arith.constant 0 : index
    %c0_83 = arith.constant 0 : index
    %c0_84 = arith.constant 0 : index
    %272 = vector.load %arg6[%c0_82, %c0_83, %c0_84] : memref<2x8x8xf32, #tpu.memory_space<vmem>>, vector<2x8x8xf32>
    %273 = arith.truncf %272 : vector<2x8x8xf32> to vector<2x8x8xbf16>
    %c0_85 = arith.constant 0 : index
    %c0_86 = arith.constant 0 : index
    %c0_87 = arith.constant 0 : index
    %274 = vector.load %arg3[%c0_85, %c0_86, %c0_87] : memref<2x8x8xbf16, #tpu.memory_space<vmem>>, vector<2x8x8xbf16>
    tpu.vector_store %arg3[%c0_85, %c0_86, %c0_87], %273 {strides = array<i32>} : memref<2x8x8xbf16, #tpu.memory_space<vmem>>, vector<2x8x8xbf16>,
    return
  }
  func.func @transform_0(%arg0: i32) -> (i32, i32, i32) {
    %c0_i32 = arith.constant 0 : i32
    %c0_i32_0 = arith.constant 0 : i32
    %c0_i32_1 = arith.constant 0 : i32
    return %c0_i32, %arg0, %c0_i32_0 : i32, i32, i32
  }
  func.func @transform_1(%arg0: i32) -> (i32, i32) {
    %c0_i32 = arith.constant 0 : i32
    %c0_i32_0 = arith.constant 0 : i32
    %c0_i32_1 = arith.constant 0 : i32
    return %c0_i32, %c0_i32_0 : i32, i32
  }
  func.func @transform_2(%arg0: i32) -> (i32, i32, i32) {
    %c0_i32 = arith.constant 0 : i32
    %c0_i32_0 = arith.constant 0 : i32
    %c0_i32_1 = arith.constant 0 : i32
    return %c0_i32, %arg0, %c0_i32_0 : i32, i32, i32
  }
}

module attributes {stable_mosaic.version = 11 : i64} {
  func.func @_mm_kernel(%arg0: i32, %arg1: i32, %arg2: i32, %arg3: memref<16x8xbf16, #tpu.memory_space<vmem>>, %arg4: memref<8x16xbf16, #tpu.memory_space<vmem>>, %arg5: memref<16x16xbf16, #tpu.memory_space<vmem>>, %arg6: memref<16x16xf32, #tpu.memory_space<vmem>>) attributes {dimension_semantics = [#tpu.dimension_semantics<parallel>, #tpu.dimension_semantics<parallel>, #tpu.dimension_semantics<arbitrary>], iteration_bounds = array<i64: 2, 1, 1>, scalar_prefetch = 0 : i64, scratch_operands = 1 : i64, tpu.core_type = #tpu.core_type<tc>, window_params = [{transform_indices = @transform_0, window_bounds = array<i64: 16, 8>}, {transform_indices = @transform_1, window_bounds = array<i64: 8, 16>}, {transform_indices = @transform_2, window_bounds = array<i64: 16, 16>}]} {
    %c0_i32 = arith.constant 0 : i32
    %0 = arith.cmpi eq, %arg2, %c0_i32 : i32
    %1 = arith.extui %0 : i1 to i32
    %c0_i32_0 = arith.constant 0 : i32
    %2 = arith.cmpi ne, %1, %c0_i32_0 : i32
    scf.if %2 {
      %cst_10 = arith.constant 0.000000e+00 : f32
      %12 = vector.broadcast %cst_10 : f32 to vector<16x16xf32>
      %c0_11 = arith.constant 0 : index
      %c0_12 = arith.constant 0 : index
      %13 = vector.load %arg6[%c0_11, %c0_12] : memref<16x16xf32, #tpu.memory_space<vmem>>, vector<16x16xf32>
      tpu.vector_store %arg6[%c0_11, %c0_12], %12 {strides = array<i32>} : memref<16x16xf32, #tpu.memory_space<vmem>>, vector<16x16xf32>,
    } else {
    }
    %c0 = arith.constant 0 : index
    %c0_1 = arith.constant 0 : index
    %3 = vector.load %arg6[%c0, %c0_1] : memref<16x16xf32, #tpu.memory_space<vmem>>, vector<16x16xf32>
    %c0_2 = arith.constant 0 : index
    %c0_3 = arith.constant 0 : index
    %4 = vector.load %arg3[%c0_2, %c0_3] : memref<16x8xbf16, #tpu.memory_space<vmem>>, vector<16x8xbf16>
    %c0_4 = arith.constant 0 : index
    %c0_5 = arith.constant 0 : index
    %5 = vector.load %arg4[%c0_4, %c0_5] : memref<8x16xbf16, #tpu.memory_space<vmem>>, vector<8x16xbf16>
    %cst = arith.constant dense<0.000000e+00> : vector<16x16xf32>
    %6 = tpu.matmul %4, %5, %cst {dimension_numbers = #tpu.dot_dimension_numbers<[1], [0], [0], [1], [0, 0, 1, 1], [], []>} : vector<16x8xbf16>, vector<8x16xbf16>, vector<16x16xf32> -> vector<16x16xf32>
    %7 = arith.addf %3, %6 : vector<16x16xf32>
    %c0_6 = arith.constant 0 : index
    %c0_7 = arith.constant 0 : index
    %8 = vector.load %arg6[%c0_6, %c0_7] : memref<16x16xf32, #tpu.memory_space<vmem>>, vector<16x16xf32>
    tpu.vector_store %arg6[%c0_6, %c0_7], %7 {strides = array<i32>} : memref<16x16xf32, #tpu.memory_space<vmem>>, vector<16x16xf32>,
    %c0_i32_8 = arith.constant 0 : i32
    %9 = arith.cmpi eq, %arg2, %c0_i32_8 : i32
    %10 = arith.extui %9 : i1 to i32
    %c0_i32_9 = arith.constant 0 : i32
    %11 = arith.cmpi ne, %10, %c0_i32_9 : i32
    scf.if %11 {
      %c0_10 = arith.constant 0 : index
      %c0_11 = arith.constant 0 : index
      %12 = vector.load %arg6[%c0_10, %c0_11] : memref<16x16xf32, #tpu.memory_space<vmem>>, vector<16x16xf32>
      %13 = arith.truncf %12 : vector<16x16xf32> to vector<16x16xbf16>
      %c0_12 = arith.constant 0 : index
      %c0_13 = arith.constant 0 : index
      %14 = vector.load %arg5[%c0_12, %c0_13] : memref<16x16xbf16, #tpu.memory_space<vmem>>, vector<16x16xbf16>
      tpu.vector_store %arg5[%c0_12, %c0_13], %13 {strides = array<i32>} : memref<16x16xbf16, #tpu.memory_space<vmem>>, vector<16x16xbf16>,
    } else {
    }
    return
  }
  func.func @transform_0(%arg0: i32, %arg1: i32, %arg2: i32) -> (i32, i32) {
    %c0_i32 = arith.constant 0 : i32
    return %arg0, %arg2 : i32, i32
  }
  func.func @transform_1(%arg0: i32, %arg1: i32, %arg2: i32) -> (i32, i32) {
    %c0_i32 = arith.constant 0 : i32
    return %arg2, %arg1 : i32, i32
  }
  func.func @transform_2(%arg0: i32, %arg1: i32, %arg2: i32) -> (i32, i32) {
    %c0_i32 = arith.constant 0 : i32
    return %arg0, %arg1 : i32, i32
  }
}

module attributes {stable_mosaic.version = 11 : i64} {
  func.func @_mm_kernel(%arg0: i32, %arg1: i32, %arg2: i32, %arg3: memref<32x4xbf16, #tpu.memory_space<vmem>>, %arg4: memref<4x4xbf16, #tpu.memory_space<vmem>>, %arg5: memref<32x4xbf16, #tpu.memory_space<vmem>>, %arg6: memref<32x4xf32, #tpu.memory_space<vmem>>) attributes {dimension_semantics = [#tpu.dimension_semantics<parallel>, #tpu.dimension_semantics<parallel>, #tpu.dimension_semantics<arbitrary>], iteration_bounds = array<i64: 2, 1, 1>, scalar_prefetch = 0 : i64, scratch_operands = 1 : i64, tpu.core_type = #tpu.core_type<tc>, window_params = [{transform_indices = @transform_0, window_bounds = array<i64: 32, 4>}, {transform_indices = @transform_1, window_bounds = array<i64: 4, 4>}, {transform_indices = @transform_2, window_bounds = array<i64: 32, 4>}]} {
    %c0_i32 = arith.constant 0 : i32
    %0 = arith.cmpi eq, %arg2, %c0_i32 : i32
    %1 = arith.extui %0 : i1 to i32
    %c0_i32_0 = arith.constant 0 : i32
    %2 = arith.cmpi ne, %1, %c0_i32_0 : i32
    scf.if %2 {
      %cst_10 = arith.constant 0.000000e+00 : f32
      %12 = vector.broadcast %cst_10 : f32 to vector<32x4xf32>
      %c0_11 = arith.constant 0 : index
      %c0_12 = arith.constant 0 : index
      %13 = vector.load %arg6[%c0_11, %c0_12] : memref<32x4xf32, #tpu.memory_space<vmem>>, vector<32x4xf32>
      tpu.vector_store %arg6[%c0_11, %c0_12], %12 {strides = array<i32>} : memref<32x4xf32, #tpu.memory_space<vmem>>, vector<32x4xf32>,
    } else {
    }
    %c0 = arith.constant 0 : index
    %c0_1 = arith.constant 0 : index
    %3 = vector.load %arg6[%c0, %c0_1] : memref<32x4xf32, #tpu.memory_space<vmem>>, vector<32x4xf32>
    %c0_2 = arith.constant 0 : index
    %c0_3 = arith.constant 0 : index
    %4 = vector.load %arg3[%c0_2, %c0_3] : memref<32x4xbf16, #tpu.memory_space<vmem>>, vector<32x4xbf16>
    %c0_4 = arith.constant 0 : index
    %c0_5 = arith.constant 0 : index
    %5 = vector.load %arg4[%c0_4, %c0_5] : memref<4x4xbf16, #tpu.memory_space<vmem>>, vector<4x4xbf16>
    %cst = arith.constant dense<0.000000e+00> : vector<32x4xf32>
    %6 = tpu.matmul %4, %5, %cst {dimension_numbers = #tpu.dot_dimension_numbers<[1], [0], [0], [1], [0, 0, 1, 1], [], []>} : vector<32x4xbf16>, vector<4x4xbf16>, vector<32x4xf32> -> vector<32x4xf32>
    %7 = arith.addf %3, %6 : vector<32x4xf32>
    %c0_6 = arith.constant 0 : index
    %c0_7 = arith.constant 0 : index
    %8 = vector.load %arg6[%c0_6, %c0_7] : memref<32x4xf32, #tpu.memory_space<vmem>>, vector<32x4xf32>
    tpu.vector_store %arg6[%c0_6, %c0_7], %7 {strides = array<i32>} : memref<32x4xf32, #tpu.memory_space<vmem>>, vector<32x4xf32>,
    %c0_i32_8 = arith.constant 0 : i32
    %9 = arith.cmpi eq, %arg2, %c0_i32_8 : i32
    %10 = arith.extui %9 : i1 to i32
    %c0_i32_9 = arith.constant 0 : i32
    %11 = arith.cmpi ne, %10, %c0_i32_9 : i32
    scf.if %11 {
      %c0_10 = arith.constant 0 : index
      %c0_11 = arith.constant 0 : index
      %12 = vector.load %arg6[%c0_10, %c0_11] : memref<32x4xf32, #tpu.memory_space<vmem>>, vector<32x4xf32>
      %13 = arith.truncf %12 : vector<32x4xf32> to vector<32x4xbf16>
      %c0_12 = arith.constant 0 : index
      %c0_13 = arith.constant 0 : index
      %14 = vector.load %arg5[%c0_12, %c0_13] : memref<32x4xbf16, #tpu.memory_space<vmem>>, vector<32x4xbf16>
      tpu.vector_store %arg5[%c0_12, %c0_13], %13 {strides = array<i32>} : memref<32x4xbf16, #tpu.memory_space<vmem>>, vector<32x4xbf16>,
    } else {
    }
    return
  }
  func.func @transform_0(%arg0: i32, %arg1: i32, %arg2: i32) -> (i32, i32) {
    %c0_i32 = arith.constant 0 : i32
    return %arg0, %arg2 : i32, i32
  }
  func.func @transform_1(%arg0: i32, %arg1: i32, %arg2: i32) -> (i32, i32) {
    %c0_i32 = arith.constant 0 : i32
    return %arg2, %arg1 : i32, i32
  }
  func.func @transform_2(%arg0: i32, %arg1: i32, %arg2: i32) -> (i32, i32) {
    %c0_i32 = arith.constant 0 : i32
    return %arg0, %arg1 : i32, i32
  }
}

</mosaic_0001>

<llo_original>
// kernel: _lambda_.13
$region0: #{_lambda_.13}
  #allocation0 [shape = 'u32[]', space=smem, size = 0x4, offset = 0x4, fixed_abs, tag = 'smem constant byte address 0x4 - core index']
  #allocation1 [shape = 'u32[144,128]{1,0:T(1,128)}', space=vmem, size = 0x12000, scoped, tag = 'internal scratch']
  #allocation2 [shape = 'f32[32,4]{1,0:T(8,128)}', space=vmem, size = 0x4000, scoped, tag = 'scratch operand']
  #allocation3 [shape = 'f32[32,4]{1,0:T(8,128)}', space=vmem, size = 0x4000, scoped, tag = 'scratch operand']
  %s0 = inlined_call_operand.vmem [shape: bf16[64,4], index: 0, kind: input, shape index: {}]
  %s1 = inlined_call_operand.vmem [shape: bf16[4,4], index: 1, kind: input, shape index: {}]
  %s2 = inlined_call_operand.vmem [shape: bf16[4,4], index: 2, kind: input, shape index: {}]
  %s3 = inlined_call_operand.vmem [shape: f32[1,4], index: 3, kind: input, shape index: {}]
  %s4 = inlined_call_operand.vmem [shape: f32[1,4], index: 4, kind: input, shape index: {}]
  %s5 = inlined_call_operand.vmem [shape: bf16[64,4], index: 5, kind: output, shape index: {}]
  %s6 = sld [smem:[#allocation0]]
  $region61: #{_lambda_.13} parent=0
    _
  %s8 = ssub.s32 1, %s6
  %s9 = scalar_select 0, %s8, %s6
  loop: start=0, step=1, limit=4
  $region2: #{_lambda_.13} parent=0 // loop_pre_header
    _
  $region3: #{_lambda_.13} parent=0 // loop_header
    %s11 = sphi 0, %s15
    %p12 = scmp.ge.s32.totalorder %s11, 4
    %s18 = sphi 0, %s37
    %s19 = sphi 0, %s33
    %s20 = sphi 0, %s29
    %s21 = sphi 0, %s18
    %s22 = sphi 0, %s19
    %s23 = sphi 0, %s20
    %s24 = sphi 0, %s21
    %s25 = sphi 0, %s22
    %s26 = sphi 0, %s23
    %s42 = sphi 0, %s44
    %s45 = sphi 0, %s42
    %s46 = sphi 0, %s45
    %s62 = sphi 0, %s46
    %s70 = sphi 0, %s72
    %s73 = sphi 0, %s70
    %s74 = sphi 0, %s73
    %s90 = sphi 0, %s74
    %s98 = sphi 0, %s100
    %s101 = sphi 0, %s98
    %s102 = sphi 0, %s101
    %s118 = sphi 0, %s102
    %s124 = sphi 0, %s126
    %s127 = sphi 0, %s124
    %s128 = sphi 0, %s127
    %s144 = sphi 0, %s128
    %s150 = sphi 0, %s152
    %s153 = sphi 0, %s150
    %s154 = sphi 0, %s153
    %s170 = sphi 0, %s154
    %s178 = sphi 0, %s180
    %s181 = sphi 0, %s178
    %s182 = sphi 0, %s181
    %s198 = sphi 0, %s182
  $region4: #{_lambda_.13} parent=0 // loop_header_branch
    %14 = sbr.rel (%p12) target = $region8
  $region5: #{_lambda_.13} parent=0 // loop_body
    %s16 = ssub.s32 %s11, 1
    %s17 = ssub.s32 %s11, 2
    %s27 = sadd.s32 1, %s20
    %p28 = scmp.ge.s32.totalorder %s27, 1
    %s29 = scalar_select %p28, 0, %s27
    %s30 = sadd.s32 1, %s19
    %s31 = scalar_select %p28, %s30, %s19
    %p32 = scmp.ge.s32.totalorder %s31, 1
    %s33 = scalar_select %p32, 0, %s31
    %s34 = sadd.s32 1, %s18
    %s35 = scalar_select %p32, %s34, %s18
    %p36 = scmp.ge.s32.totalorder %s35, 2
    %s37 = scalar_select %p36, 0, %s35
    %s38 = ssub.s32 %s18, %s37
    %s39 = ssub.s32 %s20, %s29
    %s40 = sor.u32 %s38, %s39
    %p41 = scmp.eq.s32.totalorder %s40, 0
    %s43 = sadd.s32 %s42, 1
    %s44 = scalar_select %p41, %s42, %s43
    %p47 = pneg %p41
    %p48 = scmp.eq.s32.totalorder %s11, 1
    %p49 = por %p47, %p48
    %p50 = scmp.ne.s32.totalorder %s42, %s45
    %p51 = scmp.eq.s32.totalorder %s11, 0
    %p52 = por %p50, %p51
    %p53 = scmp.ne.s32.totalorder %s42, %s45
    %p54 = scmp.eq.s32.totalorder %s16, 1
    %p55 = por %p53, %p54
    %p56 = scmp.ne.s32.totalorder %s45, %s46
    %p57 = scmp.eq.s32.totalorder %s16, 0
    %p58 = por %p56, %p57
    %p59 = scmp.ne.s32.totalorder %s45, %s46
    %p60 = scmp.eq.s32.totalorder %s17, 1
    %p61 = por %p59, %p60
    %p63 = scmp.ne.s32.totalorder %s46, %s62
    %p64 = scmp.eq.s32.totalorder %s17, 0
    %p65 = por %p63, %p64
    %s66 = ssub.s32 %s20, %s29
    %s67 = ssub.s32 %s19, %s33
    %s68 = sor.u32 %s66, %s67
    %p69 = scmp.eq.s32.totalorder %s68, 0
    %s71 = sadd.s32 %s70, 1
    %s72 = scalar_select %p69, %s70, %s71
    %p75 = pneg %p69
    %p76 = scmp.eq.s32.totalorder %s11, 1
    %p77 = por %p75, %p76
    %p78 = scmp.ne.s32.totalorder %s70, %s73
    %p79 = scmp.eq.s32.totalorder %s11, 0
    %p80 = por %p78, %p79
    %p81 = scmp.ne.s32.totalorder %s70, %s73
    %p82 = scmp.eq.s32.totalorder %s16, 1
    %p83 = por %p81, %p82
    %p84 = scmp.ne.s32.totalorder %s73, %s74
    %p85 = scmp.eq.s32.totalorder %s16, 0
    %p86 = por %p84, %p85
    %p87 = scmp.ne.s32.totalorder %s73, %s74
    %p88 = scmp.eq.s32.totalorder %s17, 1
    %p89 = por %p87, %p88
    %p91 = scmp.ne.s32.totalorder %s74, %s90
    %p92 = scmp.eq.s32.totalorder %s17, 0
    %p93 = por %p91, %p92
    %s94 = ssub.s32 %s20, %s29
    %s95 = ssub.s32 %s19, %s33
    %s96 = sor.u32 %s94, %s95
    %p97 = scmp.eq.s32.totalorder %s96, 0
    %s99 = sadd.s32 %s98, 1
    %s100 = scalar_select %p97, %s98, %s99
    %p103 = pneg %p97
    %p104 = scmp.eq.s32.totalorder %s11, 1
    %p105 = por %p103, %p104
    %p106 = scmp.ne.s32.totalorder %s98, %s101
    %p107 = scmp.eq.s32.totalorder %s11, 0
    %p108 = por %p106, %p107
    %p109 = scmp.ne.s32.totalorder %s98, %s101
    %p110 = scmp.eq.s32.totalorder %s16, 1
    %p111 = por %p109, %p110
    %p112 = scmp.ne.s32.totalorder %s101, %s102
    %p113 = scmp.eq.s32.totalorder %s16, 0
    %p114 = por %p112, %p113
    %p115 = scmp.ne.s32.totalorder %s101, %s102
    %p116 = scmp.eq.s32.totalorder %s17, 1
    %p117 = por %p115, %p116
    %p119 = scmp.ne.s32.totalorder %s102, %s118
    %p120 = scmp.eq.s32.totalorder %s17, 0
    %p121 = por %p119, %p120
    %s122 = ssub.s32 %s19, %s33
    %p123 = scmp.eq.s32.totalorder %s122, 0
    %s125 = sadd.s32 %s124, 1
    %s126 = scalar_select %p123, %s124, %s125
    %p129 = pneg %p123
    %p130 = scmp.eq.s32.totalorder %s11, 1
    %p131 = por %p129, %p130
    %p132 = scmp.ne.s32.totalorder %s124, %s127
    %p133 = scmp.eq.s32.totalorder %s11, 0
    %p134 = por %p132, %p133
    %p135 = scmp.ne.s32.totalorder %s124, %s127
    %p136 = scmp.eq.s32.totalorder %s16, 1
    %p137 = por %p135, %p136
    %p138 = scmp.ne.s32.totalorder %s127, %s128
    %p139 = scmp.eq.s32.totalorder %s16, 0
    %p140 = por %p138, %p139
    %p141 = scmp.ne.s32.totalorder %s127, %s128
    %p142 = scmp.eq.s32.totalorder %s17, 1
    %p143 = por %p141, %p142
    %p145 = scmp.ne.s32.totalorder %s128, %s144
    %p146 = scmp.eq.s32.totalorder %s17, 0
    %p147 = por %p145, %p146
    %s148 = ssub.s32 %s19, %s33
    %p149 = scmp.eq.s32.totalorder %s148, 0
    %s151 = sadd.s32 %s150, 1
    %s152 = scalar_select %p149, %s150, %s151
    %p155 = pneg %p149
    %p156 = scmp.eq.s32.totalorder %s11, 1
    %p157 = por %p155, %p156
    %p158 = scmp.ne.s32.totalorder %s150, %s153
    %p159 = scmp.eq.s32.totalorder %s11, 0
    %p160 = por %p158, %p159
    %p161 = scmp.ne.s32.totalorder %s150, %s153
    %p162 = scmp.eq.s32.totalorder %s16, 1
    %p163 = por %p161, %p162
    %p164 = scmp.ne.s32.totalorder %s153, %s154
    %p165 = scmp.eq.s32.totalorder %s16, 0
    %p166 = por %p164, %p165
    %p167 = scmp.ne.s32.totalorder %s153, %s154
    %p168 = scmp.eq.s32.totalorder %s17, 1
    %p169 = por %p167, %p168
    %p171 = scmp.ne.s32.totalorder %s154, %s170
    %p172 = scmp.eq.s32.totalorder %s17, 0
    %p173 = por %p171, %p172
    %s174 = ssub.s32 %s18, %s37
    %s175 = ssub.s32 %s19, %s33
    %s176 = sor.u32 %s174, %s175
    %p177 = scmp.eq.s32.totalorder %s176, 0
    %s179 = sadd.s32 %s178, 1
    %s180 = scalar_select %p177, %s178, %s179
    %p183 = pneg %p177
    %p184 = scmp.eq.s32.totalorder %s11, 1
    %p185 = por %p183, %p184
    %p186 = scmp.ne.s32.totalorder %s178, %s181
    %p187 = scmp.eq.s32.totalorder %s11, 0
    %p188 = por %p186, %p187
    %p189 = scmp.ne.s32.totalorder %s178, %s181
    %p190 = scmp.eq.s32.totalorder %s16, 1
    %p191 = por %p189, %p190
    %p192 = scmp.ne.s32.totalorder %s181, %s182
    %p193 = scmp.eq.s32.totalorder %s16, 0
    %p194 = por %p192, %p193
    %p195 = scmp.ne.s32.totalorder %s181, %s182
    %p196 = scmp.eq.s32.totalorder %s17, 1
    %p197 = por %p195, %p196
    %p199 = scmp.ne.s32.totalorder %s182, %s198
    %p200 = scmp.eq.s32.totalorder %s17, 0
    %p201 = por %p199, %p200
    %p202 = scmp.le.s32.totalorder 1, %s11
    %p203 = scmp.lt.s32.totalorder %s11, 3
    %p204 = pnand %p202, %p203
    %p205 = pneg %p204
    // Predicated region
    $region9: #{_lambda_.13} parent=5 // pred_check
      _
    $region10: #{_lambda_.13} parent=5 // pred_check_branch
      %207 = sbr.rel (%p204) target = $region12
    $region11: #{_lambda_.13} parent=5 // pred_region
      %s208 = ssub.s32 %s11, 1
      // Predicated region
      $region13: #{_lambda_.13} parent=11 // pred_check
        %p209 = pneg %p86
      $region14: #{_lambda_.13} parent=11 // pred_check_branch
        %211 = sbr.rel (%p209) target = $region16
      $region15: #{_lambda_.13} parent=11 // pred_region
        %p212 = scmp.lt.s32.totalorder %s23, 0
        %s213 = scalar_select %p212, %s23, 0
        %p214 = scmp.lt.s32.totalorder %s22, 0
        %s215 = scalar_select %p214, %s22, 0
        %s216 = sadd.s32 %s215, %s213
        %s217 = smul.addr %s216, 2
        %s218 = scalar_lea.vmem %s1, %s217
      $region16: #{_lambda_.13} parent=11 // pred_fallthru
        _
      // Predicated region
      $region17: #{_lambda_.13} parent=11 // pred_check
        %p219 = pneg %p114
      $region18: #{_lambda_.13} parent=11 // pred_check_branch
        %221 = sbr.rel (%p219) target = $region20
      $region19: #{_lambda_.13} parent=11 // pred_region
        %p222 = scmp.lt.s32.totalorder %s23, 0
        %s223 = scalar_select %p222, %s23, 0
        %p224 = scmp.lt.s32.totalorder %s22, 0
        %s225 = scalar_select %p224, %s22, 0
        %s226 = sadd.s32 %s225, %s223
        %s227 = smul.addr %s226, 2
        %s228 = scalar_lea.vmem %s2, %s227
      $region20: #{_lambda_.13} parent=11 // pred_fallthru
        _
      // Predicated region
      $region21: #{_lambda_.13} parent=11 // pred_check
        %p229 = pneg %p140
      $region22: #{_lambda_.13} parent=11 // pred_check_branch
        %231 = sbr.rel (%p229) target = $region24
      $region23: #{_lambda_.13} parent=11 // pred_region
        %p232 = scmp.lt.s32.totalorder %s22, 0
        %s233 = scalar_select %p232, %s22, 0
        %s234 = scalar_lea.vmem %s3, %s233
      $region24: #{_lambda_.13} parent=11 // pred_fallthru
        _
      // Predicated region
      $region25: #{_lambda_.13} parent=11 // pred_check
        %p235 = pneg %p166
      $region26: #{_lambda_.13} parent=11 // pred_check_branch
        %237 = sbr.rel (%p235) target = $region28
      $region27: #{_lambda_.13} parent=11 // pred_region
        %p238 = scmp.lt.s32.totalorder %s22, 0
        %s239 = scalar_select %p238, %s22, 0
        %s240 = scalar_lea.vmem %s4, %s239
      $region28: #{_lambda_.13} parent=11 // pred_fallthru
        _
    $region12: #{_lambda_.13} parent=5 // pred_fallthru
      _
    %p241 = scmp.lt.s32.totalorder %s11, 2
    // Predicated region
    $region29: #{_lambda_.13} parent=5 // pred_check
      %p242 = pneg %p241
    $region30: #{_lambda_.13} parent=5 // pred_check_branch
      %244 = sbr.rel (%p242) target = $region32
    $region31: #{_lambda_.13} parent=5 // pred_region
      // Predicated region
      $region33: #{_lambda_.13} parent=31 // pred_check
        %p245 = pneg %p52
      $region34: #{_lambda_.13} parent=31 // pred_check_branch
        %247 = sbr.rel (%p245) target = $region36
      $region35: #{_lambda_.13} parent=31 // pred_region
        %s248 = smul.u32 4, %s18
        %p249 = scmp.lt.s32.totalorder %s248, 7
        %s250 = scalar_select %p249, %s248, 7
        %p251 = scmp.lt.s32.totalorder %s20, 0
        %s252 = scalar_select %p251, %s20, 0
        %s253 = sadd.s32 %s252, %s250
        %s254 = smul.addr %s253, 4
        %s255 = scalar_lea.vmem %s0, %s254
        %s256 = smul.u32 4, %s18
      $region36: #{_lambda_.13} parent=31 // pred_fallthru
        _
    $region32: #{_lambda_.13} parent=5 // pred_fallthru
      _
    %p257 = scmp.le.s32.totalorder 1, %s11
    %p258 = scmp.lt.s32.totalorder %s11, 3
    %p259 = pnand %p257, %p258
    %p260 = pneg %p259
    // Predicated region
    $region37: #{_lambda_.13} parent=5 // pred_check
      _
    $region38: #{_lambda_.13} parent=5 // pred_check_branch
      %262 = sbr.rel (%p259) target = $region40
    $region39: #{_lambda_.13} parent=5 // pred_region
      %s263 = ssub.s32 %s11, 1
      %s264 = smul.u32 4, %s21
      %p265 = scmp.lt.s32.totalorder %s264, 7
      %s266 = scalar_select %p265, %s264, 7
      %p267 = scmp.lt.s32.totalorder %s23, 0
      %s268 = scalar_select %p267, %s23, 0
      %s269 = sadd.s32 %s268, %s266
      %s270 = smul.addr %s269, 4
      %s271 = scalar_lea.vmem %s0, %s270
      %p272 = pneg %p58
      %p273 = pneg %p55
      %p274 = scmp.lt.s32.totalorder %s23, 0
      %s275 = scalar_select %p274, %s23, 0
      %p276 = scmp.lt.s32.totalorder %s22, 0
      %s277 = scalar_select %p276, %s22, 0
      %s278 = sadd.s32 %s277, %s275
      %s279 = smul.addr %s278, 2
      %s280 = scalar_lea.vmem %s1, %s279
      %p281 = pneg %p86
      %p282 = pneg %p83
      %p283 = scmp.lt.s32.totalorder %s23, 0
      %s284 = scalar_select %p283, %s23, 0
      %p285 = scmp.lt.s32.totalorder %s22, 0
      %s286 = scalar_select %p285, %s22, 0
      %s287 = sadd.s32 %s286, %s284
      %s288 = smul.addr %s287, 2
      %s289 = scalar_lea.vmem %s2, %s288
      %p290 = pneg %p114
      %p291 = pneg %p111
      %p292 = scmp.lt.s32.totalorder %s22, 0
      %s293 = scalar_select %p292, %s22, 0
      %s294 = scalar_lea.vmem %s3, %s293
      %p295 = pneg %p140
      %p296 = pneg %p137
      %p297 = scmp.lt.s32.totalorder %s22, 0
      %s298 = scalar_select %p297, %s22, 0
      %s299 = scalar_lea.vmem %s4, %s298
      %p300 = pneg %p166
      %p301 = pneg %p163
      %p302 = pneg %p194
      %p303 = pneg %p191
      %s304 = smul.u32 4, %s21
      %p305 = scmp.lt.s32.totalorder %s304, 7
      %s306 = scalar_select %p305, %s304, 7
      %p307 = scmp.lt.s32.totalorder %s22, 0
      %s308 = scalar_select %p307, %s22, 0
      %s309 = sadd.s32 %s308, %s306
      %s310 = smul.addr %s309, 4
      %s311 = scalar_lea.vmem %s5, %s310
      %s312 = smul.u32 4, %s21
      %p313 = scmp.lt.s32.totalorder %s312, 7
      %s314 = scalar_select %p313, %s312, 7
      %p315 = scmp.lt.s32.totalorder %s23, 0
      %s316 = scalar_select %p315, %s23, 0
      %s317 = sadd.s32 %s316, %s314
      %s318 = smul.addr %s317, 4
      %s319 = scalar_lea.vmem %s0, %s318
      %s320 = smul.u32 4, %s21
      %p321 = scmp.lt.s32.totalorder %s23, 0
      %s322 = scalar_select %p321, %s23, 0
      %p323 = scmp.lt.s32.totalorder %s22, 0
      %s324 = scalar_select %p323, %s22, 0
      %s325 = sadd.s32 %s324, %s322
      %s326 = smul.addr %s325, 2
      %s327 = scalar_lea.vmem %s1, %s326
      %p328 = scmp.lt.s32.totalorder %s23, 0
      %s329 = scalar_select %p328, %s23, 0
      %p330 = scmp.lt.s32.totalorder %s22, 0
      %s331 = scalar_select %p330, %s22, 0
      %s332 = sadd.s32 %s331, %s329
      %s333 = smul.addr %s332, 2
      %s334 = scalar_lea.vmem %s2, %s333
      %p335 = scmp.lt.s32.totalorder %s22, 0
      %s336 = scalar_select %p335, %s22, 0
      %s337 = scalar_lea.vmem %s3, %s336
      %p338 = scmp.lt.s32.totalorder %s22, 0
      %s339 = scalar_select %p338, %s22, 0
      %s340 = scalar_lea.vmem %s4, %s339
      %s341 = smul.u32 4, %s21
      %p342 = scmp.lt.s32.totalorder %s341, 7
      %s343 = scalar_select %p342, %s341, 7
      %p344 = scmp.lt.s32.totalorder %s22, 0
      %s345 = scalar_select %p344, %s22, 0
      %s346 = sadd.s32 %s345, %s343
      %s347 = smul.addr %s346, 4
      %s348 = scalar_lea.vmem %s5, %s347
      %s349 = smul.u32 4, %s21
      %p351 = scmp.eq.s32.totalorder %s23, 0
      // Predicated region
      $region41: #{_lambda_.13} parent=39 // pred_check
        %p352 = pneg %p351
      $region42: #{_lambda_.13} parent=39 // pred_check_branch
        %354 = sbr.rel (%p352) target = $region44
      $region43: #{_lambda_.13} parent=39 // pred_region
        %vm355 = vcmask 31744
        %356 = vst.msk [vmem:[#allocation2] sm:$0xff] %vm355, 0.0
        %357 = vst.msk [vmem:[#allocation2 + $0x8] sm:$0xff] %vm355, 0.0
        %358 = vst.msk [vmem:[#allocation2 + $0x10] sm:$0xff] %vm355, 0.0
        %359 = vst.msk [vmem:[#allocation2 + $0x18] sm:$0xff] %vm355, 0.0
        %360 = vst.msk [vmem:[#allocation3] sm:$0xff] %vm355, 0.0
        %361 = vst.msk [vmem:[#allocation3 + $0x8] sm:$0xff] %vm355, 0.0
        %362 = vst.msk [vmem:[#allocation3 + $0x10] sm:$0xff] %vm355, 0.0
        %363 = vst.msk [vmem:[#allocation3 + $0x18] sm:$0xff] %vm355, 0.0
      $region44: #{_lambda_.13} parent=39 // pred_fallthru
        _
      %v364 = vld [vmem:[%s319] sm:$0xf]
      %v365 = vld [vmem:[%s319 + $0x4] sm:$0xf]
      %v366 = vld [vmem:[%s319 + $0x8] sm:$0xf]
      %v367 = vld [vmem:[%s319 + $0xc] sm:$0xf]
      %v368 = vld [vmem:[#allocation2] sm:$0xff]
      %v369 = vld [vmem:[#allocation2 + $0x8] sm:$0xff]
      %v370 = vld [vmem:[#allocation2 + $0x10] sm:$0xff]
      %v371 = vld [vmem:[#allocation2 + $0x18] sm:$0xff]
      %v372 = vld [vmem:[%s327] sm:$0x3]
      %v377 = vunpack.c.l.b16 %v364
      %v378 = vunpack.c.l.b16 %v365
      %v379 = vunpack.c.l.b16 %v366
      %v380 = vunpack.c.l.b16 %v367
      %v381 = vpack.c.b16 %v378, %v377
      %v382 = vpack.c.b16 %v380, %v379
      %vm383 = vcmask 31744
      %v385 = vsel %vm383, %v381, 0
      %v388 = vsel %vm383, %v382, 0
      %vm390 = vcmask 1041408
      %v392 = vsel %vm390, %v372, 0
      %394 = vmatprep.subr.bf16.mxu0 0
      %395 = vmatpush1.bf16.msra.mxu0 %v392
      %396 = vmatprep.subr.bf16.mxu0 0
      %397 = vmatpush1.bf16.msra.mxu0 0
      %398 = vmatprep.subr.bf16.mxu0 0
      %399 = vmatpush1.bf16.msra.mxu0 0
      %400 = vmatprep.subr.bf16.mxu0 0
      %401 = vmatpush1.bf16.msra.mxu0 0
      %402 = vmatprep.subr.bf16.mxu0 0
      %403 = vmatpush1.bf16.msra.mxu0 0
      %404 = vmatprep.subr.bf16.mxu0 0
      %405 = vmatpush1.bf16.msra.mxu0 0
      %406 = vmatprep.subr.bf16.mxu0 0
      %407 = vmatpush1.bf16.msra.mxu0 0
      %408 = vmatprep.subr.bf16.mxu0 0
      %409 = vmatpush1.bf16.msra.mxu0 0
      %410 = vmatprep.subr.bf16.mxu0 0
      %411 = vmatpush1.bf16.msra.mxu0 0
      %412 = vmatprep.subr.bf16.mxu0 0
      %413 = vmatpush1.bf16.msra.mxu0 0
      %414 = vmatprep.subr.bf16.mxu0 0
      %415 = vmatpush1.bf16.msra.mxu0 0
      %416 = vmatprep.subr.bf16.mxu0 0
      %417 = vmatpush1.bf16.msra.mxu0 0
      %418 = vmatprep.subr.bf16.mxu0 0
      %419 = vmatpush1.bf16.msra.mxu0 0
      %420 = vmatprep.subr.bf16.mxu0 0
      %421 = vmatpush1.bf16.msra.mxu0 0
      %422 = vmatprep.subr.bf16.mxu0 0
      %423 = vmatpush1.bf16.msra.mxu0 0
      %424 = vmatprep.subr.bf16.mxu0 0
      %425 = vmatpush1.bf16.msra.mxu0 0
      %426 = vmatprep.mubr.bf16.mxu0 0
      %427 = vmatmul.mubr.bf16.gmra.mrb[0].mxu0 %v385
      %v428 = vpop.f32.mrb[0].mxu0
      %v429 = vadd.f32 0.0, %v428
      %v430 = vpop.f32.mrb[0].mxu0
      %v431 = vpop.f32.mrb[0].mxu0
      %v432 = vadd.f32 0.0, %v431
      %v433 = vpop.f32.mrb[0].mxu0
      %434 = vmatprep.mubr.bf16.mxu0 0
      %435 = vmatmul.mubr.bf16.gmra.mrb[0].mxu0 %v388
      %v436 = vpop.f32.mrb[0].mxu0
      %v437 = vadd.f32 0.0, %v436
      %v438 = vpop.f32.mrb[0].mxu0
      %v439 = vpop.f32.mrb[0].mxu0
      %v440 = vadd.f32 0.0, %v439
      %v441 = vpop.f32.mrb[0].mxu0
      %442 = vdwg.mxu0
      %v443 = vadd.f32 %v368, %v429
      %v444 = vadd.f32 %v369, %v432
      %v445 = vadd.f32 %v370, %v437
      %v446 = vadd.f32 %v371, %v440
      %447 = vst.msk [vmem:[#allocation2] sm:$0xff] %vm383, %v443
      %448 = vst.msk [vmem:[#allocation2 + $0x8] sm:$0xff] %vm383, %v444
      %449 = vst.msk [vmem:[#allocation2 + $0x10] sm:$0xff] %vm383, %v445
      %450 = vst.msk [vmem:[#allocation2 + $0x18] sm:$0xff] %vm383, %v446
      %v451 = vld [vmem:[#allocation3] sm:$0xff]
      %v452 = vld [vmem:[#allocation3 + $0x8] sm:$0xff]
      %v453 = vld [vmem:[#allocation3 + $0x10] sm:$0xff]
      %v454 = vld [vmem:[#allocation3 + $0x18] sm:$0xff]
      %v455 = vld [vmem:[%s334] sm:$0x3]
      %v457 = vsel %vm390, %v455, 0
      %459 = vmatprep.subr.bf16.mxu0 0
      %460 = vmatpush1.bf16.msra.mxu0 %v457
      %461 = vmatprep.subr.bf16.mxu0 0
      %462 = vmatpush1.bf16.msra.mxu0 0
      %463 = vmatprep.subr.bf16.mxu0 0
      %464 = vmatpush1.bf16.msra.mxu0 0
      %465 = vmatprep.subr.bf16.mxu0 0
      %466 = vmatpush1.bf16.msra.mxu0 0
      %467 = vmatprep.subr.bf16.mxu0 0
      %468 = vmatpush1.bf16.msra.mxu0 0
      %469 = vmatprep.subr.bf16.mxu0 0
      %470 = vmatpush1.bf16.msra.mxu0 0
      %471 = vmatprep.subr.bf16.mxu0 0
      %472 = vmatpush1.bf16.msra.mxu0 0
      %473 = vmatprep.subr.bf16.mxu0 0
      %474 = vmatpush1.bf16.msra.mxu0 0
      %475 = vmatprep.subr.bf16.mxu0 0
      %476 = vmatpush1.bf16.msra.mxu0 0
      %477 = vmatprep.subr.bf16.mxu0 0
      %478 = vmatpush1.bf16.msra.mxu0 0
      %479 = vmatprep.subr.bf16.mxu0 0
      %480 = vmatpush1.bf16.msra.mxu0 0
      %481 = vmatprep.subr.bf16.mxu0 0
      %482 = vmatpush1.bf16.msra.mxu0 0
      %483 = vmatprep.subr.bf16.mxu0 0
      %484 = vmatpush1.bf16.msra.mxu0 0
      %485 = vmatprep.subr.bf16.mxu0 0
      %486 = vmatpush1.bf16.msra.mxu0 0
      %487 = vmatprep.subr.bf16.mxu0 0
      %488 = vmatpush1.bf16.msra.mxu0 0
      %489 = vmatprep.subr.bf16.mxu0 0
      %490 = vmatpush1.bf16.msra.mxu0 0
      %491 = vmatprep.mubr.bf16.mxu0 0
      %492 = vmatmul.mubr.bf16.gmra.mrb[0].mxu0 %v385
      %v493 = vpop.f32.mrb[0].mxu0
      %v494 = vadd.f32 0.0, %v493
      %v495 = vpop.f32.mrb[0].mxu0
      %v496 = vpop.f32.mrb[0].mxu0
      %v497 = vadd.f32 0.0, %v496
      %v498 = vpop.f32.mrb[0].mxu0
      %499 = vmatprep.mubr.bf16.mxu0 0
      %500 = vmatmul.mubr.bf16.gmra.mrb[0].mxu0 %v388
      %v501 = vpop.f32.mrb[0].mxu0
      %v502 = vadd.f32 0.0, %v501
      %v503 = vpop.f32.mrb[0].mxu0
      %v504 = vpop.f32.mrb[0].mxu0
      %v505 = vadd.f32 0.0, %v504
      %v506 = vpop.f32.mrb[0].mxu0
      %507 = vdwg.mxu0
      %v508 = vadd.f32 %v451, %v494
      %v509 = vadd.f32 %v452, %v497
      %v510 = vadd.f32 %v453, %v502
      %v511 = vadd.f32 %v454, %v505
      %512 = vst.msk [vmem:[#allocation3] sm:$0xff] %vm383, %v508
      %513 = vst.msk [vmem:[#allocation3 + $0x8] sm:$0xff] %vm383, %v509
      %514 = vst.msk [vmem:[#allocation3 + $0x10] sm:$0xff] %vm383, %v510
      %515 = vst.msk [vmem:[#allocation3 + $0x18] sm:$0xff] %vm383, %v511
      // Predicated region
      $region45: #{_lambda_.13} parent=39 // pred_check
        %p516 = pneg %p351
      $region46: #{_lambda_.13} parent=39 // pred_check_branch
        %518 = sbr.rel (%p516) target = $region48
      $region47: #{_lambda_.13} parent=39 // pred_region
        %v519 = vld [vmem:[#allocation2] sm:$0xff]
        %v520 = vld [vmem:[#allocation2 + $0x8] sm:$0xff]
        %v521 = vld [vmem:[#allocation2 + $0x10] sm:$0xff]
        %v522 = vld [vmem:[#allocation2 + $0x18] sm:$0xff]
        %v523 = vld [vmem:[%s337] sm:$0x1]
        %v525 = vlaneseq
        %v526 = vshrl.u32 %v525, 7
        %v527 = vsub.s32 0, %v526
        %v528 = vrot.slane %v523, %v527
        %v530 = vadd.f32 %v519, %v528
        %v531 = vadd.f32 %v520, %v528
        %v532 = vadd.f32 %v521, %v528
        %v533 = vadd.f32 %v522, %v528
        %v534 = vld [vmem:[#allocation3] sm:$0xff]
        %v535 = vld [vmem:[#allocation3 + $0x8] sm:$0xff]
        %v536 = vld [vmem:[#allocation3 + $0x10] sm:$0xff]
        %v537 = vld [vmem:[#allocation3 + $0x18] sm:$0xff]
        %v538 = vld [vmem:[%s340] sm:$0x1]
        %v540 = vlaneseq
        %v541 = vshrl.u32 %v540, 7
        %v542 = vsub.s32 0, %v541
        %v543 = vrot.slane %v538, %v542
        %v545 = vadd.f32 %v534, %v543
        %v546 = vadd.f32 %v535, %v543
        %v547 = vadd.f32 %v536, %v543
        %v548 = vadd.f32 %v537, %v543
        %v549 = vxor.u32 %v545, 2147483648
        %v550 = vxor.u32 %v546, 2147483648
        %v551 = vxor.u32 %v547, 2147483648
        %v552 = vxor.u32 %v548, 2147483648
        %v553 = vmul.f32 %v549, 1.442695
        %v554 = vpow.pop %v553
        %v555 = vmul.f32 %v550, 1.442695
        %v556 = vpow.pop %v555
        %v557 = vmul.f32 %v551, 1.442695
        %v558 = vpow.pop %v557
        %v559 = vmul.f32 %v552, 1.442695
        %v560 = vpow.pop %v559
        %v561 = vadd.f32 %v554, 1.0
        %v562 = vadd.f32 %v556, 1.0
        %v563 = vadd.f32 %v558, 1.0
        %v564 = vadd.f32 %v560, 1.0
        %v565 = vrcp.pop %v561
        %v566 = vmul.f32 1.0, %v565
        %v567 = vrcp.pop %v562
        %v568 = vmul.f32 1.0, %v567
        %v569 = vrcp.pop %v563
        %v570 = vmul.f32 1.0, %v569
        %v571 = vrcp.pop %v564
        %v572 = vmul.f32 1.0, %v571
        %v573 = vmul.f32 %v530, %v566
        %v574 = vmul.f32 %v531, %v568
        %v575 = vmul.f32 %v532, %v570
        %v576 = vmul.f32 %v533, %v572
        %v577 = vpack.c.bf16 %v574, %v573
        %v578 = vpack.c.bf16 %v576, %v575
        %v581 = vunpack.c.l.b16 %v577
        %v582 = vunpack.c.h.b16 %v577
        %v583 = vunpack.c.l.b16 %v578
        %v584 = vunpack.c.h.b16 %v578
        %v585 = vpack.c.b16 %v581, %v581
        %v586 = vpack.c.b16 %v582, %v582
        %v587 = vpack.c.b16 %v583, %v583
        %v588 = vpack.c.b16 %v584, %v584
        %vm593 = vcmask 27648
        %594 = vst.msk [vmem:[%s348] sm:$0xf] %vm593, %v585
        %595 = vst.msk [vmem:[%s348 + $0x4] sm:$0xf] %vm593, %v586
        %596 = vst.msk [vmem:[%s348 + $0x8] sm:$0xf] %vm593, %v587
        %597 = vst.msk [vmem:[%s348 + $0xc] sm:$0xf] %vm593, %v588
      $region48: #{_lambda_.13} parent=39 // pred_fallthru
        _
      %s598 = smul.u32 4, %s21
      %p599 = scmp.lt.s32.totalorder %s598, 7
      %s600 = scalar_select %p599, %s598, 7
      %p601 = scmp.lt.s32.totalorder %s22, 0
      %s602 = scalar_select %p601, %s22, 0
      %s603 = sadd.s32 %s602, %s600
      %s604 = smul.addr %s603, 4
      %s605 = scalar_lea.vmem %s5, %s604
      // Predicated region
      $region49: #{_lambda_.13} parent=39 // pred_check
        %p606 = pneg %p191
      $region50: #{_lambda_.13} parent=39 // pred_check_branch
        %608 = sbr.rel (%p606) target = $region52
      $region51: #{_lambda_.13} parent=39 // pred_region
        %s609 = smul.u32 4, %s21
      $region52: #{_lambda_.13} parent=39 // pred_fallthru
        _
    $region40: #{_lambda_.13} parent=5 // pred_fallthru
      _
    %p610 = scmp.le.s32.totalorder 2, %s11
    // Predicated region
    $region53: #{_lambda_.13} parent=5 // pred_check
      %p611 = pneg %p610
    $region54: #{_lambda_.13} parent=5 // pred_check_branch
      %613 = sbr.rel (%p611) target = $region56
    $region55: #{_lambda_.13} parent=5 // pred_region
      %s614 = ssub.s32 %s11, 2
      // Predicated region
      $region57: #{_lambda_.13} parent=55 // pred_check
        %p615 = pneg %p197
      $region58: #{_lambda_.13} parent=55 // pred_check_branch
        %617 = sbr.rel (%p615) target = $region60
      $region59: #{_lambda_.13} parent=55 // pred_region
        %s618 = smul.u32 4, %s24
        %p619 = scmp.lt.s32.totalorder %s618, 7
        %s620 = scalar_select %p619, %s618, 7
        %p621 = scmp.lt.s32.totalorder %s25, 0
        %s622 = scalar_select %p621, %s25, 0
        %s623 = sadd.s32 %s622, %s620
        %s624 = smul.addr %s623, 4
        %s625 = scalar_lea.vmem %s5, %s624
      $region60: #{_lambda_.13} parent=55 // pred_fallthru
        _
    $region56: #{_lambda_.13} parent=5 // pred_fallthru
      _
  $region6: #{_lambda_.13} parent=0 // loop_footer
    %s15 = sadd.s32 1, %s11
  $region7: #{_lambda_.13} parent=0 // loop_footer_branch
    %10 = sbr.rel target = $region3
  $region8: #{_lambda_.13} parent=0 // loop_exit
    _

// kernel: _lambda_.12
$region0: #{_lambda_.12}
  #allocation0 [shape = 'u32[]', space=smem, size = 0x4, offset = 0x4, fixed_abs, tag = 'smem constant byte address 0x4 - core index']
  #allocation1 [shape = 'u32[144,128]{1,0:T(1,128)}', space=vmem, size = 0x12000, scoped, tag = 'internal scratch']
  #allocation2 [shape = 'f32[62,4]{1,0:T(8,128)}', space=vmem, size = 0x8000, scoped, tag = 'scratch operand']
  %s0 = inlined_call_operand.vmem [shape: bf16[62,4], index: 0, kind: input, shape index: {}]
  %s1 = inlined_call_operand.vmem [shape: bf16[4,4], index: 1, kind: input, shape index: {}]
  %s2 = inlined_call_operand.vmem [shape: f32[1,4], index: 2, kind: input, shape index: {}]
  %s3 = inlined_call_operand.vmem [shape: bf16[62,4], index: 3, kind: output, shape index: {}]
  %s4 = sld [smem:[#allocation0]]
  $region30: #{_lambda_.12} parent=0
    _
  %s6 = ssub.s32 1, %s4
  %s7 = scalar_select 0, %s6, %s4
  // Predicated region
  $region2: #{_lambda_.12} parent=0 // pred_check
    _
  $region3: #{_lambda_.12} parent=0 // pred_check_branch
    %9 = sbr.rel (0) target = $region5
  $region4: #{_lambda_.12} parent=0 // pred_region
    _
  $region5: #{_lambda_.12} parent=0 // pred_fallthru
    _
  // Predicated region
  $region6: #{_lambda_.12} parent=0 // pred_check
    _
  $region7: #{_lambda_.12} parent=0 // pred_check_branch
    %11 = sbr.rel (0) target = $region9
  $region8: #{_lambda_.12} parent=0 // pred_region
    _
  $region9: #{_lambda_.12} parent=0 // pred_fallthru
    _
  // Predicated region
  $region10: #{_lambda_.12} parent=0 // pred_check
    _
  $region11: #{_lambda_.12} parent=0 // pred_check_branch
    %13 = sbr.rel (0) target = $region13
  $region12: #{_lambda_.12} parent=0 // pred_region
    _
  $region13: #{_lambda_.12} parent=0 // pred_fallthru
    _
  %p15 = scmp.eq.s32.totalorder 0, 0
  // Predicated region
  $region14: #{_lambda_.12} parent=0 // pred_check
    %p16 = pneg %p15
  $region15: #{_lambda_.12} parent=0 // pred_check_branch
    %18 = sbr.rel (%p16) target = $region17
  $region16: #{_lambda_.12} parent=0 // pred_region
    %vm19 = vcmask 31744
    %20 = vst.msk [vmem:[#allocation2] sm:$0xff] %vm19, 0.0
    %21 = vst.msk [vmem:[#allocation2 + $0x8] sm:$0xff] %vm19, 0.0
    %22 = vst.msk [vmem:[#allocation2 + $0x10] sm:$0xff] %vm19, 0.0
    %23 = vst.msk [vmem:[#allocation2 + $0x18] sm:$0xff] %vm19, 0.0
    %24 = vst.msk [vmem:[#allocation2 + $0x20] sm:$0xff] %vm19, 0.0
    %25 = vst.msk [vmem:[#allocation2 + $0x28] sm:$0xff] %vm19, 0.0
    %26 = vst.msk [vmem:[#allocation2 + $0x30] sm:$0xff] %vm19, 0.0
    %vm27 = vcmask 29696
    %28 = vst.msk [vmem:[#allocation2 + $0x38] sm:$0x3f] %vm27, 0.0
  $region17: #{_lambda_.12} parent=0 // pred_fallthru
    _
  %v29 = vld [vmem:[#allocation2] sm:$0xff]
  %v30 = vld [vmem:[#allocation2 + $0x8] sm:$0xff]
  %v31 = vld [vmem:[#allocation2 + $0x10] sm:$0xff]
  %v32 = vld [vmem:[#allocation2 + $0x18] sm:$0xff]
  %v33 = vld [vmem:[#allocation2 + $0x20] sm:$0xff]
  %v34 = vld [vmem:[#allocation2 + $0x28] sm:$0xff]
  %v35 = vld [vmem:[#allocation2 + $0x30] sm:$0xff]
  %v36 = vld [vmem:[#allocation2 + $0x38] sm:$0x3f]
  %v37 = vld [vmem:[%s0] sm:$0xf]
  %v38 = vld [vmem:[%s0 + $0x4] sm:$0xf]
  %v39 = vld [vmem:[%s0 + $0x8] sm:$0xf]
  %v40 = vld [vmem:[%s0 + $0xc] sm:$0xf]
  %v41 = vld [vmem:[%s0 + $0x10] sm:$0xf]
  %v42 = vld [vmem:[%s0 + $0x14] sm:$0xf]
  %v43 = vld [vmem:[%s0 + $0x18] sm:$0xf]
  %v44 = vld [vmem:[%s0 + $0x1c] sm:$0x7]
  %v45 = vld [vmem:[%s1] sm:$0x3]
  %v54 = vunpack.c.l.b16 %v37
  %v55 = vunpack.c.l.b16 %v38
  %v56 = vunpack.c.l.b16 %v39
  %v57 = vunpack.c.l.b16 %v40
  %v58 = vunpack.c.l.b16 %v41
  %v59 = vunpack.c.l.b16 %v42
  %v60 = vunpack.c.l.b16 %v43
  %v61 = vunpack.c.l.b16 %v44
  %v62 = vpack.c.b16 %v55, %v54
  %v63 = vpack.c.b16 %v57, %v56
  %v64 = vpack.c.b16 %v59, %v58
  %v65 = vpack.c.b16 %v61, %v60
  %vm66 = vcmask 31744
  %v68 = vsel %vm66, %v62, 0
  %v71 = vsel %vm66, %v63, 0
  %v74 = vsel %vm66, %v64, 0
  %v77 = vsel %vm66, %v65, 0
  %vm79 = vcmask 1041408
  %v81 = vsel %vm79, %v45, 0
  %83 = vmatprep.subr.bf16.mxu0 0
  %84 = vmatpush1.bf16.msra.mxu0 %v81
  %85 = vmatprep.subr.bf16.mxu0 0
  %86 = vmatpush1.bf16.msra.mxu0 0
  %87 = vmatprep.subr.bf16.mxu0 0
  %88 = vmatpush1.bf16.msra.mxu0 0
  %89 = vmatprep.subr.bf16.mxu0 0
  %90 = vmatpush1.bf16.msra.mxu0 0
  %91 = vmatprep.subr.bf16.mxu0 0
  %92 = vmatpush1.bf16.msra.mxu0 0
  %93 = vmatprep.subr.bf16.mxu0 0
  %94 = vmatpush1.bf16.msra.mxu0 0
  %95 = vmatprep.subr.bf16.mxu0 0
  %96 = vmatpush1.bf16.msra.mxu0 0
  %97 = vmatprep.subr.bf16.mxu0 0
  %98 = vmatpush1.bf16.msra.mxu0 0
  %99 = vmatprep.subr.bf16.mxu0 0
  %100 = vmatpush1.bf16.msra.mxu0 0
  %101 = vmatprep.subr.bf16.mxu0 0
  %102 = vmatpush1.bf16.msra.mxu0 0
  %103 = vmatprep.subr.bf16.mxu0 0
  %104 = vmatpush1.bf16.msra.mxu0 0
  %105 = vmatprep.subr.bf16.mxu0 0
  %106 = vmatpush1.bf16.msra.mxu0 0
  %107 = vmatprep.subr.bf16.mxu0 0
  %108 = vmatpush1.bf16.msra.mxu0 0
  %109 = vmatprep.subr.bf16.mxu0 0
  %110 = vmatpush1.bf16.msra.mxu0 0
  %111 = vmatprep.subr.bf16.mxu0 0
  %112 = vmatpush1.bf16.msra.mxu0 0
  %113 = vmatprep.subr.bf16.mxu0 0
  %114 = vmatpush1.bf16.msra.mxu0 0
  %115 = vmatprep.mubr.bf16.mxu0 0
  %116 = vmatmul.mubr.bf16.gmra.mrb[0].mxu0 %v68
  %v117 = vpop.f32.mrb[0].mxu0
  %v118 = vadd.f32 0.0, %v117
  %v119 = vpop.f32.mrb[0].mxu0
  %v120 = vpop.f32.mrb[0].mxu0
  %v121 = vadd.f32 0.0, %v120
  %v122 = vpop.f32.mrb[0].mxu0
  %123 = vmatprep.mubr.bf16.mxu0 0
  %124 = vmatmul.mubr.bf16.gmra.mrb[0].mxu0 %v71
  %v125 = vpop.f32.mrb[0].mxu0
  %v126 = vadd.f32 0.0, %v125
  %v127 = vpop.f32.mrb[0].mxu0
  %v128 = vpop.f32.mrb[0].mxu0
  %v129 = vadd.f32 0.0, %v128
  %v130 = vpop.f32.mrb[0].mxu0
  %131 = vmatprep.mubr.bf16.mxu0 0
  %132 = vmatmul.mubr.bf16.gmra.mrb[0].mxu0 %v74
  %v133 = vpop.f32.mrb[0].mxu0
  %v134 = vadd.f32 0.0, %v133
  %v135 = vpop.f32.mrb[0].mxu0
  %v136 = vpop.f32.mrb[0].mxu0
  %v137 = vadd.f32 0.0, %v136
  %v138 = vpop.f32.mrb[0].mxu0
  %139 = vmatprep.mubr.bf16.mxu0 0
  %140 = vmatmul.mubr.bf16.gmra.mrb[0].mxu0 %v77
  %v141 = vpop.f32.mrb[0].mxu0
  %v142 = vadd.f32 0.0, %v141
  %v143 = vpop.f32.mrb[0].mxu0
  %v144 = vpop.f32.mrb[0].mxu0
  %v145 = vadd.f32 0.0, %v144
  %v146 = vpop.f32.mrb[0].mxu0
  %147 = vdwg.mxu0
  %v148 = vadd.f32 %v29, %v118
  %v149 = vadd.f32 %v30, %v121
  %v150 = vadd.f32 %v31, %v126
  %v151 = vadd.f32 %v32, %v129
  %v152 = vadd.f32 %v33, %v134
  %v153 = vadd.f32 %v34, %v137
  %v154 = vadd.f32 %v35, %v142
  %v155 = vadd.f32 %v36, %v145
  %156 = vst.msk [vmem:[#allocation2] sm:$0xff] %vm66, %v148
  %157 = vst.msk [vmem:[#allocation2 + $0x8] sm:$0xff] %vm66, %v149
  %158 = vst.msk [vmem:[#allocation2 + $0x10] sm:$0xff] %vm66, %v150
  %159 = vst.msk [vmem:[#allocation2 + $0x18] sm:$0xff] %vm66, %v151
  %160 = vst.msk [vmem:[#allocation2 + $0x20] sm:$0xff] %vm66, %v152
  %161 = vst.msk [vmem:[#allocation2 + $0x28] sm:$0xff] %vm66, %v153
  %162 = vst.msk [vmem:[#allocation2 + $0x30] sm:$0xff] %vm66, %v154
  %vm163 = vcmask 29696
  %164 = vst.msk [vmem:[#allocation2 + $0x38] sm:$0x3f] %vm163, %v155
  // Predicated region
  $region18: #{_lambda_.12} parent=0 // pred_check
    %p165 = pneg %p15
  $region19: #{_lambda_.12} parent=0 // pred_check_branch
    %167 = sbr.rel (%p165) target = $region21
  $region20: #{_lambda_.12} parent=0 // pred_region
    %v168 = vld [vmem:[#allocation2] sm:$0xff]
    %v169 = vld [vmem:[#allocation2 + $0x8] sm:$0xff]
    %v170 = vld [vmem:[#allocation2 + $0x10] sm:$0xff]
    %v171 = vld [vmem:[#allocation2 + $0x18] sm:$0xff]
    %v172 = vld [vmem:[#allocation2 + $0x20] sm:$0xff]
    %v173 = vld [vmem:[#allocation2 + $0x28] sm:$0xff]
    %v174 = vld [vmem:[#allocation2 + $0x30] sm:$0xff]
    %v175 = vld [vmem:[#allocation2 + $0x38] sm:$0x3f]
    %v176 = vld [vmem:[%s2] sm:$0x1]
    %v178 = vlaneseq
    %v179 = vshrl.u32 %v178, 7
    %v180 = vsub.s32 0, %v179
    %v181 = vrot.slane %v176, %v180
    %v183 = vadd.f32 %v168, %v181
    %v184 = vadd.f32 %v169, %v181
    %v185 = vadd.f32 %v170, %v181
    %v186 = vadd.f32 %v171, %v181
    %v187 = vadd.f32 %v172, %v181
    %v188 = vadd.f32 %v173, %v181
    %v189 = vadd.f32 %v174, %v181
    %v190 = vadd.f32 %v175, %v181
    %v191 = vmax.f32 %v183, 0.0
    %v192 = vmax.f32 %v184, 0.0
    %v193 = vmax.f32 %v185, 0.0
    %v194 = vmax.f32 %v186, 0.0
    %v195 = vmax.f32 %v187, 0.0
    %v196 = vmax.f32 %v188, 0.0
    %v197 = vmax.f32 %v189, 0.0
    %v198 = vmax.f32 %v190, 0.0
    %v199 = vpack.c.bf16 %v192, %v191
    %v200 = vpack.c.bf16 %v194, %v193
    %v201 = vpack.c.bf16 %v196, %v195
    %v202 = vpack.c.bf16 %v198, %v197
    %v207 = vunpack.c.l.b16 %v199
    %v208 = vunpack.c.h.b16 %v199
    %v209 = vunpack.c.l.b16 %v200
    %v210 = vunpack.c.h.b16 %v200
    %v211 = vunpack.c.l.b16 %v201
    %v212 = vunpack.c.h.b16 %v201
    %v213 = vunpack.c.l.b16 %v202
    %v214 = vunpack.c.h.b16 %v202
    %v215 = vpack.c.b16 %v207, %v207
    %v216 = vpack.c.b16 %v208, %v208
    %v217 = vpack.c.b16 %v209, %v209
    %v218 = vpack.c.b16 %v210, %v210
    %v219 = vpack.c.b16 %v211, %v211
    %v220 = vpack.c.b16 %v212, %v212
    %v221 = vpack.c.b16 %v213, %v213
    %v222 = vpack.c.b16 %v214, %v214
    %vm231 = vcmask 27648
    %232 = vst.msk [vmem:[%s3] sm:$0xf] %vm231, %v215
    %233 = vst.msk [vmem:[%s3 + $0x4] sm:$0xf] %vm231, %v216
    %234 = vst.msk [vmem:[%s3 + $0x8] sm:$0xf] %vm231, %v217
    %235 = vst.msk [vmem:[%s3 + $0xc] sm:$0xf] %vm231, %v218
    %236 = vst.msk [vmem:[%s3 + $0x10] sm:$0xf] %vm231, %v219
    %237 = vst.msk [vmem:[%s3 + $0x14] sm:$0xf] %vm231, %v220
    %238 = vst.msk [vmem:[%s3 + $0x18] sm:$0xf] %vm231, %v221
    %vm239 = vcmask 26624
    %240 = vst.msk [vmem:[%s3 + $0x1c] sm:$0x7] %vm239, %v222
  $region21: #{_lambda_.12} parent=0 // pred_fallthru
    _
  // Predicated region
  $region22: #{_lambda_.12} parent=0 // pred_check
    _
  $region23: #{_lambda_.12} parent=0 // pred_check_branch
    %242 = sbr.rel (0) target = $region25
  $region24: #{_lambda_.12} parent=0 // pred_region
    _
  $region25: #{_lambda_.12} parent=0 // pred_fallthru
    _
  // Predicated region
  $region26: #{_lambda_.12} parent=0 // pred_check
    _
  $region27: #{_lambda_.12} parent=0 // pred_check_branch
    %244 = sbr.rel (0) target = $region29
  $region28: #{_lambda_.12} parent=0 // pred_region
    _
  $region29: #{_lambda_.12} parent=0 // pred_fallthru
    _

// kernel: _lambda_.15
$region0: #{_lambda_.15}
  #allocation0 [shape = 'u32[]', space=smem, size = 0x4, offset = 0x4, fixed_abs, tag = 'smem constant byte address 0x4 - core index']
  #allocation1 [shape = 'u32[144,128]{1,0:T(1,128)}', space=vmem, size = 0x12000, scoped, tag = 'internal scratch']
  #allocation2 [shape = 'f32[16,8]{1,0:T(8,128)}', space=vmem, size = 0x2000, scoped, tag = 'scratch operand']
  #allocation3 [shape = 'f32[16,8]{1,0:T(8,128)}', space=vmem, size = 0x2000, scoped, tag = 'scratch operand']
  %s0 = inlined_call_operand.vmem [shape: bf16[32,8], index: 0, kind: input, shape index: {}]
  %s1 = inlined_call_operand.vmem [shape: bf16[8,8], index: 1, kind: input, shape index: {}]
  %s2 = inlined_call_operand.vmem [shape: bf16[8,8], index: 2, kind: input, shape index: {}]
  %s3 = inlined_call_operand.vmem [shape: f32[1,8], index: 3, kind: input, shape index: {}]
  %s4 = inlined_call_operand.vmem [shape: f32[1,8], index: 4, kind: input, shape index: {}]
  %s5 = inlined_call_operand.vmem [shape: bf16[32,8], index: 5, kind: output, shape index: {}]
  %s6 = sld [smem:[#allocation0]]
  $region61: #{_lambda_.15} parent=0
    _
  %s8 = ssub.s32 1, %s6
  %s9 = scalar_select 0, %s8, %s6
  loop: start=0, step=1, limit=4
  $region2: #{_lambda_.15} parent=0 // loop_pre_header
    _
  $region3: #{_lambda_.15} parent=0 // loop_header
    %s11 = sphi 0, %s15
    %p12 = scmp.ge.s32.totalorder %s11, 4
    %s18 = sphi 0, %s37
    %s19 = sphi 0, %s33
    %s20 = sphi 0, %s29
    %s21 = sphi 0, %s18
    %s22 = sphi 0, %s19
    %s23 = sphi 0, %s20
    %s24 = sphi 0, %s21
    %s25 = sphi 0, %s22
    %s26 = sphi 0, %s23
    %s42 = sphi 0, %s44
    %s45 = sphi 0, %s42
    %s46 = sphi 0, %s45
    %s62 = sphi 0, %s46
    %s70 = sphi 0, %s72
    %s73 = sphi 0, %s70
    %s74 = sphi 0, %s73
    %s90 = sphi 0, %s74
    %s98 = sphi 0, %s100
    %s101 = sphi 0, %s98
    %s102 = sphi 0, %s101
    %s118 = sphi 0, %s102
    %s124 = sphi 0, %s126
    %s127 = sphi 0, %s124
    %s128 = sphi 0, %s127
    %s144 = sphi 0, %s128
    %s150 = sphi 0, %s152
    %s153 = sphi 0, %s150
    %s154 = sphi 0, %s153
    %s170 = sphi 0, %s154
    %s178 = sphi 0, %s180
    %s181 = sphi 0, %s178
    %s182 = sphi 0, %s181
    %s198 = sphi 0, %s182
  $region4: #{_lambda_.15} parent=0 // loop_header_branch
    %14 = sbr.rel (%p12) target = $region8
  $region5: #{_lambda_.15} parent=0 // loop_body
    %s16 = ssub.s32 %s11, 1
    %s17 = ssub.s32 %s11, 2
    %s27 = sadd.s32 1, %s20
    %p28 = scmp.ge.s32.totalorder %s27, 1
    %s29 = scalar_select %p28, 0, %s27
    %s30 = sadd.s32 1, %s19
    %s31 = scalar_select %p28, %s30, %s19
    %p32 = scmp.ge.s32.totalorder %s31, 1
    %s33 = scalar_select %p32, 0, %s31
    %s34 = sadd.s32 1, %s18
    %s35 = scalar_select %p32, %s34, %s18
    %p36 = scmp.ge.s32.totalorder %s35, 2
    %s37 = scalar_select %p36, 0, %s35
    %s38 = ssub.s32 %s18, %s37
    %s39 = ssub.s32 %s20, %s29
    %s40 = sor.u32 %s38, %s39
    %p41 = scmp.eq.s32.totalorder %s40, 0
    %s43 = sadd.s32 %s42, 1
    %s44 = scalar_select %p41, %s42, %s43
    %p47 = pneg %p41
    %p48 = scmp.eq.s32.totalorder %s11, 1
    %p49 = por %p47, %p48
    %p50 = scmp.ne.s32.totalorder %s42, %s45
    %p51 = scmp.eq.s32.totalorder %s11, 0
    %p52 = por %p50, %p51
    %p53 = scmp.ne.s32.totalorder %s42, %s45
    %p54 = scmp.eq.s32.totalorder %s16, 1
    %p55 = por %p53, %p54
    %p56 = scmp.ne.s32.totalorder %s45, %s46
    %p57 = scmp.eq.s32.totalorder %s16, 0
    %p58 = por %p56, %p57
    %p59 = scmp.ne.s32.totalorder %s45, %s46
    %p60 = scmp.eq.s32.totalorder %s17, 1
    %p61 = por %p59, %p60
    %p63 = scmp.ne.s32.totalorder %s46, %s62
    %p64 = scmp.eq.s32.totalorder %s17, 0
    %p65 = por %p63, %p64
    %s66 = ssub.s32 %s20, %s29
    %s67 = ssub.s32 %s19, %s33
    %s68 = sor.u32 %s66, %s67
    %p69 = scmp.eq.s32.totalorder %s68, 0
    %s71 = sadd.s32 %s70, 1
    %s72 = scalar_select %p69, %s70, %s71
    %p75 = pneg %p69
    %p76 = scmp.eq.s32.totalorder %s11, 1
    %p77 = por %p75, %p76
    %p78 = scmp.ne.s32.totalorder %s70, %s73
    %p79 = scmp.eq.s32.totalorder %s11, 0
    %p80 = por %p78, %p79
    %p81 = scmp.ne.s32.totalorder %s70, %s73
    %p82 = scmp.eq.s32.totalorder %s16, 1
    %p83 = por %p81, %p82
    %p84 = scmp.ne.s32.totalorder %s73, %s74
    %p85 = scmp.eq.s32.totalorder %s16, 0
    %p86 = por %p84, %p85
    %p87 = scmp.ne.s32.totalorder %s73, %s74
    %p88 = scmp.eq.s32.totalorder %s17, 1
    %p89 = por %p87, %p88
    %p91 = scmp.ne.s32.totalorder %s74, %s90
    %p92 = scmp.eq.s32.totalorder %s17, 0
    %p93 = por %p91, %p92
    %s94 = ssub.s32 %s20, %s29
    %s95 = ssub.s32 %s19, %s33
    %s96 = sor.u32 %s94, %s95
    %p97 = scmp.eq.s32.totalorder %s96, 0
    %s99 = sadd.s32 %s98, 1
    %s100 = scalar_select %p97, %s98, %s99
    %p103 = pneg %p97
    %p104 = scmp.eq.s32.totalorder %s11, 1
    %p105 = por %p103, %p104
    %p106 = scmp.ne.s32.totalorder %s98, %s101
    %p107 = scmp.eq.s32.totalorder %s11, 0
    %p108 = por %p106, %p107
    %p109 = scmp.ne.s32.totalorder %s98, %s101
    %p110 = scmp.eq.s32.totalorder %s16, 1
    %p111 = por %p109, %p110
    %p112 = scmp.ne.s32.totalorder %s101, %s102
    %p113 = scmp.eq.s32.totalorder %s16, 0
    %p114 = por %p112, %p113
    %p115 = scmp.ne.s32.totalorder %s101, %s102
    %p116 = scmp.eq.s32.totalorder %s17, 1
    %p117 = por %p115, %p116
    %p119 = scmp.ne.s32.totalorder %s102, %s118
    %p120 = scmp.eq.s32.totalorder %s17, 0
    %p121 = por %p119, %p120
    %s122 = ssub.s32 %s19, %s33
    %p123 = scmp.eq.s32.totalorder %s122, 0
    %s125 = sadd.s32 %s124, 1
    %s126 = scalar_select %p123, %s124, %s125
    %p129 = pneg %p123
    %p130 = scmp.eq.s32.totalorder %s11, 1
    %p131 = por %p129, %p130
    %p132 = scmp.ne.s32.totalorder %s124, %s127
    %p133 = scmp.eq.s32.totalorder %s11, 0
    %p134 = por %p132, %p133
    %p135 = scmp.ne.s32.totalorder %s124, %s127
    %p136 = scmp.eq.s32.totalorder %s16, 1
    %p137 = por %p135, %p136
    %p138 = scmp.ne.s32.totalorder %s127, %s128
    %p139 = scmp.eq.s32.totalorder %s16, 0
    %p140 = por %p138, %p139
    %p141 = scmp.ne.s32.totalorder %s127, %s128
    %p142 = scmp.eq.s32.totalorder %s17, 1
    %p143 = por %p141, %p142
    %p145 = scmp.ne.s32.totalorder %s128, %s144
    %p146 = scmp.eq.s32.totalorder %s17, 0
    %p147 = por %p145, %p146
    %s148 = ssub.s32 %s19, %s33
    %p149 = scmp.eq.s32.totalorder %s148, 0
    %s151 = sadd.s32 %s150, 1
    %s152 = scalar_select %p149, %s150, %s151
    %p155 = pneg %p149
    %p156 = scmp.eq.s32.totalorder %s11, 1
    %p157 = por %p155, %p156
    %p158 = scmp.ne.s32.totalorder %s150, %s153
    %p159 = scmp.eq.s32.totalorder %s11, 0
    %p160 = por %p158, %p159
    %p161 = scmp.ne.s32.totalorder %s150, %s153
    %p162 = scmp.eq.s32.totalorder %s16, 1
    %p163 = por %p161, %p162
    %p164 = scmp.ne.s32.totalorder %s153, %s154
    %p165 = scmp.eq.s32.totalorder %s16, 0
    %p166 = por %p164, %p165
    %p167 = scmp.ne.s32.totalorder %s153, %s154
    %p168 = scmp.eq.s32.totalorder %s17, 1
    %p169 = por %p167, %p168
    %p171 = scmp.ne.s32.totalorder %s154, %s170
    %p172 = scmp.eq.s32.totalorder %s17, 0
    %p173 = por %p171, %p172
    %s174 = ssub.s32 %s18, %s37
    %s175 = ssub.s32 %s19, %s33
    %s176 = sor.u32 %s174, %s175
    %p177 = scmp.eq.s32.totalorder %s176, 0
    %s179 = sadd.s32 %s178, 1
    %s180 = scalar_select %p177, %s178, %s179
    %p183 = pneg %p177
    %p184 = scmp.eq.s32.totalorder %s11, 1
    %p185 = por %p183, %p184
    %p186 = scmp.ne.s32.totalorder %s178, %s181
    %p187 = scmp.eq.s32.totalorder %s11, 0
    %p188 = por %p186, %p187
    %p189 = scmp.ne.s32.totalorder %s178, %s181
    %p190 = scmp.eq.s32.totalorder %s16, 1
    %p191 = por %p189, %p190
    %p192 = scmp.ne.s32.totalorder %s181, %s182
    %p193 = scmp.eq.s32.totalorder %s16, 0
    %p194 = por %p192, %p193
    %p195 = scmp.ne.s32.totalorder %s181, %s182
    %p196 = scmp.eq.s32.totalorder %s17, 1
    %p197 = por %p195, %p196
    %p199 = scmp.ne.s32.totalorder %s182, %s198
    %p200 = scmp.eq.s32.totalorder %s17, 0
    %p201 = por %p199, %p200
    %p202 = scmp.le.s32.totalorder 1, %s11
    %p203 = scmp.lt.s32.totalorder %s11, 3
    %p204 = pnand %p202, %p203
    %p205 = pneg %p204
    // Predicated region
    $region9: #{_lambda_.15} parent=5 // pred_check
      _
    $region10: #{_lambda_.15} parent=5 // pred_check_branch
      %207 = sbr.rel (%p204) target = $region12
    $region11: #{_lambda_.15} parent=5 // pred_region
      %s208 = ssub.s32 %s11, 1
      // Predicated region
      $region13: #{_lambda_.15} parent=11 // pred_check
        %p209 = pneg %p86
      $region14: #{_lambda_.15} parent=11 // pred_check_branch
        %211 = sbr.rel (%p209) target = $region16
      $region15: #{_lambda_.15} parent=11 // pred_region
        %p212 = scmp.lt.s32.totalorder %s23, 0
        %s213 = scalar_select %p212, %s23, 0
        %p214 = scmp.lt.s32.totalorder %s22, 0
        %s215 = scalar_select %p214, %s22, 0
        %s216 = sadd.s32 %s215, %s213
        %s217 = smul.addr %s216, 4
        %s218 = scalar_lea.vmem %s1, %s217
      $region16: #{_lambda_.15} parent=11 // pred_fallthru
        _
      // Predicated region
      $region17: #{_lambda_.15} parent=11 // pred_check
        %p219 = pneg %p114
      $region18: #{_lambda_.15} parent=11 // pred_check_branch
        %221 = sbr.rel (%p219) target = $region20
      $region19: #{_lambda_.15} parent=11 // pred_region
        %p222 = scmp.lt.s32.totalorder %s23, 0
        %s223 = scalar_select %p222, %s23, 0
        %p224 = scmp.lt.s32.totalorder %s22, 0
        %s225 = scalar_select %p224, %s22, 0
        %s226 = sadd.s32 %s225, %s223
        %s227 = smul.addr %s226, 4
        %s228 = scalar_lea.vmem %s2, %s227
      $region20: #{_lambda_.15} parent=11 // pred_fallthru
        _
      // Predicated region
      $region21: #{_lambda_.15} parent=11 // pred_check
        %p229 = pneg %p140
      $region22: #{_lambda_.15} parent=11 // pred_check_branch
        %231 = sbr.rel (%p229) target = $region24
      $region23: #{_lambda_.15} parent=11 // pred_region
        %p232 = scmp.lt.s32.totalorder %s22, 0
        %s233 = scalar_select %p232, %s22, 0
        %s234 = scalar_lea.vmem %s3, %s233
      $region24: #{_lambda_.15} parent=11 // pred_fallthru
        _
      // Predicated region
      $region25: #{_lambda_.15} parent=11 // pred_check
        %p235 = pneg %p166
      $region26: #{_lambda_.15} parent=11 // pred_check_branch
        %237 = sbr.rel (%p235) target = $region28
      $region27: #{_lambda_.15} parent=11 // pred_region
        %p238 = scmp.lt.s32.totalorder %s22, 0
        %s239 = scalar_select %p238, %s22, 0
        %s240 = scalar_lea.vmem %s4, %s239
      $region28: #{_lambda_.15} parent=11 // pred_fallthru
        _
    $region12: #{_lambda_.15} parent=5 // pred_fallthru
      _
    %p241 = scmp.lt.s32.totalorder %s11, 2
    // Predicated region
    $region29: #{_lambda_.15} parent=5 // pred_check
      %p242 = pneg %p241
    $region30: #{_lambda_.15} parent=5 // pred_check_branch
      %244 = sbr.rel (%p242) target = $region32
    $region31: #{_lambda_.15} parent=5 // pred_region
      // Predicated region
      $region33: #{_lambda_.15} parent=31 // pred_check
        %p245 = pneg %p52
      $region34: #{_lambda_.15} parent=31 // pred_check_branch
        %247 = sbr.rel (%p245) target = $region36
      $region35: #{_lambda_.15} parent=31 // pred_region
        %s248 = smul.u32 2, %s18
        %p249 = scmp.lt.s32.totalorder %s248, 3
        %s250 = scalar_select %p249, %s248, 3
        %p251 = scmp.lt.s32.totalorder %s20, 0
        %s252 = scalar_select %p251, %s20, 0
        %s253 = sadd.s32 %s252, %s250
        %s254 = smul.addr %s253, 4
        %s255 = scalar_lea.vmem %s0, %s254
        %s256 = smul.u32 2, %s18
      $region36: #{_lambda_.15} parent=31 // pred_fallthru
        _
    $region32: #{_lambda_.15} parent=5 // pred_fallthru
      _
    %p257 = scmp.le.s32.totalorder 1, %s11
    %p258 = scmp.lt.s32.totalorder %s11, 3
    %p259 = pnand %p257, %p258
    %p260 = pneg %p259
    // Predicated region
    $region37: #{_lambda_.15} parent=5 // pred_check
      _
    $region38: #{_lambda_.15} parent=5 // pred_check_branch
      %262 = sbr.rel (%p259) target = $region40
    $region39: #{_lambda_.15} parent=5 // pred_region
      %s263 = ssub.s32 %s11, 1
      %s264 = smul.u32 2, %s21
      %p265 = scmp.lt.s32.totalorder %s264, 3
      %s266 = scalar_select %p265, %s264, 3
      %p267 = scmp.lt.s32.totalorder %s23, 0
      %s268 = scalar_select %p267, %s23, 0
      %s269 = sadd.s32 %s268, %s266
      %s270 = smul.addr %s269, 4
      %s271 = scalar_lea.vmem %s0, %s270
      %p272 = pneg %p58
      %p273 = pneg %p55
      %p274 = scmp.lt.s32.totalorder %s23, 0
      %s275 = scalar_select %p274, %s23, 0
      %p276 = scmp.lt.s32.totalorder %s22, 0
      %s277 = scalar_select %p276, %s22, 0
      %s278 = sadd.s32 %s277, %s275
      %s279 = smul.addr %s278, 4
      %s280 = scalar_lea.vmem %s1, %s279
      %p281 = pneg %p86
      %p282 = pneg %p83
      %p283 = scmp.lt.s32.totalorder %s23, 0
      %s284 = scalar_select %p283, %s23, 0
      %p285 = scmp.lt.s32.totalorder %s22, 0
      %s286 = scalar_select %p285, %s22, 0
      %s287 = sadd.s32 %s286, %s284
      %s288 = smul.addr %s287, 4
      %s289 = scalar_lea.vmem %s2, %s288
      %p290 = pneg %p114
      %p291 = pneg %p111
      %p292 = scmp.lt.s32.totalorder %s22, 0
      %s293 = scalar_select %p292, %s22, 0
      %s294 = scalar_lea.vmem %s3, %s293
      %p295 = pneg %p140
      %p296 = pneg %p137
      %p297 = scmp.lt.s32.totalorder %s22, 0
      %s298 = scalar_select %p297, %s22, 0
      %s299 = scalar_lea.vmem %s4, %s298
      %p300 = pneg %p166
      %p301 = pneg %p163
      %p302 = pneg %p194
      %p303 = pneg %p191
      %s304 = smul.u32 2, %s21
      %p305 = scmp.lt.s32.totalorder %s304, 3
      %s306 = scalar_select %p305, %s304, 3
      %p307 = scmp.lt.s32.totalorder %s22, 0
      %s308 = scalar_select %p307, %s22, 0
      %s309 = sadd.s32 %s308, %s306
      %s310 = smul.addr %s309, 4
      %s311 = scalar_lea.vmem %s5, %s310
      %s312 = smul.u32 2, %s21
      %p313 = scmp.lt.s32.totalorder %s312, 3
      %s314 = scalar_select %p313, %s312, 3
      %p315 = scmp.lt.s32.totalorder %s23, 0
      %s316 = scalar_select %p315, %s23, 0
      %s317 = sadd.s32 %s316, %s314
      %s318 = smul.addr %s317, 4
      %s319 = scalar_lea.vmem %s0, %s318
      %s320 = smul.u32 2, %s21
      %p321 = scmp.lt.s32.totalorder %s23, 0
      %s322 = scalar_select %p321, %s23, 0
      %p323 = scmp.lt.s32.totalorder %s22, 0
      %s324 = scalar_select %p323, %s22, 0
      %s325 = sadd.s32 %s324, %s322
      %s326 = smul.addr %s325, 4
      %s327 = scalar_lea.vmem %s1, %s326
      %p328 = scmp.lt.s32.totalorder %s23, 0
      %s329 = scalar_select %p328, %s23, 0
      %p330 = scmp.lt.s32.totalorder %s22, 0
      %s331 = scalar_select %p330, %s22, 0
      %s332 = sadd.s32 %s331, %s329
      %s333 = smul.addr %s332, 4
      %s334 = scalar_lea.vmem %s2, %s333
      %p335 = scmp.lt.s32.totalorder %s22, 0
      %s336 = scalar_select %p335, %s22, 0
      %s337 = scalar_lea.vmem %s3, %s336
      %p338 = scmp.lt.s32.totalorder %s22, 0
      %s339 = scalar_select %p338, %s22, 0
      %s340 = scalar_lea.vmem %s4, %s339
      %s341 = smul.u32 2, %s21
      %p342 = scmp.lt.s32.totalorder %s341, 3
      %s343 = scalar_select %p342, %s341, 3
      %p344 = scmp.lt.s32.totalorder %s22, 0
      %s345 = scalar_select %p344, %s22, 0
      %s346 = sadd.s32 %s345, %s343
      %s347 = smul.addr %s346, 4
      %s348 = scalar_lea.vmem %s5, %s347
      %s349 = smul.u32 2, %s21
      %p351 = scmp.eq.s32.totalorder %s23, 0
      // Predicated region
      $region41: #{_lambda_.15} parent=39 // pred_check
        %p352 = pneg %p351
      $region42: #{_lambda_.15} parent=39 // pred_check_branch
        %354 = sbr.rel (%p352) target = $region44
      $region43: #{_lambda_.15} parent=39 // pred_region
        %vm355 = vcmask 64512
        %356 = vst.msk [vmem:[#allocation2] sm:$0xff] %vm355, 0.0
        %357 = vst.msk [vmem:[#allocation2 + $0x8] sm:$0xff] %vm355, 0.0
        %358 = vst.msk [vmem:[#allocation3] sm:$0xff] %vm355, 0.0
        %359 = vst.msk [vmem:[#allocation3 + $0x8] sm:$0xff] %vm355, 0.0
      $region44: #{_lambda_.15} parent=39 // pred_fallthru
        _
      %v360 = vld [vmem:[%s319] sm:$0xf]
      %v361 = vld [vmem:[%s319 + $0x4] sm:$0xf]
      %v362 = vld [vmem:[#allocation2] sm:$0xff]
      %v363 = vld [vmem:[#allocation2 + $0x8] sm:$0xff]
      %v364 = vld [vmem:[%s327] sm:$0xf]
      %v367 = vunpack.c.l.b16 %v360
      %v368 = vunpack.c.l.b16 %v361
      %v369 = vpack.c.b16 %v368, %v367
      %vm370 = vcmask 64512
      %v372 = vsel %vm370, %v369, 0
      %vm374 = vcmask 1043456
      %v376 = vsel %vm374, %v364, 0
      %378 = vmatprep.subr.bf16.mxu0 0
      %379 = vmatpush1.bf16.msra.mxu0 %v376
      %380 = vmatprep.subr.bf16.mxu0 0
      %381 = vmatpush1.bf16.msra.mxu0 0
      %382 = vmatprep.subr.bf16.mxu0 0
      %383 = vmatpush1.bf16.msra.mxu0 0
      %384 = vmatprep.subr.bf16.mxu0 0
      %385 = vmatpush1.bf16.msra.mxu0 0
      %386 = vmatprep.subr.bf16.mxu0 0
      %387 = vmatpush1.bf16.msra.mxu0 0
      %388 = vmatprep.subr.bf16.mxu0 0
      %389 = vmatpush1.bf16.msra.mxu0 0
      %390 = vmatprep.subr.bf16.mxu0 0
      %391 = vmatpush1.bf16.msra.mxu0 0
      %392 = vmatprep.subr.bf16.mxu0 0
      %393 = vmatpush1.bf16.msra.mxu0 0
      %394 = vmatprep.subr.bf16.mxu0 0
      %395 = vmatpush1.bf16.msra.mxu0 0
      %396 = vmatprep.subr.bf16.mxu0 0
      %397 = vmatpush1.bf16.msra.mxu0 0
      %398 = vmatprep.subr.bf16.mxu0 0
      %399 = vmatpush1.bf16.msra.mxu0 0
      %400 = vmatprep.subr.bf16.mxu0 0
      %401 = vmatpush1.bf16.msra.mxu0 0
      %402 = vmatprep.subr.bf16.mxu0 0
      %403 = vmatpush1.bf16.msra.mxu0 0
      %404 = vmatprep.subr.bf16.mxu0 0
      %405 = vmatpush1.bf16.msra.mxu0 0
      %406 = vmatprep.subr.bf16.mxu0 0
      %407 = vmatpush1.bf16.msra.mxu0 0
      %408 = vmatprep.subr.bf16.mxu0 0
      %409 = vmatpush1.bf16.msra.mxu0 0
      %410 = vmatprep.mubr.bf16.mxu0 0
      %411 = vmatmul.mubr.bf16.gmra.mrb[0].mxu0 %v372
      %v412 = vpop.f32.mrb[0].mxu0
      %v413 = vadd.f32 0.0, %v412
      %v414 = vpop.f32.mrb[0].mxu0
      %v415 = vpop.f32.mrb[0].mxu0
      %v416 = vadd.f32 0.0, %v415
      %v417 = vpop.f32.mrb[0].mxu0
      %418 = vdwg.mxu0
      %v419 = vadd.f32 %v362, %v413
      %v420 = vadd.f32 %v363, %v416
      %421 = vst.msk [vmem:[#allocation2] sm:$0xff] %vm370, %v419
      %422 = vst.msk [vmem:[#allocation2 + $0x8] sm:$0xff] %vm370, %v420
      %v423 = vld [vmem:[#allocation3] sm:$0xff]
      %v424 = vld [vmem:[#allocation3 + $0x8] sm:$0xff]
      %v425 = vld [vmem:[%s334] sm:$0xf]
      %v427 = vsel %vm374, %v425, 0
      %429 = vmatprep.subr.bf16.mxu0 0
      %430 = vmatpush1.bf16.msra.mxu0 %v427
      %431 = vmatprep.subr.bf16.mxu0 0
      %432 = vmatpush1.bf16.msra.mxu0 0
      %433 = vmatprep.subr.bf16.mxu0 0
      %434 = vmatpush1.bf16.msra.mxu0 0
      %435 = vmatprep.subr.bf16.mxu0 0
      %436 = vmatpush1.bf16.msra.mxu0 0
      %437 = vmatprep.subr.bf16.mxu0 0
      %438 = vmatpush1.bf16.msra.mxu0 0
      %439 = vmatprep.subr.bf16.mxu0 0
      %440 = vmatpush1.bf16.msra.mxu0 0
      %441 = vmatprep.subr.bf16.mxu0 0
      %442 = vmatpush1.bf16.msra.mxu0 0
      %443 = vmatprep.subr.bf16.mxu0 0
      %444 = vmatpush1.bf16.msra.mxu0 0
      %445 = vmatprep.subr.bf16.mxu0 0
      %446 = vmatpush1.bf16.msra.mxu0 0
      %447 = vmatprep.subr.bf16.mxu0 0
      %448 = vmatpush1.bf16.msra.mxu0 0
      %449 = vmatprep.subr.bf16.mxu0 0
      %450 = vmatpush1.bf16.msra.mxu0 0
      %451 = vmatprep.subr.bf16.mxu0 0
      %452 = vmatpush1.bf16.msra.mxu0 0
      %453 = vmatprep.subr.bf16.mxu0 0
      %454 = vmatpush1.bf16.msra.mxu0 0
      %455 = vmatprep.subr.bf16.mxu0 0
      %456 = vmatpush1.bf16.msra.mxu0 0
      %457 = vmatprep.subr.bf16.mxu0 0
      %458 = vmatpush1.bf16.msra.mxu0 0
      %459 = vmatprep.subr.bf16.mxu0 0
      %460 = vmatpush1.bf16.msra.mxu0 0
      %461 = vmatprep.mubr.bf16.mxu0 0
      %462 = vmatmul.mubr.bf16.gmra.mrb[0].mxu0 %v372
      %v463 = vpop.f32.mrb[0].mxu0
      %v464 = vadd.f32 0.0, %v463
      %v465 = vpop.f32.mrb[0].mxu0
      %v466 = vpop.f32.mrb[0].mxu0
      %v467 = vadd.f32 0.0, %v466
      %v468 = vpop.f32.mrb[0].mxu0
      %469 = vdwg.mxu0
      %v470 = vadd.f32 %v423, %v464
      %v471 = vadd.f32 %v424, %v467
      %472 = vst.msk [vmem:[#allocation3] sm:$0xff] %vm370, %v470
      %473 = vst.msk [vmem:[#allocation3 + $0x8] sm:$0xff] %vm370, %v471
      // Predicated region
      $region45: #{_lambda_.15} parent=39 // pred_check
        %p474 = pneg %p351
      $region46: #{_lambda_.15} parent=39 // pred_check_branch
        %476 = sbr.rel (%p474) target = $region48
      $region47: #{_lambda_.15} parent=39 // pred_region
        %v477 = vld [vmem:[#allocation2] sm:$0xff]
        %v478 = vld [vmem:[#allocation2 + $0x8] sm:$0xff]
        %v479 = vld [vmem:[%s337] sm:$0x1]
        %v481 = vlaneseq
        %v482 = vshrl.u32 %v481, 7
        %v483 = vsub.s32 0, %v482
        %v484 = vrot.slane %v479, %v483
        %v486 = vadd.f32 %v477, %v484
        %v487 = vadd.f32 %v478, %v484
        %v488 = vld [vmem:[#allocation3] sm:$0xff]
        %v489 = vld [vmem:[#allocation3 + $0x8] sm:$0xff]
        %v490 = vld [vmem:[%s340] sm:$0x1]
        %v492 = vlaneseq
        %v493 = vshrl.u32 %v492, 7
        %v494 = vsub.s32 0, %v493
        %v495 = vrot.slane %v490, %v494
        %v497 = vadd.f32 %v488, %v495
        %v498 = vadd.f32 %v489, %v495
        %v499 = vxor.u32 %v497, 2147483648
        %v500 = vxor.u32 %v498, 2147483648
        %v501 = vmul.f32 %v499, 1.442695
        %v502 = vpow.pop %v501
        %v503 = vmul.f32 %v500, 1.442695
        %v504 = vpow.pop %v503
        %v505 = vadd.f32 %v502, 1.0
        %v506 = vadd.f32 %v504, 1.0
        %v507 = vrcp.pop %v505
        %v508 = vmul.f32 1.0, %v507
        %v509 = vrcp.pop %v506
        %v510 = vmul.f32 1.0, %v509
        %v511 = vmul.f32 %v486, %v508
        %v512 = vmul.f32 %v487, %v510
        %v513 = vpack.c.bf16 %v512, %v511
        %v515 = vunpack.c.l.b16 %v513
        %v516 = vunpack.c.h.b16 %v513
        %v517 = vpack.c.b16 %v515, %v515
        %v518 = vpack.c.b16 %v516, %v516
        %vm521 = vcmask 60416
        %522 = vst.msk [vmem:[%s348] sm:$0xf] %vm521, %v517
        %523 = vst.msk [vmem:[%s348 + $0x4] sm:$0xf] %vm521, %v518
      $region48: #{_lambda_.15} parent=39 // pred_fallthru
        _
      %s524 = smul.u32 2, %s21
      %p525 = scmp.lt.s32.totalorder %s524, 3
      %s526 = scalar_select %p525, %s524, 3
      %p527 = scmp.lt.s32.totalorder %s22, 0
      %s528 = scalar_select %p527, %s22, 0
      %s529 = sadd.s32 %s528, %s526
      %s530 = smul.addr %s529, 4
      %s531 = scalar_lea.vmem %s5, %s530
      // Predicated region
      $region49: #{_lambda_.15} parent=39 // pred_check
        %p532 = pneg %p191
      $region50: #{_lambda_.15} parent=39 // pred_check_branch
        %534 = sbr.rel (%p532) target = $region52
      $region51: #{_lambda_.15} parent=39 // pred_region
        %s535 = smul.u32 2, %s21
      $region52: #{_lambda_.15} parent=39 // pred_fallthru
        _
    $region40: #{_lambda_.15} parent=5 // pred_fallthru
      _
    %p536 = scmp.le.s32.totalorder 2, %s11
    // Predicated region
    $region53: #{_lambda_.15} parent=5 // pred_check
      %p537 = pneg %p536
    $region54: #{_lambda_.15} parent=5 // pred_check_branch
      %539 = sbr.rel (%p537) target = $region56
    $region55: #{_lambda_.15} parent=5 // pred_region
      %s540 = ssub.s32 %s11, 2
      // Predicated region
      $region57: #{_lambda_.15} parent=55 // pred_check
        %p541 = pneg %p197
      $region58: #{_lambda_.15} parent=55 // pred_check_branch
        %543 = sbr.rel (%p541) target = $region60
      $region59: #{_lambda_.15} parent=55 // pred_region
        %s544 = smul.u32 2, %s24
        %p545 = scmp.lt.s32.totalorder %s544, 3
        %s546 = scalar_select %p545, %s544, 3
        %p547 = scmp.lt.s32.totalorder %s25, 0
        %s548 = scalar_select %p547, %s25, 0
        %s549 = sadd.s32 %s548, %s546
        %s550 = smul.addr %s549, 4
        %s551 = scalar_lea.vmem %s5, %s550
      $region60: #{_lambda_.15} parent=55 // pred_fallthru
        _
    $region56: #{_lambda_.15} parent=5 // pred_fallthru
      _
  $region6: #{_lambda_.15} parent=0 // loop_footer
    %s15 = sadd.s32 1, %s11
  $region7: #{_lambda_.15} parent=0 // loop_footer_branch
    %10 = sbr.rel target = $region3
  $region8: #{_lambda_.15} parent=0 // loop_exit
    _

// kernel: _lambda_.14
$region0: #{_lambda_.14}
  #allocation0 [shape = 'u32[]', space=smem, size = 0x4, offset = 0x4, fixed_abs, tag = 'smem constant byte address 0x4 - core index']
  #allocation1 [shape = 'u32[144,128]{1,0:T(1,128)}', space=vmem, size = 0x12000, scoped, tag = 'internal scratch']
  #allocation2 [shape = 'f32[30,8]{1,0:T(8,128)}', space=vmem, size = 0x4000, scoped, tag = 'scratch operand']
  %s0 = inlined_call_operand.vmem [shape: bf16[30,16], index: 0, kind: input, shape index: {}]
  %s1 = inlined_call_operand.vmem [shape: bf16[16,8], index: 1, kind: input, shape index: {}]
  %s2 = inlined_call_operand.vmem [shape: f32[1,8], index: 2, kind: input, shape index: {}]
  %s3 = inlined_call_operand.vmem [shape: bf16[30,8], index: 3, kind: output, shape index: {}]
  %s4 = sld [smem:[#allocation0]]
  $region30: #{_lambda_.14} parent=0
    _
  %s6 = ssub.s32 1, %s4
  %s7 = scalar_select 0, %s6, %s4
  // Predicated region
  $region2: #{_lambda_.14} parent=0 // pred_check
    _
  $region3: #{_lambda_.14} parent=0 // pred_check_branch
    %9 = sbr.rel (0) target = $region5
  $region4: #{_lambda_.14} parent=0 // pred_region
    _
  $region5: #{_lambda_.14} parent=0 // pred_fallthru
    _
  // Predicated region
  $region6: #{_lambda_.14} parent=0 // pred_check
    _
  $region7: #{_lambda_.14} parent=0 // pred_check_branch
    %11 = sbr.rel (0) target = $region9
  $region8: #{_lambda_.14} parent=0 // pred_region
    _
  $region9: #{_lambda_.14} parent=0 // pred_fallthru
    _
  // Predicated region
  $region10: #{_lambda_.14} parent=0 // pred_check
    _
  $region11: #{_lambda_.14} parent=0 // pred_check_branch
    %13 = sbr.rel (0) target = $region13
  $region12: #{_lambda_.14} parent=0 // pred_region
    _
  $region13: #{_lambda_.14} parent=0 // pred_fallthru
    _
  %p15 = scmp.eq.s32.totalorder 0, 0
  // Predicated region
  $region14: #{_lambda_.14} parent=0 // pred_check
    %p16 = pneg %p15
  $region15: #{_lambda_.14} parent=0 // pred_check_branch
    %18 = sbr.rel (%p16) target = $region17
  $region16: #{_lambda_.14} parent=0 // pred_region
    %vm19 = vcmask 64512
    %20 = vst.msk [vmem:[#allocation2] sm:$0xff] %vm19, 0.0
    %21 = vst.msk [vmem:[#allocation2 + $0x8] sm:$0xff] %vm19, 0.0
    %22 = vst.msk [vmem:[#allocation2 + $0x10] sm:$0xff] %vm19, 0.0
    %vm23 = vcmask 62464
    %24 = vst.msk [vmem:[#allocation2 + $0x18] sm:$0x3f] %vm23, 0.0
  $region17: #{_lambda_.14} parent=0 // pred_fallthru
    _
  %v25 = vld [vmem:[#allocation2] sm:$0xff]
  %v26 = vld [vmem:[#allocation2 + $0x8] sm:$0xff]
  %v27 = vld [vmem:[#allocation2 + $0x10] sm:$0xff]
  %v28 = vld [vmem:[#allocation2 + $0x18] sm:$0x3f]
  %v29 = vld [vmem:[%s0] sm:$0xf]
  %v30 = vld [vmem:[%s0 + $0x4] sm:$0xf]
  %v31 = vld [vmem:[%s0 + $0x8] sm:$0xf]
  %v32 = vld [vmem:[%s0 + $0xc] sm:$0x7]
  %v33 = vld [vmem:[%s1] sm:$0xf]
  %v34 = vld [vmem:[%s1 + $0x4] sm:$0xf]
  %v39 = vunpack.c.l.b16 %v29
  %v40 = vunpack.c.l.b16 %v30
  %v41 = vunpack.c.l.b16 %v31
  %v42 = vunpack.c.l.b16 %v32
  %v43 = vpack.c.b16 %v40, %v39
  %v44 = vpack.c.b16 %v42, %v41
  %v47 = vunpack.c.l.b16 %v33
  %v48 = vunpack.c.l.b16 %v34
  %v49 = vpack.c.b16 %v48, %v47
  %vm51 = vcmask 130048
  %v53 = vsel %vm51, %v43, 0
  %v56 = vsel %vm51, %v44, 0
  %58 = vmatprep.subr.bf16.mxu0 0
  %59 = vmatpush1.bf16.msra.mxu0 %v49
  %60 = vmatprep.subr.bf16.mxu0 0
  %61 = vmatpush1.bf16.msra.mxu0 0
  %62 = vmatprep.subr.bf16.mxu0 0
  %63 = vmatpush1.bf16.msra.mxu0 0
  %64 = vmatprep.subr.bf16.mxu0 0
  %65 = vmatpush1.bf16.msra.mxu0 0
  %66 = vmatprep.subr.bf16.mxu0 0
  %67 = vmatpush1.bf16.msra.mxu0 0
  %68 = vmatprep.subr.bf16.mxu0 0
  %69 = vmatpush1.bf16.msra.mxu0 0
  %70 = vmatprep.subr.bf16.mxu0 0
  %71 = vmatpush1.bf16.msra.mxu0 0
  %72 = vmatprep.subr.bf16.mxu0 0
  %73 = vmatpush1.bf16.msra.mxu0 0
  %74 = vmatprep.subr.bf16.mxu0 0
  %75 = vmatpush1.bf16.msra.mxu0 0
  %76 = vmatprep.subr.bf16.mxu0 0
  %77 = vmatpush1.bf16.msra.mxu0 0
  %78 = vmatprep.subr.bf16.mxu0 0
  %79 = vmatpush1.bf16.msra.mxu0 0
  %80 = vmatprep.subr.bf16.mxu0 0
  %81 = vmatpush1.bf16.msra.mxu0 0
  %82 = vmatprep.subr.bf16.mxu0 0
  %83 = vmatpush1.bf16.msra.mxu0 0
  %84 = vmatprep.subr.bf16.mxu0 0
  %85 = vmatpush1.bf16.msra.mxu0 0
  %86 = vmatprep.subr.bf16.mxu0 0
  %87 = vmatpush1.bf16.msra.mxu0 0
  %88 = vmatprep.subr.bf16.mxu0 0
  %89 = vmatpush1.bf16.msra.mxu0 0
  %90 = vmatprep.mubr.bf16.mxu0 0
  %91 = vmatmul.mubr.bf16.gmra.mrb[0].mxu0 %v53
  %v92 = vpop.f32.mrb[0].mxu0
  %v93 = vadd.f32 0.0, %v92
  %v94 = vpop.f32.mrb[0].mxu0
  %v95 = vpop.f32.mrb[0].mxu0
  %v96 = vadd.f32 0.0, %v95
  %v97 = vpop.f32.mrb[0].mxu0
  %98 = vmatprep.mubr.bf16.mxu0 0
  %99 = vmatmul.mubr.bf16.gmra.mrb[0].mxu0 %v56
  %v100 = vpop.f32.mrb[0].mxu0
  %v101 = vadd.f32 0.0, %v100
  %v102 = vpop.f32.mrb[0].mxu0
  %v103 = vpop.f32.mrb[0].mxu0
  %v104 = vadd.f32 0.0, %v103
  %v105 = vpop.f32.mrb[0].mxu0
  %106 = vdwg.mxu0
  %v107 = vadd.f32 %v25, %v93
  %v108 = vadd.f32 %v26, %v96
  %v109 = vadd.f32 %v27, %v101
  %v110 = vadd.f32 %v28, %v104
  %vm111 = vcmask 64512
  %112 = vst.msk [vmem:[#allocation2] sm:$0xff] %vm111, %v107
  %113 = vst.msk [vmem:[#allocation2 + $0x8] sm:$0xff] %vm111, %v108
  %114 = vst.msk [vmem:[#allocation2 + $0x10] sm:$0xff] %vm111, %v109
  %vm115 = vcmask 62464
  %116 = vst.msk [vmem:[#allocation2 + $0x18] sm:$0x3f] %vm115, %v110
  // Predicated region
  $region18: #{_lambda_.14} parent=0 // pred_check
    %p117 = pneg %p15
  $region19: #{_lambda_.14} parent=0 // pred_check_branch
    %119 = sbr.rel (%p117) target = $region21
  $region20: #{_lambda_.14} parent=0 // pred_region
    %v120 = vld [vmem:[#allocation2] sm:$0xff]
    %v121 = vld [vmem:[#allocation2 + $0x8] sm:$0xff]
    %v122 = vld [vmem:[#allocation2 + $0x10] sm:$0xff]
    %v123 = vld [vmem:[#allocation2 + $0x18] sm:$0x3f]
    %v124 = vld [vmem:[%s2] sm:$0x1]
    %v126 = vlaneseq
    %v127 = vshrl.u32 %v126, 7
    %v128 = vsub.s32 0, %v127
    %v129 = vrot.slane %v124, %v128
    %v131 = vadd.f32 %v120, %v129
    %v132 = vadd.f32 %v121, %v129
    %v133 = vadd.f32 %v122, %v129
    %v134 = vadd.f32 %v123, %v129
    %v135 = vmax.f32 %v131, 0.0
    %v136 = vmax.f32 %v132, 0.0
    %v137 = vmax.f32 %v133, 0.0
    %v138 = vmax.f32 %v134, 0.0
    %v139 = vpack.c.bf16 %v136, %v135
    %v140 = vpack.c.bf16 %v138, %v137
    %v143 = vunpack.c.l.b16 %v139
    %v144 = vunpack.c.h.b16 %v139
    %v145 = vunpack.c.l.b16 %v140
    %v146 = vunpack.c.h.b16 %v140
    %v147 = vpack.c.b16 %v143, %v143
    %v148 = vpack.c.b16 %v144, %v144
    %v149 = vpack.c.b16 %v145, %v145
    %v150 = vpack.c.b16 %v146, %v146
    %vm155 = vcmask 60416
    %156 = vst.msk [vmem:[%s3] sm:$0xf] %vm155, %v147
    %157 = vst.msk [vmem:[%s3 + $0x4] sm:$0xf] %vm155, %v148
    %158 = vst.msk [vmem:[%s3 + $0x8] sm:$0xf] %vm155, %v149
    %vm159 = vcmask 59392
    %160 = vst.msk [vmem:[%s3 + $0xc] sm:$0x7] %vm159, %v150
  $region21: #{_lambda_.14} parent=0 // pred_fallthru
    _
  // Predicated region
  $region22: #{_lambda_.14} parent=0 // pred_check
    _
  $region23: #{_lambda_.14} parent=0 // pred_check_branch
    %162 = sbr.rel (0) target = $region25
  $region24: #{_lambda_.14} parent=0 // pred_region
    _
  $region25: #{_lambda_.14} parent=0 // pred_fallthru
    _
  // Predicated region
  $region26: #{_lambda_.14} parent=0 // pred_check
    _
  $region27: #{_lambda_.14} parent=0 // pred_check_branch
    %164 = sbr.rel (0) target = $region29
  $region28: #{_lambda_.14} parent=0 // pred_region
    _
  $region29: #{_lambda_.14} parent=0 // pred_fallthru
    _

// kernel: _lambda_.16
$region0: #{_lambda_.16}
  #allocation0 [shape = 'u32[]', space=smem, size = 0x4, offset = 0x4, fixed_abs, tag = 'smem constant byte address 0x4 - core index']
  #allocation1 [shape = 'u32[144,128]{1,0:T(1,128)}', space=vmem, size = 0x12000, scoped, tag = 'internal scratch']
  #allocation2 [shape = 'f32[16,32]{1,0:T(8,128)}', space=vmem, size = 0x2000, scoped, tag = 'scratch operand']
  %s0 = inlined_call_operand.vmem [shape: bf16[32,8], index: 0, kind: input, shape index: {}]
  %s1 = inlined_call_operand.vmem [shape: bf16[8,32], index: 1, kind: input, shape index: {}]
  %s2 = inlined_call_operand.vmem [shape: f32[1,32], index: 2, kind: input, shape index: {}]
  %s3 = inlined_call_operand.vmem [shape: f32[32,32], index: 3, kind: output, shape index: {}]
  %s4 = sld [smem:[#allocation0]]
  $region53: #{_lambda_.16} parent=0
    _
  %s6 = ssub.s32 1, %s4
  %s7 = scalar_select 0, %s6, %s4
  loop: start=0, step=1, limit=4
  $region2: #{_lambda_.16} parent=0 // loop_pre_header
    _
  $region3: #{_lambda_.16} parent=0 // loop_header
    %s9 = sphi 0, %s13
    %p10 = scmp.ge.s32.totalorder %s9, 4
    %s16 = sphi 0, %s35
    %s17 = sphi 0, %s31
    %s18 = sphi 0, %s27
    %s19 = sphi 0, %s16
    %s20 = sphi 0, %s17
    %s21 = sphi 0, %s18
    %s22 = sphi 0, %s19
    %s23 = sphi 0, %s20
    %s24 = sphi 0, %s21
    %s40 = sphi 0, %s42
    %s43 = sphi 0, %s40
    %s44 = sphi 0, %s43
    %s60 = sphi 0, %s44
    %s68 = sphi 0, %s70
    %s71 = sphi 0, %s68
    %s72 = sphi 0, %s71
    %s88 = sphi 0, %s72
    %s94 = sphi 0, %s96
    %s97 = sphi 0, %s94
    %s98 = sphi 0, %s97
    %s114 = sphi 0, %s98
    %s122 = sphi 0, %s124
    %s125 = sphi 0, %s122
    %s126 = sphi 0, %s125
    %s142 = sphi 0, %s126
  $region4: #{_lambda_.16} parent=0 // loop_header_branch
    %12 = sbr.rel (%p10) target = $region8
  $region5: #{_lambda_.16} parent=0 // loop_body
    %s14 = ssub.s32 %s9, 1
    %s15 = ssub.s32 %s9, 2
    %s25 = sadd.s32 1, %s18
    %p26 = scmp.ge.s32.totalorder %s25, 1
    %s27 = scalar_select %p26, 0, %s25
    %s28 = sadd.s32 1, %s17
    %s29 = scalar_select %p26, %s28, %s17
    %p30 = scmp.ge.s32.totalorder %s29, 1
    %s31 = scalar_select %p30, 0, %s29
    %s32 = sadd.s32 1, %s16
    %s33 = scalar_select %p30, %s32, %s16
    %p34 = scmp.ge.s32.totalorder %s33, 2
    %s35 = scalar_select %p34, 0, %s33
    %s36 = ssub.s32 %s16, %s35
    %s37 = ssub.s32 %s18, %s27
    %s38 = sor.u32 %s36, %s37
    %p39 = scmp.eq.s32.totalorder %s38, 0
    %s41 = sadd.s32 %s40, 1
    %s42 = scalar_select %p39, %s40, %s41
    %p45 = pneg %p39
    %p46 = scmp.eq.s32.totalorder %s9, 1
    %p47 = por %p45, %p46
    %p48 = scmp.ne.s32.totalorder %s40, %s43
    %p49 = scmp.eq.s32.totalorder %s9, 0
    %p50 = por %p48, %p49
    %p51 = scmp.ne.s32.totalorder %s40, %s43
    %p52 = scmp.eq.s32.totalorder %s14, 1
    %p53 = por %p51, %p52
    %p54 = scmp.ne.s32.totalorder %s43, %s44
    %p55 = scmp.eq.s32.totalorder %s14, 0
    %p56 = por %p54, %p55
    %p57 = scmp.ne.s32.totalorder %s43, %s44
    %p58 = scmp.eq.s32.totalorder %s15, 1
    %p59 = por %p57, %p58
    %p61 = scmp.ne.s32.totalorder %s44, %s60
    %p62 = scmp.eq.s32.totalorder %s15, 0
    %p63 = por %p61, %p62
    %s64 = ssub.s32 %s18, %s27
    %s65 = ssub.s32 %s17, %s31
    %s66 = sor.u32 %s64, %s65
    %p67 = scmp.eq.s32.totalorder %s66, 0
    %s69 = sadd.s32 %s68, 1
    %s70 = scalar_select %p67, %s68, %s69
    %p73 = pneg %p67
    %p74 = scmp.eq.s32.totalorder %s9, 1
    %p75 = por %p73, %p74
    %p76 = scmp.ne.s32.totalorder %s68, %s71
    %p77 = scmp.eq.s32.totalorder %s9, 0
    %p78 = por %p76, %p77
    %p79 = scmp.ne.s32.totalorder %s68, %s71
    %p80 = scmp.eq.s32.totalorder %s14, 1
    %p81 = por %p79, %p80
    %p82 = scmp.ne.s32.totalorder %s71, %s72
    %p83 = scmp.eq.s32.totalorder %s14, 0
    %p84 = por %p82, %p83
    %p85 = scmp.ne.s32.totalorder %s71, %s72
    %p86 = scmp.eq.s32.totalorder %s15, 1
    %p87 = por %p85, %p86
    %p89 = scmp.ne.s32.totalorder %s72, %s88
    %p90 = scmp.eq.s32.totalorder %s15, 0
    %p91 = por %p89, %p90
    %s92 = ssub.s32 %s17, %s31
    %p93 = scmp.eq.s32.totalorder %s92, 0
    %s95 = sadd.s32 %s94, 1
    %s96 = scalar_select %p93, %s94, %s95
    %p99 = pneg %p93
    %p100 = scmp.eq.s32.totalorder %s9, 1
    %p101 = por %p99, %p100
    %p102 = scmp.ne.s32.totalorder %s94, %s97
    %p103 = scmp.eq.s32.totalorder %s9, 0
    %p104 = por %p102, %p103
    %p105 = scmp.ne.s32.totalorder %s94, %s97
    %p106 = scmp.eq.s32.totalorder %s14, 1
    %p107 = por %p105, %p106
    %p108 = scmp.ne.s32.totalorder %s97, %s98
    %p109 = scmp.eq.s32.totalorder %s14, 0
    %p110 = por %p108, %p109
    %p111 = scmp.ne.s32.totalorder %s97, %s98
    %p112 = scmp.eq.s32.totalorder %s15, 1
    %p113 = por %p111, %p112
    %p115 = scmp.ne.s32.totalorder %s98, %s114
    %p116 = scmp.eq.s32.totalorder %s15, 0
    %p117 = por %p115, %p116
    %s118 = ssub.s32 %s16, %s35
    %s119 = ssub.s32 %s17, %s31
    %s120 = sor.u32 %s118, %s119
    %p121 = scmp.eq.s32.totalorder %s120, 0
    %s123 = sadd.s32 %s122, 1
    %s124 = scalar_select %p121, %s122, %s123
    %p127 = pneg %p121
    %p128 = scmp.eq.s32.totalorder %s9, 1
    %p129 = por %p127, %p128
    %p130 = scmp.ne.s32.totalorder %s122, %s125
    %p131 = scmp.eq.s32.totalorder %s9, 0
    %p132 = por %p130, %p131
    %p133 = scmp.ne.s32.totalorder %s122, %s125
    %p134 = scmp.eq.s32.totalorder %s14, 1
    %p135 = por %p133, %p134
    %p136 = scmp.ne.s32.totalorder %s125, %s126
    %p137 = scmp.eq.s32.totalorder %s14, 0
    %p138 = por %p136, %p137
    %p139 = scmp.ne.s32.totalorder %s125, %s126
    %p140 = scmp.eq.s32.totalorder %s15, 1
    %p141 = por %p139, %p140
    %p143 = scmp.ne.s32.totalorder %s126, %s142
    %p144 = scmp.eq.s32.totalorder %s15, 0
    %p145 = por %p143, %p144
    %p146 = scmp.le.s32.totalorder 1, %s9
    %p147 = scmp.lt.s32.totalorder %s9, 3
    %p148 = pnand %p146, %p147
    %p149 = pneg %p148
    // Predicated region
    $region9: #{_lambda_.16} parent=5 // pred_check
      _
    $region10: #{_lambda_.16} parent=5 // pred_check_branch
      %151 = sbr.rel (%p148) target = $region12
    $region11: #{_lambda_.16} parent=5 // pred_region
      %s152 = ssub.s32 %s9, 1
      // Predicated region
      $region13: #{_lambda_.16} parent=11 // pred_check
        %p153 = pneg %p84
      $region14: #{_lambda_.16} parent=11 // pred_check_branch
        %155 = sbr.rel (%p153) target = $region16
      $region15: #{_lambda_.16} parent=11 // pred_region
        %p156 = scmp.lt.s32.totalorder %s21, 0
        %s157 = scalar_select %p156, %s21, 0
        %p158 = scmp.lt.s32.totalorder %s20, 0
        %s159 = scalar_select %p158, %s20, 0
        %s160 = sadd.s32 %s159, %s157
        %s161 = smul.addr %s160, 4
        %s162 = scalar_lea.vmem %s1, %s161
      $region16: #{_lambda_.16} parent=11 // pred_fallthru
        _
      // Predicated region
      $region17: #{_lambda_.16} parent=11 // pred_check
        %p163 = pneg %p110
      $region18: #{_lambda_.16} parent=11 // pred_check_branch
        %165 = sbr.rel (%p163) target = $region20
      $region19: #{_lambda_.16} parent=11 // pred_region
        %p166 = scmp.lt.s32.totalorder %s20, 0
        %s167 = scalar_select %p166, %s20, 0
        %s168 = scalar_lea.vmem %s2, %s167
      $region20: #{_lambda_.16} parent=11 // pred_fallthru
        _
    $region12: #{_lambda_.16} parent=5 // pred_fallthru
      _
    %p169 = scmp.lt.s32.totalorder %s9, 2
    // Predicated region
    $region21: #{_lambda_.16} parent=5 // pred_check
      %p170 = pneg %p169
    $region22: #{_lambda_.16} parent=5 // pred_check_branch
      %172 = sbr.rel (%p170) target = $region24
    $region23: #{_lambda_.16} parent=5 // pred_region
      // Predicated region
      $region25: #{_lambda_.16} parent=23 // pred_check
        %p173 = pneg %p50
      $region26: #{_lambda_.16} parent=23 // pred_check_branch
        %175 = sbr.rel (%p173) target = $region28
      $region27: #{_lambda_.16} parent=23 // pred_region
        %s176 = smul.u32 2, %s16
        %p177 = scmp.lt.s32.totalorder %s176, 3
        %s178 = scalar_select %p177, %s176, 3
        %p179 = scmp.lt.s32.totalorder %s18, 0
        %s180 = scalar_select %p179, %s18, 0
        %s181 = sadd.s32 %s180, %s178
        %s182 = smul.addr %s181, 4
        %s183 = scalar_lea.vmem %s0, %s182
        %s184 = smul.u32 2, %s16
      $region28: #{_lambda_.16} parent=23 // pred_fallthru
        _
    $region24: #{_lambda_.16} parent=5 // pred_fallthru
      _
    %p185 = scmp.le.s32.totalorder 1, %s9
    %p186 = scmp.lt.s32.totalorder %s9, 3
    %p187 = pnand %p185, %p186
    %p188 = pneg %p187
    // Predicated region
    $region29: #{_lambda_.16} parent=5 // pred_check
      _
    $region30: #{_lambda_.16} parent=5 // pred_check_branch
      %190 = sbr.rel (%p187) target = $region32
    $region31: #{_lambda_.16} parent=5 // pred_region
      %s191 = ssub.s32 %s9, 1
      %s192 = smul.u32 2, %s19
      %p193 = scmp.lt.s32.totalorder %s192, 3
      %s194 = scalar_select %p193, %s192, 3
      %p195 = scmp.lt.s32.totalorder %s21, 0
      %s196 = scalar_select %p195, %s21, 0
      %s197 = sadd.s32 %s196, %s194
      %s198 = smul.addr %s197, 4
      %s199 = scalar_lea.vmem %s0, %s198
      %p200 = pneg %p56
      %p201 = pneg %p53
      %p202 = scmp.lt.s32.totalorder %s21, 0
      %s203 = scalar_select %p202, %s21, 0
      %p204 = scmp.lt.s32.totalorder %s20, 0
      %s205 = scalar_select %p204, %s20, 0
      %s206 = sadd.s32 %s205, %s203
      %s207 = smul.addr %s206, 4
      %s208 = scalar_lea.vmem %s1, %s207
      %p209 = pneg %p84
      %p210 = pneg %p81
      %p211 = scmp.lt.s32.totalorder %s20, 0
      %s212 = scalar_select %p211, %s20, 0
      %s213 = scalar_lea.vmem %s2, %s212
      %p214 = pneg %p110
      %p215 = pneg %p107
      %p216 = pneg %p138
      %p217 = pneg %p135
      %s218 = smul.u32 2, %s19
      %p219 = scmp.lt.s32.totalorder %s218, 3
      %s220 = scalar_select %p219, %s218, 3
      %p221 = scmp.lt.s32.totalorder %s20, 0
      %s222 = scalar_select %p221, %s20, 0
      %s223 = sadd.s32 %s222, %s220
      %s224 = smul.addr %s223, 8
      %s225 = scalar_lea.vmem %s3, %s224
      %s226 = smul.u32 2, %s19
      %p227 = scmp.lt.s32.totalorder %s226, 3
      %s228 = scalar_select %p227, %s226, 3
      %p229 = scmp.lt.s32.totalorder %s21, 0
      %s230 = scalar_select %p229, %s21, 0
      %s231 = sadd.s32 %s230, %s228
      %s232 = smul.addr %s231, 4
      %s233 = scalar_lea.vmem %s0, %s232
      %s234 = smul.u32 2, %s19
      %p235 = scmp.lt.s32.totalorder %s21, 0
      %s236 = scalar_select %p235, %s21, 0
      %p237 = scmp.lt.s32.totalorder %s20, 0
      %s238 = scalar_select %p237, %s20, 0
      %s239 = sadd.s32 %s238, %s236
      %s240 = smul.addr %s239, 4
      %s241 = scalar_lea.vmem %s1, %s240
      %p242 = scmp.lt.s32.totalorder %s20, 0
      %s243 = scalar_select %p242, %s20, 0
      %s244 = scalar_lea.vmem %s2, %s243
      %s245 = smul.u32 2, %s19
      %p246 = scmp.lt.s32.totalorder %s245, 3
      %s247 = scalar_select %p246, %s245, 3
      %p248 = scmp.lt.s32.totalorder %s20, 0
      %s249 = scalar_select %p248, %s20, 0
      %s250 = sadd.s32 %s249, %s247
      %s251 = smul.addr %s250, 8
      %s252 = scalar_lea.vmem %s3, %s251
      %s253 = smul.u32 2, %s19
      %p255 = scmp.eq.s32.totalorder %s21, 0
      // Predicated region
      $region33: #{_lambda_.16} parent=31 // pred_check
        %p256 = pneg %p255
      $region34: #{_lambda_.16} parent=31 // pred_check_branch
        %258 = sbr.rel (%p256) target = $region36
      $region35: #{_lambda_.16} parent=31 // pred_region
        %vm259 = vcmask 261120
        %260 = vst.msk [vmem:[#allocation2] sm:$0xff] %vm259, 0.0
        %261 = vst.msk [vmem:[#allocation2 + $0x8] sm:$0xff] %vm259, 0.0
      $region36: #{_lambda_.16} parent=31 // pred_fallthru
        _
      %v262 = vld [vmem:[#allocation2] sm:$0xff]
      %v263 = vld [vmem:[#allocation2 + $0x8] sm:$0xff]
      %v264 = vld [vmem:[%s233] sm:$0xf]
      %v265 = vld [vmem:[%s233 + $0x4] sm:$0xf]
      %v266 = vld [vmem:[%s241] sm:$0xf]
      %v269 = vunpack.c.l.b16 %v264
      %v270 = vunpack.c.l.b16 %v265
      %v271 = vpack.c.b16 %v270, %v269
      %vm272 = vcmask 64512
      %v274 = vsel %vm272, %v271, 0
      %vm276 = vcmask 1043456
      %v278 = vsel %vm276, %v266, 0
      %280 = vmatprep.subr.bf16.mxu0 0
      %281 = vmatpush1.bf16.msra.mxu0 %v278
      %282 = vmatprep.subr.bf16.mxu0 0
      %283 = vmatpush1.bf16.msra.mxu0 0
      %284 = vmatprep.subr.bf16.mxu0 0
      %285 = vmatpush1.bf16.msra.mxu0 0
      %286 = vmatprep.subr.bf16.mxu0 0
      %287 = vmatpush1.bf16.msra.mxu0 0
      %288 = vmatprep.subr.bf16.mxu0 0
      %289 = vmatpush1.bf16.msra.mxu0 0
      %290 = vmatprep.subr.bf16.mxu0 0
      %291 = vmatpush1.bf16.msra.mxu0 0
      %292 = vmatprep.subr.bf16.mxu0 0
      %293 = vmatpush1.bf16.msra.mxu0 0
      %294 = vmatprep.subr.bf16.mxu0 0
      %295 = vmatpush1.bf16.msra.mxu0 0
      %296 = vmatprep.subr.bf16.mxu0 0
      %297 = vmatpush1.bf16.msra.mxu0 0
      %298 = vmatprep.subr.bf16.mxu0 0
      %299 = vmatpush1.bf16.msra.mxu0 0
      %300 = vmatprep.subr.bf16.mxu0 0
      %301 = vmatpush1.bf16.msra.mxu0 0
      %302 = vmatprep.subr.bf16.mxu0 0
      %303 = vmatpush1.bf16.msra.mxu0 0
      %304 = vmatprep.subr.bf16.mxu0 0
      %305 = vmatpush1.bf16.msra.mxu0 0
      %306 = vmatprep.subr.bf16.mxu0 0
      %307 = vmatpush1.bf16.msra.mxu0 0
      %308 = vmatprep.subr.bf16.mxu0 0
      %309 = vmatpush1.bf16.msra.mxu0 0
      %310 = vmatprep.subr.bf16.mxu0 0
      %311 = vmatpush1.bf16.msra.mxu0 0
      %312 = vmatprep.mubr.bf16.mxu0 0
      %313 = vmatmul.mubr.bf16.gmra.mrb[0].mxu0 %v274
      %v314 = vpop.f32.mrb[0].mxu0
      %v315 = vadd.f32 0.0, %v314
      %v316 = vpop.f32.mrb[0].mxu0
      %v317 = vpop.f32.mrb[0].mxu0
      %v318 = vadd.f32 0.0, %v317
      %v319 = vpop.f32.mrb[0].mxu0
      %320 = vdwg.mxu0
      %v321 = vadd.f32 %v262, %v315
      %v322 = vadd.f32 %v263, %v318
      %vm323 = vcmask 261120
      %324 = vst.msk [vmem:[#allocation2] sm:$0xff] %vm323, %v321
      %325 = vst.msk [vmem:[#allocation2 + $0x8] sm:$0xff] %vm323, %v322
      // Predicated region
      $region37: #{_lambda_.16} parent=31 // pred_check
        %p326 = pneg %p255
      $region38: #{_lambda_.16} parent=31 // pred_check_branch
        %328 = sbr.rel (%p326) target = $region40
      $region39: #{_lambda_.16} parent=31 // pred_region
        %v329 = vld [vmem:[#allocation2] sm:$0xff]
        %v330 = vld [vmem:[#allocation2 + $0x8] sm:$0xff]
        %v331 = vld [vmem:[%s244] sm:$0x1]
        %v333 = vlaneseq
        %v334 = vshrl.u32 %v333, 7
        %v335 = vsub.s32 0, %v334
        %v336 = vrot.slane %v331, %v335
        %v338 = vadd.f32 %v329, %v336
        %v339 = vadd.f32 %v330, %v336
        %340 = vst.msk [vmem:[%s252] sm:$0xff] %vm323, %v338
        %341 = vst.msk [vmem:[%s252 + $0x8] sm:$0xff] %vm323, %v339
      $region40: #{_lambda_.16} parent=31 // pred_fallthru
        _
      %s342 = smul.u32 2, %s19
      %p343 = scmp.lt.s32.totalorder %s342, 3
      %s344 = scalar_select %p343, %s342, 3
      %p345 = scmp.lt.s32.totalorder %s20, 0
      %s346 = scalar_select %p345, %s20, 0
      %s347 = sadd.s32 %s346, %s344
      %s348 = smul.addr %s347, 8
      %s349 = scalar_lea.vmem %s3, %s348
      // Predicated region
      $region41: #{_lambda_.16} parent=31 // pred_check
        %p350 = pneg %p135
      $region42: #{_lambda_.16} parent=31 // pred_check_branch
        %352 = sbr.rel (%p350) target = $region44
      $region43: #{_lambda_.16} parent=31 // pred_region
        %s353 = smul.u32 2, %s19
      $region44: #{_lambda_.16} parent=31 // pred_fallthru
        _
    $region32: #{_lambda_.16} parent=5 // pred_fallthru
      _
    %p354 = scmp.le.s32.totalorder 2, %s9
    // Predicated region
    $region45: #{_lambda_.16} parent=5 // pred_check
      %p355 = pneg %p354
    $region46: #{_lambda_.16} parent=5 // pred_check_branch
      %357 = sbr.rel (%p355) target = $region48
    $region47: #{_lambda_.16} parent=5 // pred_region
      %s358 = ssub.s32 %s9, 2
      // Predicated region
      $region49: #{_lambda_.16} parent=47 // pred_check
        %p359 = pneg %p141
      $region50: #{_lambda_.16} parent=47 // pred_check_branch
        %361 = sbr.rel (%p359) target = $region52
      $region51: #{_lambda_.16} parent=47 // pred_region
        %s362 = smul.u32 2, %s22
        %p363 = scmp.lt.s32.totalorder %s362, 3
        %s364 = scalar_select %p363, %s362, 3
        %p365 = scmp.lt.s32.totalorder %s23, 0
        %s366 = scalar_select %p365, %s23, 0
        %s367 = sadd.s32 %s366, %s364
        %s368 = smul.addr %s367, 8
        %s369 = scalar_lea.vmem %s3, %s368
      $region52: #{_lambda_.16} parent=47 // pred_fallthru
        _
    $region48: #{_lambda_.16} parent=5 // pred_fallthru
      _
  $region6: #{_lambda_.16} parent=0 // loop_footer
    %s13 = sadd.s32 1, %s9
  $region7: #{_lambda_.16} parent=0 // loop_footer_branch
    %8 = sbr.rel target = $region3
  $region8: #{_lambda_.16} parent=0 // loop_exit
    _

// kernel: _lambda_.21
$region0: #{_lambda_.21}
  #allocation0 [shape = 'u32[]', space=smem, size = 0x4, offset = 0x4, fixed_abs, tag = 'smem constant byte address 0x4 - core index']
  #allocation1 [shape = 'u32[144,128]{1,0:T(1,128)}', space=vmem, size = 0x12000, scoped, tag = 'internal scratch']
  #allocation2 [shape = 'f32[16,16]{1,0:T(8,128)}', space=vmem, size = 0x2000, scoped, tag = 'scratch operand']
  %s0 = inlined_call_operand.vmem [shape: bf16[32,8], index: 0, kind: input, shape index: {}]
  %s1 = inlined_call_operand.vmem [shape: bf16[8,16], index: 1, kind: input, shape index: {}]
  %s2 = inlined_call_operand.vmem [shape: bf16[32,16], index: 2, kind: output, shape index: {}]
  %s3 = sld [smem:[#allocation0]]
  $region49: #{_lambda_.21} parent=0
    _
  %s5 = ssub.s32 1, %s3
  %s6 = scalar_select 0, %s5, %s3
  loop: start=0, step=1, limit=4
  $region2: #{_lambda_.21} parent=0 // loop_pre_header
    _
  $region3: #{_lambda_.21} parent=0 // loop_header
    %s8 = sphi 0, %s12
    %p9 = scmp.ge.s32.totalorder %s8, 4
    %s15 = sphi 0, %s34
    %s16 = sphi 0, %s30
    %s17 = sphi 0, %s26
    %s18 = sphi 0, %s15
    %s19 = sphi 0, %s16
    %s20 = sphi 0, %s17
    %s21 = sphi 0, %s18
    %s22 = sphi 0, %s19
    %s23 = sphi 0, %s20
    %s39 = sphi 0, %s41
    %s42 = sphi 0, %s39
    %s43 = sphi 0, %s42
    %s59 = sphi 0, %s43
    %s67 = sphi 0, %s69
    %s70 = sphi 0, %s67
    %s71 = sphi 0, %s70
    %s87 = sphi 0, %s71
    %s95 = sphi 0, %s97
    %s98 = sphi 0, %s95
    %s99 = sphi 0, %s98
    %s115 = sphi 0, %s99
  $region4: #{_lambda_.21} parent=0 // loop_header_branch
    %11 = sbr.rel (%p9) target = $region8
  $region5: #{_lambda_.21} parent=0 // loop_body
    %s13 = ssub.s32 %s8, 1
    %s14 = ssub.s32 %s8, 2
    %s24 = sadd.s32 1, %s17
    %p25 = scmp.ge.s32.totalorder %s24, 1
    %s26 = scalar_select %p25, 0, %s24
    %s27 = sadd.s32 1, %s16
    %s28 = scalar_select %p25, %s27, %s16
    %p29 = scmp.ge.s32.totalorder %s28, 1
    %s30 = scalar_select %p29, 0, %s28
    %s31 = sadd.s32 1, %s15
    %s32 = scalar_select %p29, %s31, %s15
    %p33 = scmp.ge.s32.totalorder %s32, 2
    %s34 = scalar_select %p33, 0, %s32
    %s35 = ssub.s32 %s15, %s34
    %s36 = ssub.s32 %s17, %s26
    %s37 = sor.u32 %s35, %s36
    %p38 = scmp.eq.s32.totalorder %s37, 0
    %s40 = sadd.s32 %s39, 1
    %s41 = scalar_select %p38, %s39, %s40
    %p44 = pneg %p38
    %p45 = scmp.eq.s32.totalorder %s8, 1
    %p46 = por %p44, %p45
    %p47 = scmp.ne.s32.totalorder %s39, %s42
    %p48 = scmp.eq.s32.totalorder %s8, 0
    %p49 = por %p47, %p48
    %p50 = scmp.ne.s32.totalorder %s39, %s42
    %p51 = scmp.eq.s32.totalorder %s13, 1
    %p52 = por %p50, %p51
    %p53 = scmp.ne.s32.totalorder %s42, %s43
    %p54 = scmp.eq.s32.totalorder %s13, 0
    %p55 = por %p53, %p54
    %p56 = scmp.ne.s32.totalorder %s42, %s43
    %p57 = scmp.eq.s32.totalorder %s14, 1
    %p58 = por %p56, %p57
    %p60 = scmp.ne.s32.totalorder %s43, %s59
    %p61 = scmp.eq.s32.totalorder %s14, 0
    %p62 = por %p60, %p61
    %s63 = ssub.s32 %s17, %s26
    %s64 = ssub.s32 %s16, %s30
    %s65 = sor.u32 %s63, %s64
    %p66 = scmp.eq.s32.totalorder %s65, 0
    %s68 = sadd.s32 %s67, 1
    %s69 = scalar_select %p66, %s67, %s68
    %p72 = pneg %p66
    %p73 = scmp.eq.s32.totalorder %s8, 1
    %p74 = por %p72, %p73
    %p75 = scmp.ne.s32.totalorder %s67, %s70
    %p76 = scmp.eq.s32.totalorder %s8, 0
    %p77 = por %p75, %p76
    %p78 = scmp.ne.s32.totalorder %s67, %s70
    %p79 = scmp.eq.s32.totalorder %s13, 1
    %p80 = por %p78, %p79
    %p81 = scmp.ne.s32.totalorder %s70, %s71
    %p82 = scmp.eq.s32.totalorder %s13, 0
    %p83 = por %p81, %p82
    %p84 = scmp.ne.s32.totalorder %s70, %s71
    %p85 = scmp.eq.s32.totalorder %s14, 1
    %p86 = por %p84, %p85
    %p88 = scmp.ne.s32.totalorder %s71, %s87
    %p89 = scmp.eq.s32.totalorder %s14, 0
    %p90 = por %p88, %p89
    %s91 = ssub.s32 %s15, %s34
    %s92 = ssub.s32 %s16, %s30
    %s93 = sor.u32 %s91, %s92
    %p94 = scmp.eq.s32.totalorder %s93, 0
    %s96 = sadd.s32 %s95, 1
    %s97 = scalar_select %p94, %s95, %s96
    %p100 = pneg %p94
    %p101 = scmp.eq.s32.totalorder %s8, 1
    %p102 = por %p100, %p101
    %p103 = scmp.ne.s32.totalorder %s95, %s98
    %p104 = scmp.eq.s32.totalorder %s8, 0
    %p105 = por %p103, %p104
    %p106 = scmp.ne.s32.totalorder %s95, %s98
    %p107 = scmp.eq.s32.totalorder %s13, 1
    %p108 = por %p106, %p107
    %p109 = scmp.ne.s32.totalorder %s98, %s99
    %p110 = scmp.eq.s32.totalorder %s13, 0
    %p111 = por %p109, %p110
    %p112 = scmp.ne.s32.totalorder %s98, %s99
    %p113 = scmp.eq.s32.totalorder %s14, 1
    %p114 = por %p112, %p113
    %p116 = scmp.ne.s32.totalorder %s99, %s115
    %p117 = scmp.eq.s32.totalorder %s14, 0
    %p118 = por %p116, %p117
    %p119 = scmp.le.s32.totalorder 1, %s8
    %p120 = scmp.lt.s32.totalorder %s8, 3
    %p121 = pnand %p119, %p120
    %p122 = pneg %p121
    // Predicated region
    $region9: #{_lambda_.21} parent=5 // pred_check
      _
    $region10: #{_lambda_.21} parent=5 // pred_check_branch
      %124 = sbr.rel (%p121) target = $region12
    $region11: #{_lambda_.21} parent=5 // pred_region
      %s125 = ssub.s32 %s8, 1
      // Predicated region
      $region13: #{_lambda_.21} parent=11 // pred_check
        %p126 = pneg %p83
      $region14: #{_lambda_.21} parent=11 // pred_check_branch
        %128 = sbr.rel (%p126) target = $region16
      $region15: #{_lambda_.21} parent=11 // pred_region
        %p129 = scmp.lt.s32.totalorder %s20, 0
        %s130 = scalar_select %p129, %s20, 0
        %p131 = scmp.lt.s32.totalorder %s19, 0
        %s132 = scalar_select %p131, %s19, 0
        %s133 = sadd.s32 %s132, %s130
        %s134 = smul.addr %s133, 4
        %s135 = scalar_lea.vmem %s1, %s134
      $region16: #{_lambda_.21} parent=11 // pred_fallthru
        _
    $region12: #{_lambda_.21} parent=5 // pred_fallthru
      _
    %p136 = scmp.lt.s32.totalorder %s8, 2
    // Predicated region
    $region17: #{_lambda_.21} parent=5 // pred_check
      %p137 = pneg %p136
    $region18: #{_lambda_.21} parent=5 // pred_check_branch
      %139 = sbr.rel (%p137) target = $region20
    $region19: #{_lambda_.21} parent=5 // pred_region
      // Predicated region
      $region21: #{_lambda_.21} parent=19 // pred_check
        %p140 = pneg %p49
      $region22: #{_lambda_.21} parent=19 // pred_check_branch
        %142 = sbr.rel (%p140) target = $region24
      $region23: #{_lambda_.21} parent=19 // pred_region
        %s143 = smul.u32 2, %s15
        %p144 = scmp.lt.s32.totalorder %s143, 3
        %s145 = scalar_select %p144, %s143, 3
        %p146 = scmp.lt.s32.totalorder %s17, 0
        %s147 = scalar_select %p146, %s17, 0
        %s148 = sadd.s32 %s147, %s145
        %s149 = smul.addr %s148, 4
        %s150 = scalar_lea.vmem %s0, %s149
        %s151 = smul.u32 2, %s15
      $region24: #{_lambda_.21} parent=19 // pred_fallthru
        _
    $region20: #{_lambda_.21} parent=5 // pred_fallthru
      _
    %p152 = scmp.le.s32.totalorder 1, %s8
    %p153 = scmp.lt.s32.totalorder %s8, 3
    %p154 = pnand %p152, %p153
    %p155 = pneg %p154
    // Predicated region
    $region25: #{_lambda_.21} parent=5 // pred_check
      _
    $region26: #{_lambda_.21} parent=5 // pred_check_branch
      %157 = sbr.rel (%p154) target = $region28
    $region27: #{_lambda_.21} parent=5 // pred_region
      %s158 = ssub.s32 %s8, 1
      %s159 = smul.u32 2, %s18
      %p160 = scmp.lt.s32.totalorder %s159, 3
      %s161 = scalar_select %p160, %s159, 3
      %p162 = scmp.lt.s32.totalorder %s20, 0
      %s163 = scalar_select %p162, %s20, 0
      %s164 = sadd.s32 %s163, %s161
      %s165 = smul.addr %s164, 4
      %s166 = scalar_lea.vmem %s0, %s165
      %p167 = pneg %p55
      %p168 = pneg %p52
      %p169 = scmp.lt.s32.totalorder %s20, 0
      %s170 = scalar_select %p169, %s20, 0
      %p171 = scmp.lt.s32.totalorder %s19, 0
      %s172 = scalar_select %p171, %s19, 0
      %s173 = sadd.s32 %s172, %s170
      %s174 = smul.addr %s173, 4
      %s175 = scalar_lea.vmem %s1, %s174
      %p176 = pneg %p83
      %p177 = pneg %p80
      %p178 = pneg %p111
      %p179 = pneg %p108
      %s180 = smul.u32 2, %s18
      %p181 = scmp.lt.s32.totalorder %s180, 3
      %s182 = scalar_select %p181, %s180, 3
      %p183 = scmp.lt.s32.totalorder %s19, 0
      %s184 = scalar_select %p183, %s19, 0
      %s185 = sadd.s32 %s184, %s182
      %s186 = smul.addr %s185, 4
      %s187 = scalar_lea.vmem %s2, %s186
      %s188 = smul.u32 2, %s18
      %p189 = scmp.lt.s32.totalorder %s188, 3
      %s190 = scalar_select %p189, %s188, 3
      %p191 = scmp.lt.s32.totalorder %s20, 0
      %s192 = scalar_select %p191, %s20, 0
      %s193 = sadd.s32 %s192, %s190
      %s194 = smul.addr %s193, 4
      %s195 = scalar_lea.vmem %s0, %s194
      %s196 = smul.u32 2, %s18
      %p197 = scmp.lt.s32.totalorder %s20, 0
      %s198 = scalar_select %p197, %s20, 0
      %p199 = scmp.lt.s32.totalorder %s19, 0
      %s200 = scalar_select %p199, %s19, 0
      %s201 = sadd.s32 %s200, %s198
      %s202 = smul.addr %s201, 4
      %s203 = scalar_lea.vmem %s1, %s202
      %s204 = smul.u32 2, %s18
      %p205 = scmp.lt.s32.totalorder %s204, 3
      %s206 = scalar_select %p205, %s204, 3
      %p207 = scmp.lt.s32.totalorder %s19, 0
      %s208 = scalar_select %p207, %s19, 0
      %s209 = sadd.s32 %s208, %s206
      %s210 = smul.addr %s209, 4
      %s211 = scalar_lea.vmem %s2, %s210
      %s212 = smul.u32 2, %s18
      %p214 = scmp.eq.s32.totalorder %s20, 0
      // Predicated region
      $region29: #{_lambda_.21} parent=27 // pred_check
        %p215 = pneg %p214
      $region30: #{_lambda_.21} parent=27 // pred_check_branch
        %217 = sbr.rel (%p215) target = $region32
      $region31: #{_lambda_.21} parent=27 // pred_region
        %vm218 = vcmask 130048
        %219 = vst.msk [vmem:[#allocation2] sm:$0xff] %vm218, 0.0
        %220 = vst.msk [vmem:[#allocation2 + $0x8] sm:$0xff] %vm218, 0.0
      $region32: #{_lambda_.21} parent=27 // pred_fallthru
        _
      %v221 = vld [vmem:[#allocation2] sm:$0xff]
      %v222 = vld [vmem:[#allocation2 + $0x8] sm:$0xff]
      %v223 = vld [vmem:[%s195] sm:$0xf]
      %v224 = vld [vmem:[%s195 + $0x4] sm:$0xf]
      %v225 = vld [vmem:[%s203] sm:$0xf]
      %v228 = vunpack.c.l.b16 %v223
      %v229 = vunpack.c.l.b16 %v224
      %v230 = vpack.c.b16 %v229, %v228
      %vm231 = vcmask 64512
      %v233 = vsel %vm231, %v230, 0
      %vm235 = vcmask 1043456
      %v237 = vsel %vm235, %v225, 0
      %239 = vmatprep.subr.bf16.mxu0 0
      %240 = vmatpush1.bf16.msra.mxu0 %v237
      %241 = vmatprep.subr.bf16.mxu0 0
      %242 = vmatpush1.bf16.msra.mxu0 0
      %243 = vmatprep.subr.bf16.mxu0 0
      %244 = vmatpush1.bf16.msra.mxu0 0
      %245 = vmatprep.subr.bf16.mxu0 0
      %246 = vmatpush1.bf16.msra.mxu0 0
      %247 = vmatprep.subr.bf16.mxu0 0
      %248 = vmatpush1.bf16.msra.mxu0 0
      %249 = vmatprep.subr.bf16.mxu0 0
      %250 = vmatpush1.bf16.msra.mxu0 0
      %251 = vmatprep.subr.bf16.mxu0 0
      %252 = vmatpush1.bf16.msra.mxu0 0
      %253 = vmatprep.subr.bf16.mxu0 0
      %254 = vmatpush1.bf16.msra.mxu0 0
      %255 = vmatprep.subr.bf16.mxu0 0
      %256 = vmatpush1.bf16.msra.mxu0 0
      %257 = vmatprep.subr.bf16.mxu0 0
      %258 = vmatpush1.bf16.msra.mxu0 0
      %259 = vmatprep.subr.bf16.mxu0 0
      %260 = vmatpush1.bf16.msra.mxu0 0
      %261 = vmatprep.subr.bf16.mxu0 0
      %262 = vmatpush1.bf16.msra.mxu0 0
      %263 = vmatprep.subr.bf16.mxu0 0
      %264 = vmatpush1.bf16.msra.mxu0 0
      %265 = vmatprep.subr.bf16.mxu0 0
      %266 = vmatpush1.bf16.msra.mxu0 0
      %267 = vmatprep.subr.bf16.mxu0 0
      %268 = vmatpush1.bf16.msra.mxu0 0
      %269 = vmatprep.subr.bf16.mxu0 0
      %270 = vmatpush1.bf16.msra.mxu0 0
      %271 = vmatprep.mubr.bf16.mxu0 0
      %272 = vmatmul.mubr.bf16.gmra.mrb[0].mxu0 %v233
      %v273 = vpop.f32.mrb[0].mxu0
      %v274 = vadd.f32 0.0, %v273
      %v275 = vpop.f32.mrb[0].mxu0
      %v276 = vpop.f32.mrb[0].mxu0
      %v277 = vadd.f32 0.0, %v276
      %v278 = vpop.f32.mrb[0].mxu0
      %279 = vdwg.mxu0
      %v280 = vadd.f32 %v221, %v274
      %v281 = vadd.f32 %v222, %v277
      %vm282 = vcmask 130048
      %283 = vst.msk [vmem:[#allocation2] sm:$0xff] %vm282, %v280
      %284 = vst.msk [vmem:[#allocation2 + $0x8] sm:$0xff] %vm282, %v281
      // Predicated region
      $region33: #{_lambda_.21} parent=27 // pred_check
        %p285 = pneg %p214
      $region34: #{_lambda_.21} parent=27 // pred_check_branch
        %287 = sbr.rel (%p285) target = $region36
      $region35: #{_lambda_.21} parent=27 // pred_region
        %v288 = vld [vmem:[#allocation2] sm:$0xff]
        %v289 = vld [vmem:[#allocation2 + $0x8] sm:$0xff]
        %v290 = vpack.c.bf16 %v289, %v288
        %v292 = vunpack.c.l.b16 %v290
        %v293 = vunpack.c.h.b16 %v290
        %v294 = vpack.c.b16 %v292, %v292
        %v295 = vpack.c.b16 %v293, %v293
        %vm298 = vcmask 125952
        %299 = vst.msk [vmem:[%s211] sm:$0xf] %vm298, %v294
        %300 = vst.msk [vmem:[%s211 + $0x4] sm:$0xf] %vm298, %v295
      $region36: #{_lambda_.21} parent=27 // pred_fallthru
        _
      %s301 = smul.u32 2, %s18
      %p302 = scmp.lt.s32.totalorder %s301, 3
      %s303 = scalar_select %p302, %s301, 3
      %p304 = scmp.lt.s32.totalorder %s19, 0
      %s305 = scalar_select %p304, %s19, 0
      %s306 = sadd.s32 %s305, %s303
      %s307 = smul.addr %s306, 4
      %s308 = scalar_lea.vmem %s2, %s307
      // Predicated region
      $region37: #{_lambda_.21} parent=27 // pred_check
        %p309 = pneg %p108
      $region38: #{_lambda_.21} parent=27 // pred_check_branch
        %311 = sbr.rel (%p309) target = $region40
      $region39: #{_lambda_.21} parent=27 // pred_region
        %s312 = smul.u32 2, %s18
      $region40: #{_lambda_.21} parent=27 // pred_fallthru
        _
    $region28: #{_lambda_.21} parent=5 // pred_fallthru
      _
    %p313 = scmp.le.s32.totalorder 2, %s8
    // Predicated region
    $region41: #{_lambda_.21} parent=5 // pred_check
      %p314 = pneg %p313
    $region42: #{_lambda_.21} parent=5 // pred_check_branch
      %316 = sbr.rel (%p314) target = $region44
    $region43: #{_lambda_.21} parent=5 // pred_region
      %s317 = ssub.s32 %s8, 2
      // Predicated region
      $region45: #{_lambda_.21} parent=43 // pred_check
        %p318 = pneg %p114
      $region46: #{_lambda_.21} parent=43 // pred_check_branch
        %320 = sbr.rel (%p318) target = $region48
      $region47: #{_lambda_.21} parent=43 // pred_region
        %s321 = smul.u32 2, %s21
        %p322 = scmp.lt.s32.totalorder %s321, 3
        %s323 = scalar_select %p322, %s321, 3
        %p324 = scmp.lt.s32.totalorder %s22, 0
        %s325 = scalar_select %p324, %s22, 0
        %s326 = sadd.s32 %s325, %s323
        %s327 = smul.addr %s326, 4
        %s328 = scalar_lea.vmem %s2, %s327
      $region48: #{_lambda_.21} parent=43 // pred_fallthru
        _
    $region44: #{_lambda_.21} parent=5 // pred_fallthru
      _
  $region6: #{_lambda_.21} parent=0 // loop_footer
    %s12 = sadd.s32 1, %s8
  $region7: #{_lambda_.21} parent=0 // loop_footer_branch
    %7 = sbr.rel target = $region3
  $region8: #{_lambda_.21} parent=0 // loop_exit
    _

// kernel: _lambda_.17
$region0: #{_lambda_.17}
  #allocation0 [shape = 'u32[]', space=smem, size = 0x4, offset = 0x4, fixed_abs, tag = 'smem constant byte address 0x4 - core index']
  #allocation1 [shape = 'u32[144,128]{1,0:T(1,128)}', space=vmem, size = 0x12000, scoped, tag = 'internal scratch']
  #allocation2 [shape = 'f32[2,8]{1,0:T(2,128)}', space=vmem, size = 0x400, scoped, tag = 'scratch operand']
  #allocation3 [shape = 'f32[2,8]{1,0:T(2,128)}', space=vmem, size = 0x400, scoped, tag = 'scratch operand']
  #allocation4 [shape = 'f32[2,8,8]{2,1,0:T(8,128)}', space=vmem, size = 0x2000, scoped, tag = 'scratch operand']
  %s0 = inlined_call_operand.vmem [shape: f32[2,16,32], index: 0, kind: input, shape index: {}]
  %s1 = inlined_call_operand.vmem [shape: bf16[8,32], index: 1, kind: input, shape index: {}]
  %s2 = inlined_call_operand.vmem [shape: bf16[2,16,8], index: 2, kind: output, shape index: {}]
  %s3 = sld [smem:[#allocation0]]
  $region120: #{_lambda_.17} parent=0
    _
  %s5 = ssub.s32 1, %s3
  %s6 = scalar_select 0, %s5, %s3
  $region1: #{_lambda_.17} parent=0
    #allocation5 [shape = 'u8[16384]{0}', space=vmem, size = 0x4000, scoped, tag = 'input window, operand 0']
    #allocation6 [shape = 'u8[8192]{0}', space=vmem, size = 0x2000, scoped, tag = 'output window, operand 0']
    loop: start=0, step=1, limit=4
    $region2: #{_lambda_.17} parent=1 // loop_pre_header
      _
    $region3: #{_lambda_.17} parent=1 // loop_header
      %s8 = sphi 0, %s12
      %p9 = scmp.ge.s32.totalorder %s8, 4
      %s18 = sphi 0, %s20
      %s21 = sphi 0, %s18
      %s22 = sphi 0, %s21
      %s38 = sphi 0, %s22
      %s42 = sphi 0, %s42
      %s44 = sphi 0, %s42
      %s45 = sphi 0, %s44
      %s59 = sphi 0, %s45
      %s65 = sphi 0, %s67
      %s68 = sphi 0, %s65
      %s69 = sphi 0, %s68
      %s85 = sphi 0, %s69
    $region4: #{_lambda_.17} parent=1 // loop_header_branch
      %11 = sbr.rel (%p9) target = $region8
    $region5: #{_lambda_.17} parent=1 // loop_body
      %s13 = ssub.s32 %s8, 1
      %s14 = ssub.s32 %s8, 2
      %s15 = sadd.s32 %s8, 1
      %s16 = ssub.s32 %s8, %s15
      %p17 = scmp.eq.s32.totalorder %s16, 0
      %s19 = sadd.s32 %s18, 1
      %s20 = scalar_select %p17, %s18, %s19
      %p23 = pneg %p17
      %p24 = scmp.eq.s32.totalorder %s8, 1
      %p25 = por %p23, %p24
      %p26 = scmp.ne.s32.totalorder %s18, %s21
      %p27 = scmp.eq.s32.totalorder %s8, 0
      %p28 = por %p26, %p27
      %p29 = scmp.ne.s32.totalorder %s18, %s21
      %p30 = scmp.eq.s32.totalorder %s13, 1
      %p31 = por %p29, %p30
      %p32 = scmp.ne.s32.totalorder %s21, %s22
      %p33 = scmp.eq.s32.totalorder %s13, 0
      %p34 = por %p32, %p33
      %p35 = scmp.ne.s32.totalorder %s21, %s22
      %p36 = scmp.eq.s32.totalorder %s14, 1
      %p37 = por %p35, %p36
      %p39 = scmp.ne.s32.totalorder %s22, %s38
      %p40 = scmp.eq.s32.totalorder %s14, 0
      %p41 = por %p39, %p40
      %s43 = sadd.s32 %s42, 1
      %p46 = scmp.eq.s32.totalorder %s8, 1
      %p47 = scmp.ne.s32.totalorder %s42, %s44
      %p48 = scmp.eq.s32.totalorder %s8, 0
      %p49 = por %p47, %p48
      %p50 = scmp.ne.s32.totalorder %s42, %s44
      %p51 = scmp.eq.s32.totalorder %s13, 1
      %p52 = por %p50, %p51
      %p53 = scmp.ne.s32.totalorder %s44, %s45
      %p54 = scmp.eq.s32.totalorder %s13, 0
      %p55 = por %p53, %p54
      %p56 = scmp.ne.s32.totalorder %s44, %s45
      %p57 = scmp.eq.s32.totalorder %s14, 1
      %p58 = por %p56, %p57
      %p60 = scmp.ne.s32.totalorder %s45, %s59
      %p61 = scmp.eq.s32.totalorder %s14, 0
      %p62 = por %p60, %p61
      %s63 = ssub.s32 %s8, %s15
      %p64 = scmp.eq.s32.totalorder %s63, 0
      %s66 = sadd.s32 %s65, 1
      %s67 = scalar_select %p64, %s65, %s66
      %p70 = pneg %p64
      %p71 = scmp.eq.s32.totalorder %s8, 1
      %p72 = por %p70, %p71
      %p73 = scmp.ne.s32.totalorder %s65, %s68
      %p74 = scmp.eq.s32.totalorder %s8, 0
      %p75 = por %p73, %p74
      %p76 = scmp.ne.s32.totalorder %s65, %s68
      %p77 = scmp.eq.s32.totalorder %s13, 1
      %p78 = por %p76, %p77
      %p79 = scmp.ne.s32.totalorder %s68, %s69
      %p80 = scmp.eq.s32.totalorder %s13, 0
      %p81 = por %p79, %p80
      %p82 = scmp.ne.s32.totalorder %s68, %s69
      %p83 = scmp.eq.s32.totalorder %s14, 1
      %p84 = por %p82, %p83
      %p86 = scmp.ne.s32.totalorder %s69, %s85
      %p87 = scmp.eq.s32.totalorder %s14, 0
      %p88 = por %p86, %p87
      %p89 = scmp.le.s32.totalorder 1, %s8
      %p90 = scmp.lt.s32.totalorder %s8, 3
      %p91 = pnand %p89, %p90
      %p92 = pneg %p91
      // Predicated region
      $region9: #{_lambda_.17} parent=5 // pred_check
        _
      $region10: #{_lambda_.17} parent=5 // pred_check_branch
        %94 = sbr.rel (%p91) target = $region12
      $region11: #{_lambda_.17} parent=5 // pred_region
        %s95 = ssub.s32 %s8, 1
        // Predicated region
        $region13: #{_lambda_.17} parent=11 // pred_check
          %p96 = pneg %p55
        $region14: #{_lambda_.17} parent=11 // pred_check_branch
          %98 = sbr.rel (%p96) target = $region16
        $region15: #{_lambda_.17} parent=11 // pred_region
          _
        $region16: #{_lambda_.17} parent=11 // pred_fallthru
          _
      $region12: #{_lambda_.17} parent=5 // pred_fallthru
        _
      %p99 = scmp.lt.s32.totalorder %s8, 2
      // Predicated region
      $region17: #{_lambda_.17} parent=5 // pred_check
        %p100 = pneg %p99
      $region18: #{_lambda_.17} parent=5 // pred_check_branch
        %102 = sbr.rel (%p100) target = $region20
      $region19: #{_lambda_.17} parent=5 // pred_region
        // Predicated region
        $region21: #{_lambda_.17} parent=19 // pred_check
          %p103 = pneg %p28
        $region22: #{_lambda_.17} parent=19 // pred_check_branch
          %105 = sbr.rel (%p103) target = $region24
        $region23: #{_lambda_.17} parent=19 // pred_region
          %s106 = sand.u32 %s18, 1
          %s107 = sand.u32 %s18, 1
          %s108 = smul.addr %s107, 16
          %s109 = scalar_lea.vmem [#allocation5], %s108
          %s110 = smul.addr %s8, 8
          %s111 = scalar_lea.vmem %s0, %s110
          // Predicated region
          $region25: #{_lambda_.17} parent=23 // pred_check
            _
          $region26: #{_lambda_.17} parent=23 // pred_check_branch
            %113 = sbr.rel (0) target = $region28
          $region27: #{_lambda_.17} parent=23 // pred_region
            // Predicated region
            $region29: #{_lambda_.17} parent=27 // pred_check
              _
            $region30: #{_lambda_.17} parent=27 // pred_check_branch
              %115 = sbr.rel (0) target = $region32
            $region31: #{_lambda_.17} parent=27 // pred_region
              // Predicated region
              $region44: #{_lambda_.17} parent=31 // pred_check
                _
              $region45: #{_lambda_.17} parent=31 // pred_check_branch
                %132 = sbr.rel (0) target = $region47
              $region46: #{_lambda_.17} parent=31 // pred_region
                loop: start=0, step=1, limit=1
                $region48: #{_lambda_.17} parent=46 // loop_pre_header
                  _
                $region49: #{_lambda_.17} parent=46 // loop_header
                  %s134 = sphi 0, %s138
                  %p135 = scmp.ge.s32.totalorder %s134, 1
                  %s139 = sphi %s111, %s111
                  %s140 = sphi %s109, %s109
                $region50: #{_lambda_.17} parent=46 // loop_header_branch
                  %137 = sbr.rel (%p135) target = $region54
                $region51: #{_lambda_.17} parent=46 // loop_body
                  %v141 = vld [vmem:[%s139] sm:$0xff]
                  %142 = vst [vmem:[%s140] sm:$0xff] %v141
                  %v143 = vld [vmem:[%s139 + $0x10] sm:$0xff]
                  %144 = vst [vmem:[%s140 + $0x8] sm:$0xff] %v143
                $region52: #{_lambda_.17} parent=46 // loop_footer
                  %s138 = sadd.s32 1, %s134
                $region53: #{_lambda_.17} parent=46 // loop_footer_branch
                  %133 = sbr.rel target = $region49
                $region54: #{_lambda_.17} parent=46 // loop_exit
                  _
              $region47: #{_lambda_.17} parent=31 // pred_fallthru
                _
              // Predicated region
              $region55: #{_lambda_.17} parent=31 // pred_check
                _
              $region56: #{_lambda_.17} parent=31 // pred_check_branch
                %146 = sbr.rel target = $region58
              $region57: #{_lambda_.17} parent=31 // pred_region
                _
              $region58: #{_lambda_.17} parent=31 // pred_fallthru
                _
            $region32: #{_lambda_.17} parent=27 // pred_fallthru
              _
            // Predicated region
            $region33: #{_lambda_.17} parent=27 // pred_check
              _
            $region34: #{_lambda_.17} parent=27 // pred_check_branch
              %117 = sbr.rel target = $region36
            $region35: #{_lambda_.17} parent=27 // pred_region
              loop: start=0, step=1, limit=1
              $region37: #{_lambda_.17} parent=35 // loop_pre_header
                _
              $region38: #{_lambda_.17} parent=35 // loop_header
                %s120 = sphi 0, %s124
                %p121 = scmp.ge.s32.totalorder %s120, 1
                %s125 = sphi %s111, %s111
                %s126 = sphi %s109, %s109
              $region39: #{_lambda_.17} parent=35 // loop_header_branch
                %123 = sbr.rel (%p121) target = $region43
              $region40: #{_lambda_.17} parent=35 // loop_body
                %v127 = vld [vmem:[%s125] sm:$0xff]
                %128 = vst [vmem:[%s126] sm:$0xff] %v127
                %v129 = vld [vmem:[%s125 + $0x10] sm:$0xff]
                %130 = vst [vmem:[%s126 + $0x8] sm:$0xff] %v129
              $region41: #{_lambda_.17} parent=35 // loop_footer
                %s124 = sadd.s32 1, %s120
              $region42: #{_lambda_.17} parent=35 // loop_footer_branch
                %119 = sbr.rel target = $region38
              $region43: #{_lambda_.17} parent=35 // loop_exit
                _
            $region36: #{_lambda_.17} parent=27 // pred_fallthru
              _
          $region28: #{_lambda_.17} parent=23 // pred_fallthru
            _
          %147 = vnop
        $region24: #{_lambda_.17} parent=19 // pred_fallthru
          _
      $region20: #{_lambda_.17} parent=5 // pred_fallthru
        _
      %p148 = scmp.le.s32.totalorder 1, %s8
      %p149 = scmp.lt.s32.totalorder %s8, 3
      %p150 = pnand %p148, %p149
      %p151 = pneg %p150
      // Predicated region
      $region59: #{_lambda_.17} parent=5 // pred_check
        _
      $region60: #{_lambda_.17} parent=5 // pred_check_branch
        %153 = sbr.rel (%p150) target = $region62
      $region61: #{_lambda_.17} parent=5 // pred_region
        %s154 = ssub.s32 %s8, 1
        %s155 = sand.u32 %s21, 1
        %s156 = sand.u32 %s21, 1
        %s157 = smul.addr %s156, 16
        %s158 = scalar_lea.vmem [#allocation5], %s157
        // Predicated region
        $region63: #{_lambda_.17} parent=61 // pred_check
          %p159 = pneg %p34
        $region64: #{_lambda_.17} parent=61 // pred_check_branch
          %161 = sbr.rel (%p159) target = $region66
        $region65: #{_lambda_.17} parent=61 // pred_region
          _
        $region66: #{_lambda_.17} parent=61 // pred_fallthru
          _
        %s162 = sand.u32 %s21, 1
        %s163 = sand.u32 %s21, 1
        %s164 = smul.addr %s163, 16
        %s165 = scalar_lea.vmem [#allocation5], %s164
        %p166 = pneg %p34
        %p167 = pneg %p31
        %p168 = pneg %p55
        %p169 = pneg %p52
        %p170 = pneg %p81
        %p171 = pneg %p78
        %s172 = sand.u32 %s68, 1
        %s173 = sand.u32 %s68, 1
        %s174 = smul.addr %s173, 8
        %s175 = scalar_lea.vmem [#allocation6], %s174
        %p177 = scmp.eq.s32.totalorder %s13, 0
        // Predicated region
        $region67: #{_lambda_.17} parent=61 // pred_check
          %p178 = pneg %p177
        $region68: #{_lambda_.17} parent=61 // pred_check_branch
          %180 = sbr.rel (%p178) target = $region70
        $region69: #{_lambda_.17} parent=61 // pred_region
          %vm181 = vcmask 58368
          %182 = vst.msk [vmem:[#allocation2] sm:$0x3] %vm181, 0.0
          %183 = vst.msk [vmem:[#allocation3] sm:$0x3] %vm181, 0.0
        $region70: #{_lambda_.17} parent=61 // pred_fallthru
          _
        %v184 = vld [vmem:[%s1] sm:$0xf]
        %v185 = vld [vmem:[#allocation2] sm:$0x3]
        %v186 = vld [vmem:[#allocation3] sm:$0x3]
        %v187 = vld [vmem:[%s158] sm:$0x1]
        %v188 = vld [vmem:[%s158 + $0x8] sm:$0x1]
        %v189 = vpack.c.bf16 %v185, %v185
        %vm190 = vcmask 64512
        %v192 = vsel %vm190, %v189, 0
        %vm194 = vcmask 1043456
        %v196 = vsel %vm194, %v184, 0
        %198 = vmatprep.subr.bf16.mxu0 0
        %199 = vmatpush1.bf16.msra.mxu0 %v196
        %200 = vmatprep.subr.bf16.mxu0 0
        %201 = vmatpush1.bf16.msra.mxu0 0
        %202 = vmatprep.subr.bf16.mxu0 0
        %203 = vmatpush1.bf16.msra.mxu0 0
        %204 = vmatprep.subr.bf16.mxu0 0
        %205 = vmatpush1.bf16.msra.mxu0 0
        %206 = vmatprep.subr.bf16.mxu0 0
        %207 = vmatpush1.bf16.msra.mxu0 0
        %208 = vmatprep.subr.bf16.mxu0 0
        %209 = vmatpush1.bf16.msra.mxu0 0
        %210 = vmatprep.subr.bf16.mxu0 0
        %211 = vmatpush1.bf16.msra.mxu0 0
        %212 = vmatprep.subr.bf16.mxu0 0
        %213 = vmatpush1.bf16.msra.mxu0 0
        %214 = vmatprep.subr.bf16.mxu0 0
        %215 = vmatpush1.bf16.msra.mxu0 0
        %216 = vmatprep.subr.bf16.mxu0 0
        %217 = vmatpush1.bf16.msra.mxu0 0
        %218 = vmatprep.subr.bf16.mxu0 0
        %219 = vmatpush1.bf16.msra.mxu0 0
        %220 = vmatprep.subr.bf16.mxu0 0
        %221 = vmatpush1.bf16.msra.mxu0 0
        %222 = vmatprep.subr.bf16.mxu0 0
        %223 = vmatpush1.bf16.msra.mxu0 0
        %224 = vmatprep.subr.bf16.mxu0 0
        %225 = vmatpush1.bf16.msra.mxu0 0
        %226 = vmatprep.subr.bf16.mxu0 0
        %227 = vmatpush1.bf16.msra.mxu0 0
        %228 = vmatprep.subr.bf16.mxu0 0
        %229 = vmatpush1.bf16.msra.mxu0 0
        %230 = vmatprep.mubr.bf16.mxu0 0
        %231 = vmatmul.mubr.bf16.gmra.mrb[0].mxu0 %v192
        %v232 = vpop.f32.mrb[0].mxu0
        %v233 = vadd.f32 0.0, %v232
        %v234 = vpop.f32.mrb[0].mxu0
        %v235 = vpop.f32.mrb[0].mxu0
        %v236 = vpop.f32.mrb[0].mxu0
        %237 = vdwg.mxu0
        %v239 = vrot.slane %v233, 1
        %v242 = vadd.f32 %v187, %v233
        %v243 = vadd.f32 %v188, %v239
        %v244 = vxor.u32 %v242, 2147483648
        %v245 = vxor.u32 %v243, 2147483648
        %v246 = vmul.f32 %v244, 1.442695
        %v247 = vpow.pop %v246
        %v248 = vmul.f32 %v245, 1.442695
        %v249 = vpow.pop %v248
        %v250 = vadd.f32 %v247, 1.0
        %v251 = vadd.f32 %v249, 1.0
        %v252 = vrcp.pop %v250
        %v253 = vmul.f32 1.0, %v252
        %v254 = vrcp.pop %v251
        %v255 = vmul.f32 1.0, %v254
        %v256 = vtanh.pop %v242
        %v257 = vtanh.pop %v243
        %v259 = vrot.slane %v186, 1
        %260 = vrot.lane.b32.xlu0 %v186, 8
        %v261 = vpop.permute.xlu0 %260
        %262 = vrot.lane.b32.xlu0 %v259, 8
        %v263 = vpop.permute.xlu0 %262
        %v266 = vmul.f32 %v253, %v261
        %v267 = vmul.f32 %v255, %v263
        %270 = vrot.lane.b32.xlu0 %v256, 112
        %v271 = vpop.permute.xlu0 %270
        %272 = vrot.lane.b32.xlu0 %v257, 112
        %v273 = vpop.permute.xlu0 %272
        %v276 = vmul.f32 %v253, %v271
        %v277 = vmul.f32 %v255, %v273
        %280 = vrot.lane.b32.xlu0 %v276, 8
        %v281 = vpop.permute.xlu0 %280
        %282 = vrot.lane.b32.xlu0 %v277, 8
        %v283 = vpop.permute.xlu0 %282
        %v286 = vadd.f32 %v266, %v281
        %v287 = vadd.f32 %v267, %v283
        %v288 = vtanh.pop %v286
        %v289 = vtanh.pop %v287
        %292 = vrot.lane.b32.xlu0 %v288, 16
        %v293 = vpop.permute.xlu0 %292
        %294 = vrot.lane.b32.xlu0 %v289, 16
        %v295 = vpop.permute.xlu0 %294
        %v298 = vmul.f32 %v253, %v293
        %v299 = vmul.f32 %v255, %v295
        %302 = vrot.lane.b32.xlu0 %v298, 104
        %v303 = vpop.permute.xlu0 %302
        %304 = vrot.lane.b32.xlu0 %v299, 104
        %v305 = vpop.permute.xlu0 %304
        %vm308 = vcmask 57344
        %309 = vst.msk [vmem:[#allocation4] sm:$0x1] %vm308, %v303
        %310 = vst.msk [vmem:[#allocation4 + $0x8] sm:$0x1] %vm308, %v305
        %v311 = vld [vmem:[%s158 + $0x1] sm:$0x1]
        %v312 = vld [vmem:[%s158 + $0x9] sm:$0x1]
        %v313 = vpack.c.bf16 %v298, %v298
        %v314 = vpack.c.bf16 %v299, %v299
        %v317 = vunpack.c.l.b16 %v313
        %v318 = vunpack.c.l.b16 %v314
        %v319 = vrot.slane %v318, 7
        %vm320 = vcmask 1041409
        %v321 = vsel %vm320, %v319, %v317
        %v322 = vpack.c.b16 %v321, %v321
        %323 = vrot.lane.b32.xlu0 %v322, 104
        %v324 = vpop.permute.xlu0 %323
        %v326 = vsel %vm190, %v324, 0
        %328 = vmatprep.subr.bf16.mxu0 0
        %329 = vmatpush1.bf16.msra.mxu0 %v196
        %330 = vmatprep.subr.bf16.mxu0 0
        %331 = vmatpush1.bf16.msra.mxu0 0
        %332 = vmatprep.subr.bf16.mxu0 0
        %333 = vmatpush1.bf16.msra.mxu0 0
        %334 = vmatprep.subr.bf16.mxu0 0
        %335 = vmatpush1.bf16.msra.mxu0 0
        %336 = vmatprep.subr.bf16.mxu0 0
        %337 = vmatpush1.bf16.msra.mxu0 0
        %338 = vmatprep.subr.bf16.mxu0 0
        %339 = vmatpush1.bf16.msra.mxu0 0
        %340 = vmatprep.subr.bf16.mxu0 0
        %341 = vmatpush1.bf16.msra.mxu0 0
        %342 = vmatprep.subr.bf16.mxu0 0
        %343 = vmatpush1.bf16.msra.mxu0 0
        %344 = vmatprep.subr.bf16.mxu0 0
        %345 = vmatpush1.bf16.msra.mxu0 0
        %346 = vmatprep.subr.bf16.mxu0 0
        %347 = vmatpush1.bf16.msra.mxu0 0
        %348 = vmatprep.subr.bf16.mxu0 0
        %349 = vmatpush1.bf16.msra.mxu0 0
        %350 = vmatprep.subr.bf16.mxu0 0
        %351 = vmatpush1.bf16.msra.mxu0 0
        %352 = vmatprep.subr.bf16.mxu0 0
        %353 = vmatpush1.bf16.msra.mxu0 0
        %354 = vmatprep.subr.bf16.mxu0 0
        %355 = vmatpush1.bf16.msra.mxu0 0
        %356 = vmatprep.subr.bf16.mxu0 0
        %357 = vmatpush1.bf16.msra.mxu0 0
        %358 = vmatprep.subr.bf16.mxu0 0
        %359 = vmatpush1.bf16.msra.mxu0 0
        %360 = vmatprep.mubr.bf16.mxu0 0
        %361 = vmatmul.mubr.bf16.gmra.mrb[0].mxu0 %v326
        %v362 = vpop.f32.mrb[0].mxu0
        %v363 = vadd.f32 0.0, %v362
        %v364 = vpop.f32.mrb[0].mxu0
        %v365 = vpop.f32.mrb[0].mxu0
        %v366 = vpop.f32.mrb[0].mxu0
        %367 = vdwg.mxu0
        %v369 = vrot.slane %v363, 1
        %v372 = vadd.f32 %v311, %v363
        %v373 = vadd.f32 %v312, %v369
        %v374 = vxor.u32 %v372, 2147483648
        %v375 = vxor.u32 %v373, 2147483648
        %v376 = vmul.f32 %v374, 1.442695
        %v377 = vpow.pop %v376
        %v378 = vmul.f32 %v375, 1.442695
        %v379 = vpow.pop %v378
        %v380 = vadd.f32 %v377, 1.0
        %v381 = vadd.f32 %v379, 1.0
        %v382 = vrcp.pop %v380
        %v383 = vmul.f32 1.0, %v382
        %v384 = vrcp.pop %v381
        %v385 = vmul.f32 1.0, %v384
        %v386 = vtanh.pop %v372
        %v387 = vtanh.pop %v373
        %v388 = vmul.f32 %v383, %v286
        %v389 = vmul.f32 %v385, %v287
        %392 = vrot.lane.b32.xlu0 %v386, 112
        %v393 = vpop.permute.xlu0 %392
        %394 = vrot.lane.b32.xlu0 %v387, 112
        %v395 = vpop.permute.xlu0 %394
        %v398 = vmul.f32 %v383, %v393
        %v399 = vmul.f32 %v385, %v395
        %402 = vrot.lane.b32.xlu0 %v398, 8
        %v403 = vpop.permute.xlu0 %402
        %404 = vrot.lane.b32.xlu0 %v399, 8
        %v405 = vpop.permute.xlu0 %404
        %v408 = vadd.f32 %v388, %v403
        %v409 = vadd.f32 %v389, %v405
        %v410 = vtanh.pop %v408
        %v411 = vtanh.pop %v409
        %414 = vrot.lane.b32.xlu0 %v410, 16
        %v415 = vpop.permute.xlu0 %414
        %416 = vrot.lane.b32.xlu0 %v411, 16
        %v417 = vpop.permute.xlu0 %416
        %v420 = vmul.f32 %v383, %v415
        %v421 = vmul.f32 %v385, %v417
        %424 = vrot.lane.b32.xlu0 %v420, 104
        %v425 = vpop.permute.xlu0 %424
        %426 = vrot.lane.b32.xlu0 %v421, 104
        %v427 = vpop.permute.xlu0 %426
        %430 = vst.msk [vmem:[#allocation4 + $0x1] sm:$0x1] %vm308, %v425
        %431 = vst.msk [vmem:[#allocation4 + $0x9] sm:$0x1] %vm308, %v427
        %v432 = vld [vmem:[%s158 + $0x2] sm:$0x1]
        %v433 = vld [vmem:[%s158 + $0xa] sm:$0x1]
        %v434 = vpack.c.bf16 %v420, %v420
        %v435 = vpack.c.bf16 %v421, %v421
        %v438 = vunpack.c.l.b16 %v434
        %v439 = vunpack.c.l.b16 %v435
        %v440 = vrot.slane %v439, 7
        %v441 = vsel %vm320, %v440, %v438
        %v442 = vpack.c.b16 %v441, %v441
        %443 = vrot.lane.b32.xlu0 %v442, 104
        %v444 = vpop.permute.xlu0 %443
        %v446 = vsel %vm190, %v444, 0
        %448 = vmatprep.subr.bf16.mxu0 0
        %449 = vmatpush1.bf16.msra.mxu0 %v196
        %450 = vmatprep.subr.bf16.mxu0 0
        %451 = vmatpush1.bf16.msra.mxu0 0
        %452 = vmatprep.subr.bf16.mxu0 0
        %453 = vmatpush1.bf16.msra.mxu0 0
        %454 = vmatprep.subr.bf16.mxu0 0
        %455 = vmatpush1.bf16.msra.mxu0 0
        %456 = vmatprep.subr.bf16.mxu0 0
        %457 = vmatpush1.bf16.msra.mxu0 0
        %458 = vmatprep.subr.bf16.mxu0 0
        %459 = vmatpush1.bf16.msra.mxu0 0
        %460 = vmatprep.subr.bf16.mxu0 0
        %461 = vmatpush1.bf16.msra.mxu0 0
        %462 = vmatprep.subr.bf16.mxu0 0
        %463 = vmatpush1.bf16.msra.mxu0 0
        %464 = vmatprep.subr.bf16.mxu0 0
        %465 = vmatpush1.bf16.msra.mxu0 0
        %466 = vmatprep.subr.bf16.mxu0 0
        %467 = vmatpush1.bf16.msra.mxu0 0
        %468 = vmatprep.subr.bf16.mxu0 0
        %469 = vmatpush1.bf16.msra.mxu0 0
        %470 = vmatprep.subr.bf16.mxu0 0
        %471 = vmatpush1.bf16.msra.mxu0 0
        %472 = vmatprep.subr.bf16.mxu0 0
        %473 = vmatpush1.bf16.msra.mxu0 0
        %474 = vmatprep.subr.bf16.mxu0 0
        %475 = vmatpush1.bf16.msra.mxu0 0
        %476 = vmatprep.subr.bf16.mxu0 0
        %477 = vmatpush1.bf16.msra.mxu0 0
        %478 = vmatprep.subr.bf16.mxu0 0
        %479 = vmatpush1.bf16.msra.mxu0 0
        %480 = vmatprep.mubr.bf16.mxu0 0
        %481 = vmatmul.mubr.bf16.gmra.mrb[0].mxu0 %v446
        %v482 = vpop.f32.mrb[0].mxu0
        %v483 = vadd.f32 0.0, %v482
        %v484 = vpop.f32.mrb[0].mxu0
        %v485 = vpop.f32.mrb[0].mxu0
        %v486 = vpop.f32.mrb[0].mxu0
        %487 = vdwg.mxu0
        %v489 = vrot.slane %v483, 1
        %v492 = vadd.f32 %v432, %v483
        %v493 = vadd.f32 %v433, %v489
        %v494 = vxor.u32 %v492, 2147483648
        %v495 = vxor.u32 %v493, 2147483648
        %v496 = vmul.f32 %v494, 1.442695
        %v497 = vpow.pop %v496
        %v498 = vmul.f32 %v495, 1.442695
        %v499 = vpow.pop %v498
        %v500 = vadd.f32 %v497, 1.0
        %v501 = vadd.f32 %v499, 1.0
        %v502 = vrcp.pop %v500
        %v503 = vmul.f32 1.0, %v502
        %v504 = vrcp.pop %v501
        %v505 = vmul.f32 1.0, %v504
        %v506 = vtanh.pop %v492
        %v507 = vtanh.pop %v493
        %v508 = vmul.f32 %v503, %v408
        %v509 = vmul.f32 %v505, %v409
        %512 = vrot.lane.b32.xlu0 %v506, 112
        %v513 = vpop.permute.xlu0 %512
        %514 = vrot.lane.b32.xlu0 %v507, 112
        %v515 = vpop.permute.xlu0 %514
        %v518 = vmul.f32 %v503, %v513
        %v519 = vmul.f32 %v505, %v515
        %522 = vrot.lane.b32.xlu0 %v518, 8
        %v523 = vpop.permute.xlu0 %522
        %524 = vrot.lane.b32.xlu0 %v519, 8
        %v525 = vpop.permute.xlu0 %524
        %v528 = vadd.f32 %v508, %v523
        %v529 = vadd.f32 %v509, %v525
        %v530 = vtanh.pop %v528
        %v531 = vtanh.pop %v529
        %534 = vrot.lane.b32.xlu0 %v530, 16
        %v535 = vpop.permute.xlu0 %534
        %536 = vrot.lane.b32.xlu0 %v531, 16
        %v537 = vpop.permute.xlu0 %536
        %v540 = vmul.f32 %v503, %v535
        %v541 = vmul.f32 %v505, %v537
        %544 = vrot.lane.b32.xlu0 %v540, 104
        %v545 = vpop.permute.xlu0 %544
        %546 = vrot.lane.b32.xlu0 %v541, 104
        %v547 = vpop.permute.xlu0 %546
        %550 = vst.msk [vmem:[#allocation4 + $0x2] sm:$0x1] %vm308, %v545
        %551 = vst.msk [vmem:[#allocation4 + $0xa] sm:$0x1] %vm308, %v547
        %v552 = vld [vmem:[%s158 + $0x3] sm:$0x1]
        %v553 = vld [vmem:[%s158 + $0xb] sm:$0x1]
        %v554 = vpack.c.bf16 %v540, %v540
        %v555 = vpack.c.bf16 %v541, %v541
        %v558 = vunpack.c.l.b16 %v554
        %v559 = vunpack.c.l.b16 %v555
        %v560 = vrot.slane %v559, 7
        %v561 = vsel %vm320, %v560, %v558
        %v562 = vpack.c.b16 %v561, %v561
        %563 = vrot.lane.b32.xlu0 %v562, 104
        %v564 = vpop.permute.xlu0 %563
        %v566 = vsel %vm190, %v564, 0
        %568 = vmatprep.subr.bf16.mxu0 0
        %569 = vmatpush1.bf16.msra.mxu0 %v196
        %570 = vmatprep.subr.bf16.mxu0 0
        %571 = vmatpush1.bf16.msra.mxu0 0
        %572 = vmatprep.subr.bf16.mxu0 0
        %573 = vmatpush1.bf16.msra.mxu0 0
        %574 = vmatprep.subr.bf16.mxu0 0
        %575 = vmatpush1.bf16.msra.mxu0 0
        %576 = vmatprep.subr.bf16.mxu0 0
        %577 = vmatpush1.bf16.msra.mxu0 0
        %578 = vmatprep.subr.bf16.mxu0 0
        %579 = vmatpush1.bf16.msra.mxu0 0
        %580 = vmatprep.subr.bf16.mxu0 0
        %581 = vmatpush1.bf16.msra.mxu0 0
        %582 = vmatprep.subr.bf16.mxu0 0
        %583 = vmatpush1.bf16.msra.mxu0 0
        %584 = vmatprep.subr.bf16.mxu0 0
        %585 = vmatpush1.bf16.msra.mxu0 0
        %586 = vmatprep.subr.bf16.mxu0 0
        %587 = vmatpush1.bf16.msra.mxu0 0
        %588 = vmatprep.subr.bf16.mxu0 0
        %589 = vmatpush1.bf16.msra.mxu0 0
        %590 = vmatprep.subr.bf16.mxu0 0
        %591 = vmatpush1.bf16.msra.mxu0 0
        %592 = vmatprep.subr.bf16.mxu0 0
        %593 = vmatpush1.bf16.msra.mxu0 0
        %594 = vmatprep.subr.bf16.mxu0 0
        %595 = vmatpush1.bf16.msra.mxu0 0
        %596 = vmatprep.subr.bf16.mxu0 0
        %597 = vmatpush1.bf16.msra.mxu0 0
        %598 = vmatprep.subr.bf16.mxu0 0
        %599 = vmatpush1.bf16.msra.mxu0 0
        %600 = vmatprep.mubr.bf16.mxu0 0
        %601 = vmatmul.mubr.bf16.gmra.mrb[0].mxu0 %v566
        %v602 = vpop.f32.mrb[0].mxu0
        %v603 = vadd.f32 0.0, %v602
        %v604 = vpop.f32.mrb[0].mxu0
        %v605 = vpop.f32.mrb[0].mxu0
        %v606 = vpop.f32.mrb[0].mxu0
        %607 = vdwg.mxu0
        %v609 = vrot.slane %v603, 1
        %v612 = vadd.f32 %v552, %v603
        %v613 = vadd.f32 %v553, %v609
        %v614 = vxor.u32 %v612, 2147483648
        %v615 = vxor.u32 %v613, 2147483648
        %v616 = vmul.f32 %v614, 1.442695
        %v617 = vpow.pop %v616
        %v618 = vmul.f32 %v615, 1.442695
        %v619 = vpow.pop %v618
        %v620 = vadd.f32 %v617, 1.0
        %v621 = vadd.f32 %v619, 1.0
        %v622 = vrcp.pop %v620
        %v623 = vmul.f32 1.0, %v622
        %v624 = vrcp.pop %v621
        %v625 = vmul.f32 1.0, %v624
        %v626 = vtanh.pop %v612
        %v627 = vtanh.pop %v613
        %v628 = vmul.f32 %v623, %v528
        %v629 = vmul.f32 %v625, %v529
        %632 = vrot.lane.b32.xlu0 %v626, 112
        %v633 = vpop.permute.xlu0 %632
        %634 = vrot.lane.b32.xlu0 %v627, 112
        %v635 = vpop.permute.xlu0 %634
        %v638 = vmul.f32 %v623, %v633
        %v639 = vmul.f32 %v625, %v635
        %642 = vrot.lane.b32.xlu0 %v638, 8
        %v643 = vpop.permute.xlu0 %642
        %644 = vrot.lane.b32.xlu0 %v639, 8
        %v645 = vpop.permute.xlu0 %644
        %v648 = vadd.f32 %v628, %v643
        %v649 = vadd.f32 %v629, %v645
        %v650 = vtanh.pop %v648
        %v651 = vtanh.pop %v649
        %654 = vrot.lane.b32.xlu0 %v650, 16
        %v655 = vpop.permute.xlu0 %654
        %656 = vrot.lane.b32.xlu0 %v651, 16
        %v657 = vpop.permute.xlu0 %656
        %v660 = vmul.f32 %v623, %v655
        %v661 = vmul.f32 %v625, %v657
        %664 = vrot.lane.b32.xlu0 %v660, 104
        %v665 = vpop.permute.xlu0 %664
        %666 = vrot.lane.b32.xlu0 %v661, 104
        %v667 = vpop.permute.xlu0 %666
        %670 = vst.msk [vmem:[#allocation4 + $0x3] sm:$0x1] %vm308, %v665
        %671 = vst.msk [vmem:[#allocation4 + $0xb] sm:$0x1] %vm308, %v667
        %v672 = vld [vmem:[%s158 + $0x4] sm:$0x1]
        %v673 = vld [vmem:[%s158 + $0xc] sm:$0x1]
        %v674 = vpack.c.bf16 %v660, %v660
        %v675 = vpack.c.bf16 %v661, %v661
        %v678 = vunpack.c.l.b16 %v674
        %v679 = vunpack.c.l.b16 %v675
        %v680 = vrot.slane %v679, 7
        %v681 = vsel %vm320, %v680, %v678
        %v682 = vpack.c.b16 %v681, %v681
        %683 = vrot.lane.b32.xlu0 %v682, 104
        %v684 = vpop.permute.xlu0 %683
        %v686 = vsel %vm190, %v684, 0
        %688 = vmatprep.subr.bf16.mxu0 0
        %689 = vmatpush1.bf16.msra.mxu0 %v196
        %690 = vmatprep.subr.bf16.mxu0 0
        %691 = vmatpush1.bf16.msra.mxu0 0
        %692 = vmatprep.subr.bf16.mxu0 0
        %693 = vmatpush1.bf16.msra.mxu0 0
        %694 = vmatprep.subr.bf16.mxu0 0
        %695 = vmatpush1.bf16.msra.mxu0 0
        %696 = vmatprep.subr.bf16.mxu0 0
        %697 = vmatpush1.bf16.msra.mxu0 0
        %698 = vmatprep.subr.bf16.mxu0 0
        %699 = vmatpush1.bf16.msra.mxu0 0
        %700 = vmatprep.subr.bf16.mxu0 0
        %701 = vmatpush1.bf16.msra.mxu0 0
        %702 = vmatprep.subr.bf16.mxu0 0
        %703 = vmatpush1.bf16.msra.mxu0 0
        %704 = vmatprep.subr.bf16.mxu0 0
        %705 = vmatpush1.bf16.msra.mxu0 0
        %706 = vmatprep.subr.bf16.mxu0 0
        %707 = vmatpush1.bf16.msra.mxu0 0
        %708 = vmatprep.subr.bf16.mxu0 0
        %709 = vmatpush1.bf16.msra.mxu0 0
        %710 = vmatprep.subr.bf16.mxu0 0
        %711 = vmatpush1.bf16.msra.mxu0 0
        %712 = vmatprep.subr.bf16.mxu0 0
        %713 = vmatpush1.bf16.msra.mxu0 0
        %714 = vmatprep.subr.bf16.mxu0 0
        %715 = vmatpush1.bf16.msra.mxu0 0
        %716 = vmatprep.subr.bf16.mxu0 0
        %717 = vmatpush1.bf16.msra.mxu0 0
        %718 = vmatprep.subr.bf16.mxu0 0
        %719 = vmatpush1.bf16.msra.mxu0 0
        %720 = vmatprep.mubr.bf16.mxu0 0
        %721 = vmatmul.mubr.bf16.gmra.mrb[0].mxu0 %v686
        %v722 = vpop.f32.mrb[0].mxu0
        %v723 = vadd.f32 0.0, %v722
        %v724 = vpop.f32.mrb[0].mxu0
        %v725 = vpop.f32.mrb[0].mxu0
        %v726 = vpop.f32.mrb[0].mxu0
        %727 = vdwg.mxu0
        %v729 = vrot.slane %v723, 1
        %v732 = vadd.f32 %v672, %v723
        %v733 = vadd.f32 %v673, %v729
        %v734 = vxor.u32 %v732, 2147483648
        %v735 = vxor.u32 %v733, 2147483648
        %v736 = vmul.f32 %v734, 1.442695
        %v737 = vpow.pop %v736
        %v738 = vmul.f32 %v735, 1.442695
        %v739 = vpow.pop %v738
        %v740 = vadd.f32 %v737, 1.0
        %v741 = vadd.f32 %v739, 1.0
        %v742 = vrcp.pop %v740
        %v743 = vmul.f32 1.0, %v742
        %v744 = vrcp.pop %v741
        %v745 = vmul.f32 1.0, %v744
        %v746 = vtanh.pop %v732
        %v747 = vtanh.pop %v733
        %v748 = vmul.f32 %v743, %v648
        %v749 = vmul.f32 %v745, %v649
        %752 = vrot.lane.b32.xlu0 %v746, 112
        %v753 = vpop.permute.xlu0 %752
        %754 = vrot.lane.b32.xlu0 %v747, 112
        %v755 = vpop.permute.xlu0 %754
        %v758 = vmul.f32 %v743, %v753
        %v759 = vmul.f32 %v745, %v755
        %762 = vrot.lane.b32.xlu0 %v758, 8
        %v763 = vpop.permute.xlu0 %762
        %764 = vrot.lane.b32.xlu0 %v759, 8
        %v765 = vpop.permute.xlu0 %764
        %v768 = vadd.f32 %v748, %v763
        %v769 = vadd.f32 %v749, %v765
        %v770 = vtanh.pop %v768
        %v771 = vtanh.pop %v769
        %774 = vrot.lane.b32.xlu0 %v770, 16
        %v775 = vpop.permute.xlu0 %774
        %776 = vrot.lane.b32.xlu0 %v771, 16
        %v777 = vpop.permute.xlu0 %776
        %v780 = vmul.f32 %v743, %v775
        %v781 = vmul.f32 %v745, %v777
        %784 = vrot.lane.b32.xlu0 %v780, 104
        %v785 = vpop.permute.xlu0 %784
        %786 = vrot.lane.b32.xlu0 %v781, 104
        %v787 = vpop.permute.xlu0 %786
        %790 = vst.msk [vmem:[#allocation4 + $0x4] sm:$0x1] %vm308, %v785
        %791 = vst.msk [vmem:[#allocation4 + $0xc] sm:$0x1] %vm308, %v787
        %v792 = vld [vmem:[%s158 + $0x5] sm:$0x1]
        %v793 = vld [vmem:[%s158 + $0xd] sm:$0x1]
        %v794 = vpack.c.bf16 %v780, %v780
        %v795 = vpack.c.bf16 %v781, %v781
        %v798 = vunpack.c.l.b16 %v794
        %v799 = vunpack.c.l.b16 %v795
        %v800 = vrot.slane %v799, 7
        %v801 = vsel %vm320, %v800, %v798
        %v802 = vpack.c.b16 %v801, %v801
        %803 = vrot.lane.b32.xlu0 %v802, 104
        %v804 = vpop.permute.xlu0 %803
        %v806 = vsel %vm190, %v804, 0
        %808 = vmatprep.subr.bf16.mxu0 0
        %809 = vmatpush1.bf16.msra.mxu0 %v196
        %810 = vmatprep.subr.bf16.mxu0 0
        %811 = vmatpush1.bf16.msra.mxu0 0
        %812 = vmatprep.subr.bf16.mxu0 0
        %813 = vmatpush1.bf16.msra.mxu0 0
        %814 = vmatprep.subr.bf16.mxu0 0
        %815 = vmatpush1.bf16.msra.mxu0 0
        %816 = vmatprep.subr.bf16.mxu0 0
        %817 = vmatpush1.bf16.msra.mxu0 0
        %818 = vmatprep.subr.bf16.mxu0 0
        %819 = vmatpush1.bf16.msra.mxu0 0
        %820 = vmatprep.subr.bf16.mxu0 0
        %821 = vmatpush1.bf16.msra.mxu0 0
        %822 = vmatprep.subr.bf16.mxu0 0
        %823 = vmatpush1.bf16.msra.mxu0 0
        %824 = vmatprep.subr.bf16.mxu0 0
        %825 = vmatpush1.bf16.msra.mxu0 0
        %826 = vmatprep.subr.bf16.mxu0 0
        %827 = vmatpush1.bf16.msra.mxu0 0
        %828 = vmatprep.subr.bf16.mxu0 0
        %829 = vmatpush1.bf16.msra.mxu0 0
        %830 = vmatprep.subr.bf16.mxu0 0
        %831 = vmatpush1.bf16.msra.mxu0 0
        %832 = vmatprep.subr.bf16.mxu0 0
        %833 = vmatpush1.bf16.msra.mxu0 0
        %834 = vmatprep.subr.bf16.mxu0 0
        %835 = vmatpush1.bf16.msra.mxu0 0
        %836 = vmatprep.subr.bf16.mxu0 0
        %837 = vmatpush1.bf16.msra.mxu0 0
        %838 = vmatprep.subr.bf16.mxu0 0
        %839 = vmatpush1.bf16.msra.mxu0 0
        %840 = vmatprep.mubr.bf16.mxu0 0
        %841 = vmatmul.mubr.bf16.gmra.mrb[0].mxu0 %v806
        %v842 = vpop.f32.mrb[0].mxu0
        %v843 = vadd.f32 0.0, %v842
        %v844 = vpop.f32.mrb[0].mxu0
        %v845 = vpop.f32.mrb[0].mxu0
        %v846 = vpop.f32.mrb[0].mxu0
        %847 = vdwg.mxu0
        %v849 = vrot.slane %v843, 1
        %v852 = vadd.f32 %v792, %v843
        %v853 = vadd.f32 %v793, %v849
        %v854 = vxor.u32 %v852, 2147483648
        %v855 = vxor.u32 %v853, 2147483648
        %v856 = vmul.f32 %v854, 1.442695
        %v857 = vpow.pop %v856
        %v858 = vmul.f32 %v855, 1.442695
        %v859 = vpow.pop %v858
        %v860 = vadd.f32 %v857, 1.0
        %v861 = vadd.f32 %v859, 1.0
        %v862 = vrcp.pop %v860
        %v863 = vmul.f32 1.0, %v862
        %v864 = vrcp.pop %v861
        %v865 = vmul.f32 1.0, %v864
        %v866 = vtanh.pop %v852
        %v867 = vtanh.pop %v853
        %v868 = vmul.f32 %v863, %v768
        %v869 = vmul.f32 %v865, %v769
        %872 = vrot.lane.b32.xlu0 %v866, 112
        %v873 = vpop.permute.xlu0 %872
        %874 = vrot.lane.b32.xlu0 %v867, 112
        %v875 = vpop.permute.xlu0 %874
        %v878 = vmul.f32 %v863, %v873
        %v879 = vmul.f32 %v865, %v875
        %882 = vrot.lane.b32.xlu0 %v878, 8
        %v883 = vpop.permute.xlu0 %882
        %884 = vrot.lane.b32.xlu0 %v879, 8
        %v885 = vpop.permute.xlu0 %884
        %v888 = vadd.f32 %v868, %v883
        %v889 = vadd.f32 %v869, %v885
        %v890 = vtanh.pop %v888
        %v891 = vtanh.pop %v889
        %894 = vrot.lane.b32.xlu0 %v890, 16
        %v895 = vpop.permute.xlu0 %894
        %896 = vrot.lane.b32.xlu0 %v891, 16
        %v897 = vpop.permute.xlu0 %896
        %v900 = vmul.f32 %v863, %v895
        %v901 = vmul.f32 %v865, %v897
        %904 = vrot.lane.b32.xlu0 %v900, 104
        %v905 = vpop.permute.xlu0 %904
        %906 = vrot.lane.b32.xlu0 %v901, 104
        %v907 = vpop.permute.xlu0 %906
        %910 = vst.msk [vmem:[#allocation4 + $0x5] sm:$0x1] %vm308, %v905
        %911 = vst.msk [vmem:[#allocation4 + $0xd] sm:$0x1] %vm308, %v907
        %v912 = vld [vmem:[%s158 + $0x6] sm:$0x1]
        %v913 = vld [vmem:[%s158 + $0xe] sm:$0x1]
        %v914 = vpack.c.bf16 %v900, %v900
        %v915 = vpack.c.bf16 %v901, %v901
        %v918 = vunpack.c.l.b16 %v914
        %v919 = vunpack.c.l.b16 %v915
        %v920 = vrot.slane %v919, 7
        %v921 = vsel %vm320, %v920, %v918
        %v922 = vpack.c.b16 %v921, %v921
        %923 = vrot.lane.b32.xlu0 %v922, 104
        %v924 = vpop.permute.xlu0 %923
        %v926 = vsel %vm190, %v924, 0
        %928 = vmatprep.subr.bf16.mxu0 0
        %929 = vmatpush1.bf16.msra.mxu0 %v196
        %930 = vmatprep.subr.bf16.mxu0 0
        %931 = vmatpush1.bf16.msra.mxu0 0
        %932 = vmatprep.subr.bf16.mxu0 0
        %933 = vmatpush1.bf16.msra.mxu0 0
        %934 = vmatprep.subr.bf16.mxu0 0
        %935 = vmatpush1.bf16.msra.mxu0 0
        %936 = vmatprep.subr.bf16.mxu0 0
        %937 = vmatpush1.bf16.msra.mxu0 0
        %938 = vmatprep.subr.bf16.mxu0 0
        %939 = vmatpush1.bf16.msra.mxu0 0
        %940 = vmatprep.subr.bf16.mxu0 0
        %941 = vmatpush1.bf16.msra.mxu0 0
        %942 = vmatprep.subr.bf16.mxu0 0
        %943 = vmatpush1.bf16.msra.mxu0 0
        %944 = vmatprep.subr.bf16.mxu0 0
        %945 = vmatpush1.bf16.msra.mxu0 0
        %946 = vmatprep.subr.bf16.mxu0 0
        %947 = vmatpush1.bf16.msra.mxu0 0
        %948 = vmatprep.subr.bf16.mxu0 0
        %949 = vmatpush1.bf16.msra.mxu0 0
        %950 = vmatprep.subr.bf16.mxu0 0
        %951 = vmatpush1.bf16.msra.mxu0 0
        %952 = vmatprep.subr.bf16.mxu0 0
        %953 = vmatpush1.bf16.msra.mxu0 0
        %954 = vmatprep.subr.bf16.mxu0 0
        %955 = vmatpush1.bf16.msra.mxu0 0
        %956 = vmatprep.subr.bf16.mxu0 0
        %957 = vmatpush1.bf16.msra.mxu0 0
        %958 = vmatprep.subr.bf16.mxu0 0
        %959 = vmatpush1.bf16.msra.mxu0 0
        %960 = vmatprep.mubr.bf16.mxu0 0
        %961 = vmatmul.mubr.bf16.gmra.mrb[0].mxu0 %v926
        %v962 = vpop.f32.mrb[0].mxu0
        %v963 = vadd.f32 0.0, %v962
        %v964 = vpop.f32.mrb[0].mxu0
        %v965 = vpop.f32.mrb[0].mxu0
        %v966 = vpop.f32.mrb[0].mxu0
        %967 = vdwg.mxu0
        %v969 = vrot.slane %v963, 1
        %v972 = vadd.f32 %v912, %v963
        %v973 = vadd.f32 %v913, %v969
        %v974 = vxor.u32 %v972, 2147483648
        %v975 = vxor.u32 %v973, 2147483648
        %v976 = vmul.f32 %v974, 1.442695
        %v977 = vpow.pop %v976
        %v978 = vmul.f32 %v975, 1.442695
        %v979 = vpow.pop %v978
        %v980 = vadd.f32 %v977, 1.0
        %v981 = vadd.f32 %v979, 1.0
        %v982 = vrcp.pop %v980
        %v983 = vmul.f32 1.0, %v982
        %v984 = vrcp.pop %v981
        %v985 = vmul.f32 1.0, %v984
        %v986 = vtanh.pop %v972
        %v987 = vtanh.pop %v973
        %v988 = vmul.f32 %v983, %v888
        %v989 = vmul.f32 %v985, %v889
        %992 = vrot.lane.b32.xlu0 %v986, 112
        %v993 = vpop.permute.xlu0 %992
        %994 = vrot.lane.b32.xlu0 %v987, 112
        %v995 = vpop.permute.xlu0 %994
        %v998 = vmul.f32 %v983, %v993
        %v999 = vmul.f32 %v985, %v995
        %1002 = vrot.lane.b32.xlu0 %v998, 8
        %v1003 = vpop.permute.xlu0 %1002
        %1004 = vrot.lane.b32.xlu0 %v999, 8
        %v1005 = vpop.permute.xlu0 %1004
        %v1008 = vadd.f32 %v988, %v1003
        %v1009 = vadd.f32 %v989, %v1005
        %v1010 = vtanh.pop %v1008
        %v1011 = vtanh.pop %v1009
        %1014 = vrot.lane.b32.xlu0 %v1010, 16
        %v1015 = vpop.permute.xlu0 %1014
        %1016 = vrot.lane.b32.xlu0 %v1011, 16
        %v1017 = vpop.permute.xlu0 %1016
        %v1020 = vmul.f32 %v983, %v1015
        %v1021 = vmul.f32 %v985, %v1017
        %1024 = vrot.lane.b32.xlu0 %v1020, 104
        %v1025 = vpop.permute.xlu0 %1024
        %1026 = vrot.lane.b32.xlu0 %v1021, 104
        %v1027 = vpop.permute.xlu0 %1026
        %1030 = vst.msk [vmem:[#allocation4 + $0x6] sm:$0x1] %vm308, %v1025
        %1031 = vst.msk [vmem:[#allocation4 + $0xe] sm:$0x1] %vm308, %v1027
        %v1032 = vld [vmem:[%s158 + $0x7] sm:$0x1]
        %v1033 = vld [vmem:[%s158 + $0xf] sm:$0x1]
        %v1034 = vpack.c.bf16 %v1020, %v1020
        %v1035 = vpack.c.bf16 %v1021, %v1021
        %v1038 = vunpack.c.l.b16 %v1034
        %v1039 = vunpack.c.l.b16 %v1035
        %v1040 = vrot.slane %v1039, 7
        %v1041 = vsel %vm320, %v1040, %v1038
        %v1042 = vpack.c.b16 %v1041, %v1041
        %1043 = vrot.lane.b32.xlu0 %v1042, 104
        %v1044 = vpop.permute.xlu0 %1043
        %v1046 = vsel %vm190, %v1044, 0
        %1048 = vmatprep.subr.bf16.mxu0 0
        %1049 = vmatpush1.bf16.msra.mxu0 %v196
        %1050 = vmatprep.subr.bf16.mxu0 0
        %1051 = vmatpush1.bf16.msra.mxu0 0
        %1052 = vmatprep.subr.bf16.mxu0 0
        %1053 = vmatpush1.bf16.msra.mxu0 0
        %1054 = vmatprep.subr.bf16.mxu0 0
        %1055 = vmatpush1.bf16.msra.mxu0 0
        %1056 = vmatprep.subr.bf16.mxu0 0
        %1057 = vmatpush1.bf16.msra.mxu0 0
        %1058 = vmatprep.subr.bf16.mxu0 0
        %1059 = vmatpush1.bf16.msra.mxu0 0
        %1060 = vmatprep.subr.bf16.mxu0 0
        %1061 = vmatpush1.bf16.msra.mxu0 0
        %1062 = vmatprep.subr.bf16.mxu0 0
        %1063 = vmatpush1.bf16.msra.mxu0 0
        %1064 = vmatprep.subr.bf16.mxu0 0
        %1065 = vmatpush1.bf16.msra.mxu0 0
        %1066 = vmatprep.subr.bf16.mxu0 0
        %1067 = vmatpush1.bf16.msra.mxu0 0
        %1068 = vmatprep.subr.bf16.mxu0 0
        %1069 = vmatpush1.bf16.msra.mxu0 0
        %1070 = vmatprep.subr.bf16.mxu0 0
        %1071 = vmatpush1.bf16.msra.mxu0 0
        %1072 = vmatprep.subr.bf16.mxu0 0
        %1073 = vmatpush1.bf16.msra.mxu0 0
        %1074 = vmatprep.subr.bf16.mxu0 0
        %1075 = vmatpush1.bf16.msra.mxu0 0
        %1076 = vmatprep.subr.bf16.mxu0 0
        %1077 = vmatpush1.bf16.msra.mxu0 0
        %1078 = vmatprep.subr.bf16.mxu0 0
        %1079 = vmatpush1.bf16.msra.mxu0 0
        %1080 = vmatprep.mubr.bf16.mxu0 0
        %1081 = vmatmul.mubr.bf16.gmra.mrb[0].mxu0 %v1046
        %v1082 = vpop.f32.mrb[0].mxu0
        %v1083 = vadd.f32 0.0, %v1082
        %v1084 = vpop.f32.mrb[0].mxu0
        %v1085 = vpop.f32.mrb[0].mxu0
        %v1086 = vpop.f32.mrb[0].mxu0
        %1087 = vdwg.mxu0
        %v1089 = vrot.slane %v1083, 1
        %v1092 = vadd.f32 %v1032, %v1083
        %v1093 = vadd.f32 %v1033, %v1089
        %v1094 = vxor.u32 %v1092, 2147483648
        %v1095 = vxor.u32 %v1093, 2147483648
        %v1096 = vmul.f32 %v1094, 1.442695
        %v1097 = vpow.pop %v1096
        %v1098 = vmul.f32 %v1095, 1.442695
        %v1099 = vpow.pop %v1098
        %v1100 = vadd.f32 %v1097, 1.0
        %v1101 = vadd.f32 %v1099, 1.0
        %v1102 = vrcp.pop %v1100
        %v1103 = vmul.f32 1.0, %v1102
        %v1104 = vrcp.pop %v1101
        %v1105 = vmul.f32 1.0, %v1104
        %v1106 = vtanh.pop %v1092
        %v1107 = vtanh.pop %v1093
        %v1108 = vmul.f32 %v1103, %v1008
        %v1109 = vmul.f32 %v1105, %v1009
        %1112 = vrot.lane.b32.xlu0 %v1106, 112
        %v1113 = vpop.permute.xlu0 %1112
        %1114 = vrot.lane.b32.xlu0 %v1107, 112
        %v1115 = vpop.permute.xlu0 %1114
        %v1118 = vmul.f32 %v1103, %v1113
        %v1119 = vmul.f32 %v1105, %v1115
        %1122 = vrot.lane.b32.xlu0 %v1118, 8
        %v1123 = vpop.permute.xlu0 %1122
        %1124 = vrot.lane.b32.xlu0 %v1119, 8
        %v1125 = vpop.permute.xlu0 %1124
        %v1128 = vadd.f32 %v1108, %v1123
        %v1129 = vadd.f32 %v1109, %v1125
        %v1130 = vtanh.pop %v1128
        %v1131 = vtanh.pop %v1129
        %1134 = vrot.lane.b32.xlu0 %v1130, 16
        %v1135 = vpop.permute.xlu0 %1134
        %1136 = vrot.lane.b32.xlu0 %v1131, 16
        %v1137 = vpop.permute.xlu0 %1136
        %v1140 = vmul.f32 %v1103, %v1135
        %v1141 = vmul.f32 %v1105, %v1137
        %1144 = vrot.lane.b32.xlu0 %v1140, 104
        %v1145 = vpop.permute.xlu0 %1144
        %1146 = vrot.lane.b32.xlu0 %v1141, 104
        %v1147 = vpop.permute.xlu0 %1146
        %1150 = vst.msk [vmem:[#allocation4 + $0x7] sm:$0x1] %vm308, %v1145
        %1151 = vst.msk [vmem:[#allocation4 + $0xf] sm:$0x1] %vm308, %v1147
        %v1152 = vrot.slane %v1141, 7
        %v1153 = vsel %vm320, %v1152, %v1140
        %1154 = vrot.lane.b32.xlu0 %v1153, 104
        %v1155 = vpop.permute.xlu0 %1154
        %vm1157 = vcmask 58368
        %1158 = vst.msk [vmem:[#allocation2] sm:$0x3] %vm1157, %v1155
        %v1161 = vrot.slane %v1129, 7
        %v1162 = vsel %vm320, %v1161, %v1128
        %1163 = vrot.lane.b32.xlu0 %v1162, 120
        %v1164 = vpop.permute.xlu0 %1163
        %1166 = vst.msk [vmem:[#allocation3] sm:$0x3] %vm1157, %v1164
        %v1167 = vld [vmem:[#allocation4] sm:$0xff]
        %v1168 = vld [vmem:[#allocation4 + $0x8] sm:$0xff]
        %v1169 = vpack.c.bf16 %v1167, %v1167
        %v1170 = vpack.c.bf16 %v1168, %v1168
        %vm1171 = vcmask 60416
        %1172 = vst.msk [vmem:[%s175] sm:$0xf] %vm1171, %v1169
        %1173 = vst.msk [vmem:[%s175 + $0x4] sm:$0xf] %vm1171, %v1170
        %s1174 = sand.u32 %s68, 1
        %s1175 = sand.u32 %s68, 1
        %s1176 = smul.addr %s1175, 8
        %s1177 = scalar_lea.vmem [#allocation6], %s1176
        // Predicated region
        $region71: #{_lambda_.17} parent=61 // pred_check
          %p1178 = pneg %p78
        $region72: #{_lambda_.17} parent=61 // pred_check_branch
          %1180 = sbr.rel (%p1178) target = $region74
        $region73: #{_lambda_.17} parent=61 // pred_region
          %s1181 = smul.addr %s13, 4
          %s1182 = scalar_lea.vmem %s2, %s1181
          // Predicated region
          $region75: #{_lambda_.17} parent=73 // pred_check
            _
          $region76: #{_lambda_.17} parent=73 // pred_check_branch
            %1184 = sbr.rel (0) target = $region78
          $region77: #{_lambda_.17} parent=73 // pred_region
            // Predicated region
            $region79: #{_lambda_.17} parent=77 // pred_check
              _
            $region80: #{_lambda_.17} parent=77 // pred_check_branch
              %1186 = sbr.rel target = $region82
            $region81: #{_lambda_.17} parent=77 // pred_region
              // Predicated region
              $region94: #{_lambda_.17} parent=81 // pred_check
                _
              $region95: #{_lambda_.17} parent=81 // pred_check_branch
                %1203 = sbr.rel (0) target = $region97
              $region96: #{_lambda_.17} parent=81 // pred_region
                loop: start=0, step=1, limit=1
                $region98: #{_lambda_.17} parent=96 // loop_pre_header
                  _
                $region99: #{_lambda_.17} parent=96 // loop_header
                  %s1205 = sphi 0, %s1209
                  %p1206 = scmp.ge.s32.totalorder %s1205, 1
                  %s1210 = sphi %s1177, %s1177
                  %s1211 = sphi %s1182, %s1182
                $region100: #{_lambda_.17} parent=96 // loop_header_branch
                  %1208 = sbr.rel (%p1206) target = $region104
                $region101: #{_lambda_.17} parent=96 // loop_body
                  _
                $region102: #{_lambda_.17} parent=96 // loop_footer
                  %s1209 = sadd.s32 1, %s1205
                $region103: #{_lambda_.17} parent=96 // loop_footer_branch
                  %1204 = sbr.rel target = $region99
                $region104: #{_lambda_.17} parent=96 // loop_exit
                  _
                loop: start=0, step=1, limit=1
                $region105: #{_lambda_.17} parent=96 // loop_pre_header
                  _
                $region106: #{_lambda_.17} parent=96 // loop_header
                  %s1214 = sphi 0, %s1218
                  %p1215 = scmp.ge.s32.totalorder %s1214, 1
                  %s1219 = sphi %s1177, %s1177
                  %s1220 = sphi %s1182, %s1182
                $region107: #{_lambda_.17} parent=96 // loop_header_branch
                  %1217 = sbr.rel (%p1215) target = $region111
                $region108: #{_lambda_.17} parent=96 // loop_body
                  %v1221 = vld [vmem:[%s1219] sm:$0xf]
                  %1222 = vst [vmem:[%s1220] sm:$0xf] %v1221
                  %v1223 = vld [vmem:[%s1219 + $0x4] sm:$0xf]
                  %1224 = vst [vmem:[%s1220 + $0x8] sm:$0xf] %v1223
                $region109: #{_lambda_.17} parent=96 // loop_footer
                  %s1218 = sadd.s32 1, %s1214
                $region110: #{_lambda_.17} parent=96 // loop_footer_branch
                  %1213 = sbr.rel target = $region106
                $region111: #{_lambda_.17} parent=96 // loop_exit
                  _
              $region97: #{_lambda_.17} parent=81 // pred_fallthru
                _
            $region82: #{_lambda_.17} parent=77 // pred_fallthru
              _
            // Predicated region
            $region83: #{_lambda_.17} parent=77 // pred_check
              _
            $region84: #{_lambda_.17} parent=77 // pred_check_branch
              %1188 = sbr.rel (0) target = $region86
            $region85: #{_lambda_.17} parent=77 // pred_region
              loop: start=0, step=1, limit=1
              $region87: #{_lambda_.17} parent=85 // loop_pre_header
                _
              $region88: #{_lambda_.17} parent=85 // loop_header
                %s1191 = sphi 0, %s1195
                %p1192 = scmp.ge.s32.totalorder %s1191, 1
                %s1196 = sphi %s1177, %s1177
                %s1197 = sphi %s1182, %s1182
              $region89: #{_lambda_.17} parent=85 // loop_header_branch
                %1194 = sbr.rel (%p1192) target = $region93
              $region90: #{_lambda_.17} parent=85 // loop_body
                %v1198 = vld [vmem:[%s1196] sm:$0xf]
                %1199 = vst [vmem:[%s1197] sm:$0xf] %v1198
                %v1200 = vld [vmem:[%s1196 + $0x4] sm:$0xf]
                %1201 = vst [vmem:[%s1197 + $0x8] sm:$0xf] %v1200
              $region91: #{_lambda_.17} parent=85 // loop_footer
                %s1195 = sadd.s32 1, %s1191
              $region92: #{_lambda_.17} parent=85 // loop_footer_branch
                %1190 = sbr.rel target = $region88
              $region93: #{_lambda_.17} parent=85 // loop_exit
                _
            $region86: #{_lambda_.17} parent=77 // pred_fallthru
              _
          $region78: #{_lambda_.17} parent=73 // pred_fallthru
            _
          %1225 = vnop
        $region74: #{_lambda_.17} parent=61 // pred_fallthru
          _
      $region62: #{_lambda_.17} parent=5 // pred_fallthru
        _
      %p1226 = scmp.le.s32.totalorder 2, %s8
      // Predicated region
      $region112: #{_lambda_.17} parent=5 // pred_check
        %p1227 = pneg %p1226
      $region113: #{_lambda_.17} parent=5 // pred_check_branch
        %1229 = sbr.rel (%p1227) target = $region115
      $region114: #{_lambda_.17} parent=5 // pred_region
        %s1230 = ssub.s32 %s8, 2
        // Predicated region
        $region116: #{_lambda_.17} parent=114 // pred_check
          %p1231 = pneg %p84
        $region117: #{_lambda_.17} parent=114 // pred_check_branch
          %1233 = sbr.rel (%p1231) target = $region119
        $region118: #{_lambda_.17} parent=114 // pred_region
          %s1234 = sand.u32 %s69, 1
          %s1235 = sand.u32 %s69, 1
          %s1236 = smul.addr %s1235, 8
          %s1237 = scalar_lea.vmem [#allocation6], %s1236
        $region119: #{_lambda_.17} parent=114 // pred_fallthru
          _
      $region115: #{_lambda_.17} parent=5 // pred_fallthru
        _
    $region6: #{_lambda_.17} parent=1 // loop_footer
      %s12 = sadd.s32 1, %s8
    $region7: #{_lambda_.17} parent=1 // loop_footer_branch
      %7 = sbr.rel target = $region3
    $region8: #{_lambda_.17} parent=1 // loop_exit
      _

// kernel: _lambda_.23
$region0: #{_lambda_.23}
  #allocation0 [shape = 'u32[]', space=smem, size = 0x4, offset = 0x4, fixed_abs, tag = 'smem constant byte address 0x4 - core index']
  #allocation1 [shape = 'u32[144,128]{1,0:T(1,128)}', space=vmem, size = 0x12000, scoped, tag = 'internal scratch']
  #allocation2 [shape = 'f32[32,4]{1,0:T(8,128)}', space=vmem, size = 0x4000, scoped, tag = 'scratch operand']
  %s0 = inlined_call_operand.vmem [shape: bf16[64,4], index: 0, kind: input, shape index: {}]
  %s1 = inlined_call_operand.vmem [shape: bf16[4,4], index: 1, kind: input, shape index: {}]
  %s2 = inlined_call_operand.vmem [shape: bf16[64,4], index: 2, kind: output, shape index: {}]
  %s3 = sld [smem:[#allocation0]]
  $region49: #{_lambda_.23} parent=0
    _
  %s5 = ssub.s32 1, %s3
  %s6 = scalar_select 0, %s5, %s3
  loop: start=0, step=1, limit=4
  $region2: #{_lambda_.23} parent=0 // loop_pre_header
    _
  $region3: #{_lambda_.23} parent=0 // loop_header
    %s8 = sphi 0, %s12
    %p9 = scmp.ge.s32.totalorder %s8, 4
    %s15 = sphi 0, %s34
    %s16 = sphi 0, %s30
    %s17 = sphi 0, %s26
    %s18 = sphi 0, %s15
    %s19 = sphi 0, %s16
    %s20 = sphi 0, %s17
    %s21 = sphi 0, %s18
    %s22 = sphi 0, %s19
    %s23 = sphi 0, %s20
    %s39 = sphi 0, %s41
    %s42 = sphi 0, %s39
    %s43 = sphi 0, %s42
    %s59 = sphi 0, %s43
    %s67 = sphi 0, %s69
    %s70 = sphi 0, %s67
    %s71 = sphi 0, %s70
    %s87 = sphi 0, %s71
    %s95 = sphi 0, %s97
    %s98 = sphi 0, %s95
    %s99 = sphi 0, %s98
    %s115 = sphi 0, %s99
  $region4: #{_lambda_.23} parent=0 // loop_header_branch
    %11 = sbr.rel (%p9) target = $region8
  $region5: #{_lambda_.23} parent=0 // loop_body
    %s13 = ssub.s32 %s8, 1
    %s14 = ssub.s32 %s8, 2
    %s24 = sadd.s32 1, %s17
    %p25 = scmp.ge.s32.totalorder %s24, 1
    %s26 = scalar_select %p25, 0, %s24
    %s27 = sadd.s32 1, %s16
    %s28 = scalar_select %p25, %s27, %s16
    %p29 = scmp.ge.s32.totalorder %s28, 1
    %s30 = scalar_select %p29, 0, %s28
    %s31 = sadd.s32 1, %s15
    %s32 = scalar_select %p29, %s31, %s15
    %p33 = scmp.ge.s32.totalorder %s32, 2
    %s34 = scalar_select %p33, 0, %s32
    %s35 = ssub.s32 %s15, %s34
    %s36 = ssub.s32 %s17, %s26
    %s37 = sor.u32 %s35, %s36
    %p38 = scmp.eq.s32.totalorder %s37, 0
    %s40 = sadd.s32 %s39, 1
    %s41 = scalar_select %p38, %s39, %s40
    %p44 = pneg %p38
    %p45 = scmp.eq.s32.totalorder %s8, 1
    %p46 = por %p44, %p45
    %p47 = scmp.ne.s32.totalorder %s39, %s42
    %p48 = scmp.eq.s32.totalorder %s8, 0
    %p49 = por %p47, %p48
    %p50 = scmp.ne.s32.totalorder %s39, %s42
    %p51 = scmp.eq.s32.totalorder %s13, 1
    %p52 = por %p50, %p51
    %p53 = scmp.ne.s32.totalorder %s42, %s43
    %p54 = scmp.eq.s32.totalorder %s13, 0
    %p55 = por %p53, %p54
    %p56 = scmp.ne.s32.totalorder %s42, %s43
    %p57 = scmp.eq.s32.totalorder %s14, 1
    %p58 = por %p56, %p57
    %p60 = scmp.ne.s32.totalorder %s43, %s59
    %p61 = scmp.eq.s32.totalorder %s14, 0
    %p62 = por %p60, %p61
    %s63 = ssub.s32 %s17, %s26
    %s64 = ssub.s32 %s16, %s30
    %s65 = sor.u32 %s63, %s64
    %p66 = scmp.eq.s32.totalorder %s65, 0
    %s68 = sadd.s32 %s67, 1
    %s69 = scalar_select %p66, %s67, %s68
    %p72 = pneg %p66
    %p73 = scmp.eq.s32.totalorder %s8, 1
    %p74 = por %p72, %p73
    %p75 = scmp.ne.s32.totalorder %s67, %s70
    %p76 = scmp.eq.s32.totalorder %s8, 0
    %p77 = por %p75, %p76
    %p78 = scmp.ne.s32.totalorder %s67, %s70
    %p79 = scmp.eq.s32.totalorder %s13, 1
    %p80 = por %p78, %p79
    %p81 = scmp.ne.s32.totalorder %s70, %s71
    %p82 = scmp.eq.s32.totalorder %s13, 0
    %p83 = por %p81, %p82
    %p84 = scmp.ne.s32.totalorder %s70, %s71
    %p85 = scmp.eq.s32.totalorder %s14, 1
    %p86 = por %p84, %p85
    %p88 = scmp.ne.s32.totalorder %s71, %s87
    %p89 = scmp.eq.s32.totalorder %s14, 0
    %p90 = por %p88, %p89
    %s91 = ssub.s32 %s15, %s34
    %s92 = ssub.s32 %s16, %s30
    %s93 = sor.u32 %s91, %s92
    %p94 = scmp.eq.s32.totalorder %s93, 0
    %s96 = sadd.s32 %s95, 1
    %s97 = scalar_select %p94, %s95, %s96
    %p100 = pneg %p94
    %p101 = scmp.eq.s32.totalorder %s8, 1
    %p102 = por %p100, %p101
    %p103 = scmp.ne.s32.totalorder %s95, %s98
    %p104 = scmp.eq.s32.totalorder %s8, 0
    %p105 = por %p103, %p104
    %p106 = scmp.ne.s32.totalorder %s95, %s98
    %p107 = scmp.eq.s32.totalorder %s13, 1
    %p108 = por %p106, %p107
    %p109 = scmp.ne.s32.totalorder %s98, %s99
    %p110 = scmp.eq.s32.totalorder %s13, 0
    %p111 = por %p109, %p110
    %p112 = scmp.ne.s32.totalorder %s98, %s99
    %p113 = scmp.eq.s32.totalorder %s14, 1
    %p114 = por %p112, %p113
    %p116 = scmp.ne.s32.totalorder %s99, %s115
    %p117 = scmp.eq.s32.totalorder %s14, 0
    %p118 = por %p116, %p117
    %p119 = scmp.le.s32.totalorder 1, %s8
    %p120 = scmp.lt.s32.totalorder %s8, 3
    %p121 = pnand %p119, %p120
    %p122 = pneg %p121
    // Predicated region
    $region9: #{_lambda_.23} parent=5 // pred_check
      _
    $region10: #{_lambda_.23} parent=5 // pred_check_branch
      %124 = sbr.rel (%p121) target = $region12
    $region11: #{_lambda_.23} parent=5 // pred_region
      %s125 = ssub.s32 %s8, 1
      // Predicated region
      $region13: #{_lambda_.23} parent=11 // pred_check
        %p126 = pneg %p83
      $region14: #{_lambda_.23} parent=11 // pred_check_branch
        %128 = sbr.rel (%p126) target = $region16
      $region15: #{_lambda_.23} parent=11 // pred_region
        %p129 = scmp.lt.s32.totalorder %s20, 0
        %s130 = scalar_select %p129, %s20, 0
        %p131 = scmp.lt.s32.totalorder %s19, 0
        %s132 = scalar_select %p131, %s19, 0
        %s133 = sadd.s32 %s132, %s130
        %s134 = smul.addr %s133, 2
        %s135 = scalar_lea.vmem %s1, %s134
      $region16: #{_lambda_.23} parent=11 // pred_fallthru
        _
    $region12: #{_lambda_.23} parent=5 // pred_fallthru
      _
    %p136 = scmp.lt.s32.totalorder %s8, 2
    // Predicated region
    $region17: #{_lambda_.23} parent=5 // pred_check
      %p137 = pneg %p136
    $region18: #{_lambda_.23} parent=5 // pred_check_branch
      %139 = sbr.rel (%p137) target = $region20
    $region19: #{_lambda_.23} parent=5 // pred_region
      // Predicated region
      $region21: #{_lambda_.23} parent=19 // pred_check
        %p140 = pneg %p49
      $region22: #{_lambda_.23} parent=19 // pred_check_branch
        %142 = sbr.rel (%p140) target = $region24
      $region23: #{_lambda_.23} parent=19 // pred_region
        %s143 = smul.u32 4, %s15
        %p144 = scmp.lt.s32.totalorder %s143, 7
        %s145 = scalar_select %p144, %s143, 7
        %p146 = scmp.lt.s32.totalorder %s17, 0
        %s147 = scalar_select %p146, %s17, 0
        %s148 = sadd.s32 %s147, %s145
        %s149 = smul.addr %s148, 4
        %s150 = scalar_lea.vmem %s0, %s149
        %s151 = smul.u32 4, %s15
      $region24: #{_lambda_.23} parent=19 // pred_fallthru
        _
    $region20: #{_lambda_.23} parent=5 // pred_fallthru
      _
    %p152 = scmp.le.s32.totalorder 1, %s8
    %p153 = scmp.lt.s32.totalorder %s8, 3
    %p154 = pnand %p152, %p153
    %p155 = pneg %p154
    // Predicated region
    $region25: #{_lambda_.23} parent=5 // pred_check
      _
    $region26: #{_lambda_.23} parent=5 // pred_check_branch
      %157 = sbr.rel (%p154) target = $region28
    $region27: #{_lambda_.23} parent=5 // pred_region
      %s158 = ssub.s32 %s8, 1
      %s159 = smul.u32 4, %s18
      %p160 = scmp.lt.s32.totalorder %s159, 7
      %s161 = scalar_select %p160, %s159, 7
      %p162 = scmp.lt.s32.totalorder %s20, 0
      %s163 = scalar_select %p162, %s20, 0
      %s164 = sadd.s32 %s163, %s161
      %s165 = smul.addr %s164, 4
      %s166 = scalar_lea.vmem %s0, %s165
      %p167 = pneg %p55
      %p168 = pneg %p52
      %p169 = scmp.lt.s32.totalorder %s20, 0
      %s170 = scalar_select %p169, %s20, 0
      %p171 = scmp.lt.s32.totalorder %s19, 0
      %s172 = scalar_select %p171, %s19, 0
      %s173 = sadd.s32 %s172, %s170
      %s174 = smul.addr %s173, 2
      %s175 = scalar_lea.vmem %s1, %s174
      %p176 = pneg %p83
      %p177 = pneg %p80
      %p178 = pneg %p111
      %p179 = pneg %p108
      %s180 = smul.u32 4, %s18
      %p181 = scmp.lt.s32.totalorder %s180, 7
      %s182 = scalar_select %p181, %s180, 7
      %p183 = scmp.lt.s32.totalorder %s19, 0
      %s184 = scalar_select %p183, %s19, 0
      %s185 = sadd.s32 %s184, %s182
      %s186 = smul.addr %s185, 4
      %s187 = scalar_lea.vmem %s2, %s186
      %s188 = smul.u32 4, %s18
      %p189 = scmp.lt.s32.totalorder %s188, 7
      %s190 = scalar_select %p189, %s188, 7
      %p191 = scmp.lt.s32.totalorder %s20, 0
      %s192 = scalar_select %p191, %s20, 0
      %s193 = sadd.s32 %s192, %s190
      %s194 = smul.addr %s193, 4
      %s195 = scalar_lea.vmem %s0, %s194
      %s196 = smul.u32 4, %s18
      %p197 = scmp.lt.s32.totalorder %s20, 0
      %s198 = scalar_select %p197, %s20, 0
      %p199 = scmp.lt.s32.totalorder %s19, 0
      %s200 = scalar_select %p199, %s19, 0
      %s201 = sadd.s32 %s200, %s198
      %s202 = smul.addr %s201, 2
      %s203 = scalar_lea.vmem %s1, %s202
      %s204 = smul.u32 4, %s18
      %p205 = scmp.lt.s32.totalorder %s204, 7
      %s206 = scalar_select %p205, %s204, 7
      %p207 = scmp.lt.s32.totalorder %s19, 0
      %s208 = scalar_select %p207, %s19, 0
      %s209 = sadd.s32 %s208, %s206
      %s210 = smul.addr %s209, 4
      %s211 = scalar_lea.vmem %s2, %s210
      %s212 = smul.u32 4, %s18
      %p214 = scmp.eq.s32.totalorder %s20, 0
      // Predicated region
      $region29: #{_lambda_.23} parent=27 // pred_check
        %p215 = pneg %p214
      $region30: #{_lambda_.23} parent=27 // pred_check_branch
        %217 = sbr.rel (%p215) target = $region32
      $region31: #{_lambda_.23} parent=27 // pred_region
        %vm218 = vcmask 31744
        %219 = vst.msk [vmem:[#allocation2] sm:$0xff] %vm218, 0.0
        %220 = vst.msk [vmem:[#allocation2 + $0x8] sm:$0xff] %vm218, 0.0
        %221 = vst.msk [vmem:[#allocation2 + $0x10] sm:$0xff] %vm218, 0.0
        %222 = vst.msk [vmem:[#allocation2 + $0x18] sm:$0xff] %vm218, 0.0
      $region32: #{_lambda_.23} parent=27 // pred_fallthru
        _
      %v223 = vld [vmem:[#allocation2] sm:$0xff]
      %v224 = vld [vmem:[#allocation2 + $0x8] sm:$0xff]
      %v225 = vld [vmem:[#allocation2 + $0x10] sm:$0xff]
      %v226 = vld [vmem:[#allocation2 + $0x18] sm:$0xff]
      %v227 = vld [vmem:[%s195] sm:$0xf]
      %v228 = vld [vmem:[%s195 + $0x4] sm:$0xf]
      %v229 = vld [vmem:[%s195 + $0x8] sm:$0xf]
      %v230 = vld [vmem:[%s195 + $0xc] sm:$0xf]
      %v231 = vld [vmem:[%s203] sm:$0x3]
      %v236 = vunpack.c.l.b16 %v227
      %v237 = vunpack.c.l.b16 %v228
      %v238 = vunpack.c.l.b16 %v229
      %v239 = vunpack.c.l.b16 %v230
      %v240 = vpack.c.b16 %v237, %v236
      %v241 = vpack.c.b16 %v239, %v238
      %vm242 = vcmask 31744
      %v244 = vsel %vm242, %v240, 0
      %v247 = vsel %vm242, %v241, 0
      %vm249 = vcmask 1041408
      %v251 = vsel %vm249, %v231, 0
      %253 = vmatprep.subr.bf16.mxu0 0
      %254 = vmatpush1.bf16.msra.mxu0 %v251
      %255 = vmatprep.subr.bf16.mxu0 0
      %256 = vmatpush1.bf16.msra.mxu0 0
      %257 = vmatprep.subr.bf16.mxu0 0
      %258 = vmatpush1.bf16.msra.mxu0 0
      %259 = vmatprep.subr.bf16.mxu0 0
      %260 = vmatpush1.bf16.msra.mxu0 0
      %261 = vmatprep.subr.bf16.mxu0 0
      %262 = vmatpush1.bf16.msra.mxu0 0
      %263 = vmatprep.subr.bf16.mxu0 0
      %264 = vmatpush1.bf16.msra.mxu0 0
      %265 = vmatprep.subr.bf16.mxu0 0
      %266 = vmatpush1.bf16.msra.mxu0 0
      %267 = vmatprep.subr.bf16.mxu0 0
      %268 = vmatpush1.bf16.msra.mxu0 0
      %269 = vmatprep.subr.bf16.mxu0 0
      %270 = vmatpush1.bf16.msra.mxu0 0
      %271 = vmatprep.subr.bf16.mxu0 0
      %272 = vmatpush1.bf16.msra.mxu0 0
      %273 = vmatprep.subr.bf16.mxu0 0
      %274 = vmatpush1.bf16.msra.mxu0 0
      %275 = vmatprep.subr.bf16.mxu0 0
      %276 = vmatpush1.bf16.msra.mxu0 0
      %277 = vmatprep.subr.bf16.mxu0 0
      %278 = vmatpush1.bf16.msra.mxu0 0
      %279 = vmatprep.subr.bf16.mxu0 0
      %280 = vmatpush1.bf16.msra.mxu0 0
      %281 = vmatprep.subr.bf16.mxu0 0
      %282 = vmatpush1.bf16.msra.mxu0 0
      %283 = vmatprep.subr.bf16.mxu0 0
      %284 = vmatpush1.bf16.msra.mxu0 0
      %285 = vmatprep.mubr.bf16.mxu0 0
      %286 = vmatmul.mubr.bf16.gmra.mrb[0].mxu0 %v244
      %v287 = vpop.f32.mrb[0].mxu0
      %v288 = vadd.f32 0.0, %v287
      %v289 = vpop.f32.mrb[0].mxu0
      %v290 = vpop.f32.mrb[0].mxu0
      %v291 = vadd.f32 0.0, %v290
      %v292 = vpop.f32.mrb[0].mxu0
      %293 = vmatprep.mubr.bf16.mxu0 0
      %294 = vmatmul.mubr.bf16.gmra.mrb[0].mxu0 %v247
      %v295 = vpop.f32.mrb[0].mxu0
      %v296 = vadd.f32 0.0, %v295
      %v297 = vpop.f32.mrb[0].mxu0
      %v298 = vpop.f32.mrb[0].mxu0
      %v299 = vadd.f32 0.0, %v298
      %v300 = vpop.f32.mrb[0].mxu0
      %301 = vdwg.mxu0
      %v302 = vadd.f32 %v223, %v288
      %v303 = vadd.f32 %v224, %v291
      %v304 = vadd.f32 %v225, %v296
      %v305 = vadd.f32 %v226, %v299
      %306 = vst.msk [vmem:[#allocation2] sm:$0xff] %vm242, %v302
      %307 = vst.msk [vmem:[#allocation2 + $0x8] sm:$0xff] %vm242, %v303
      %308 = vst.msk [vmem:[#allocation2 + $0x10] sm:$0xff] %vm242, %v304
      %309 = vst.msk [vmem:[#allocation2 + $0x18] sm:$0xff] %vm242, %v305
      // Predicated region
      $region33: #{_lambda_.23} parent=27 // pred_check
        %p310 = pneg %p214
      $region34: #{_lambda_.23} parent=27 // pred_check_branch
        %312 = sbr.rel (%p310) target = $region36
      $region35: #{_lambda_.23} parent=27 // pred_region
        %v313 = vld [vmem:[#allocation2] sm:$0xff]
        %v314 = vld [vmem:[#allocation2 + $0x8] sm:$0xff]
        %v315 = vld [vmem:[#allocation2 + $0x10] sm:$0xff]
        %v316 = vld [vmem:[#allocation2 + $0x18] sm:$0xff]
        %v317 = vpack.c.bf16 %v314, %v313
        %v318 = vpack.c.bf16 %v316, %v315
        %v321 = vunpack.c.l.b16 %v317
        %v322 = vunpack.c.h.b16 %v317
        %v323 = vunpack.c.l.b16 %v318
        %v324 = vunpack.c.h.b16 %v318
        %v325 = vpack.c.b16 %v321, %v321
        %v326 = vpack.c.b16 %v322, %v322
        %v327 = vpack.c.b16 %v323, %v323
        %v328 = vpack.c.b16 %v324, %v324
        %vm333 = vcmask 27648
        %334 = vst.msk [vmem:[%s211] sm:$0xf] %vm333, %v325
        %335 = vst.msk [vmem:[%s211 + $0x4] sm:$0xf] %vm333, %v326
        %336 = vst.msk [vmem:[%s211 + $0x8] sm:$0xf] %vm333, %v327
        %337 = vst.msk [vmem:[%s211 + $0xc] sm:$0xf] %vm333, %v328
      $region36: #{_lambda_.23} parent=27 // pred_fallthru
        _
      %s338 = smul.u32 4, %s18
      %p339 = scmp.lt.s32.totalorder %s338, 7
      %s340 = scalar_select %p339, %s338, 7
      %p341 = scmp.lt.s32.totalorder %s19, 0
      %s342 = scalar_select %p341, %s19, 0
      %s343 = sadd.s32 %s342, %s340
      %s344 = smul.addr %s343, 4
      %s345 = scalar_lea.vmem %s2, %s344
      // Predicated region
      $region37: #{_lambda_.23} parent=27 // pred_check
        %p346 = pneg %p108
      $region38: #{_lambda_.23} parent=27 // pred_check_branch
        %348 = sbr.rel (%p346) target = $region40
      $region39: #{_lambda_.23} parent=27 // pred_region
        %s349 = smul.u32 4, %s18
      $region40: #{_lambda_.23} parent=27 // pred_fallthru
        _
    $region28: #{_lambda_.23} parent=5 // pred_fallthru
      _
    %p350 = scmp.le.s32.totalorder 2, %s8
    // Predicated region
    $region41: #{_lambda_.23} parent=5 // pred_check
      %p351 = pneg %p350
    $region42: #{_lambda_.23} parent=5 // pred_check_branch
      %353 = sbr.rel (%p351) target = $region44
    $region43: #{_lambda_.23} parent=5 // pred_region
      %s354 = ssub.s32 %s8, 2
      // Predicated region
      $region45: #{_lambda_.23} parent=43 // pred_check
        %p355 = pneg %p114
      $region46: #{_lambda_.23} parent=43 // pred_check_branch
        %357 = sbr.rel (%p355) target = $region48
      $region47: #{_lambda_.23} parent=43 // pred_region
        %s358 = smul.u32 4, %s21
        %p359 = scmp.lt.s32.totalorder %s358, 7
        %s360 = scalar_select %p359, %s358, 7
        %p361 = scmp.lt.s32.totalorder %s22, 0
        %s362 = scalar_select %p361, %s22, 0
        %s363 = sadd.s32 %s362, %s360
        %s364 = smul.addr %s363, 4
        %s365 = scalar_lea.vmem %s2, %s364
      $region48: #{_lambda_.23} parent=43 // pred_fallthru
        _
    $region44: #{_lambda_.23} parent=5 // pred_fallthru
      _
  $region6: #{_lambda_.23} parent=0 // loop_footer
    %s12 = sadd.s32 1, %s8
  $region7: #{_lambda_.23} parent=0 // loop_footer_branch
    %7 = sbr.rel target = $region3
  $region8: #{_lambda_.23} parent=0 // loop_exit
    _

</llo_original>
